<compile_context>
chip_gen: v6e
topology: v6e:2x2x1
jax: 0.10.0
libtpu: 0.0.40
codegen_flags: <defaults>
</compile_context>

<pallas_src>
import functools

import jax
import jax.numpy as jnp
import numpy as np
from jax import lax
from jax.experimental import pallas as pl
from jax.experimental.pallas import tpu as pltpu


# ----------------------------------------------------------------------------
# Fused Pallas kernel: conv1+BN+ReLU -> maxpool2x2 -> conv2+ReLU
# ----------------------------------------------------------------------------
def _net1_kernel(xs_ref, w1_ref, b1_ref, sre_ref, w2_ref, b2_ref, o_ref, *, h2, c1):
    """Shapes (example N=2, Cin=4, H=W=16, C1=8, C2=16):

    xs_ref : (N*H, 3*W*Cin) = (32, 192)  dy-shifted, per-sample padded input
    w1_ref : (3*W*Cin, W*C1) = (192, 128) banded conv1 weights, BN scale folded
    b1_ref : (1, W*C1)                    folded BN shift
    sre_ref: (N*H2, N*H) = (16, 32)       even-row one-hot selector
    w2_ref : (3, W*C1, W2*C2) = (3,128,128) banded conv2 weights (even columns)
    b2_ref : (1, W2*C2)                   conv2 bias
    o_ref  : (N*H2, W2*C2) = (16, 128)    output, lane-dense
    """
    f32 = jnp.float32
    hi = jax.lax.Precision.HIGHEST

    # conv1 (+ folded BN) + ReLU: one matmul, all dy taps in K, all samples in M.
    y1 = jnp.dot(xs_ref[...], w1_ref[...], precision=hi, preferred_element_type=f32)
    y1 = jnp.maximum(y1 + b1_ref[...], 0.0)                      # (N*H, W*C1)

    nh, wc1 = y1.shape
    # Vertical 2x max: row r -> max(y1[r], y1[r+1]) (XLU roll + VPU max),
    # then pick even rows with a one-hot matmul (idle MXU).
    vmax = jnp.maximum(y1, pltpu.roll(y1, nh - 1, 0))
    v = jnp.dot(sre_ref[...], vmax, precision=hi, preferred_element_type=f32)  # (N*H2, W*C1)

    # Horizontal 2x max: column block x -> max(v[x], v[x+1]); only even blocks
    # are consumed (conv2 band rows for odd blocks are structurally zero).
    q = jnp.maximum(v, pltpu.roll(v, wc1 - c1, 1))               # (N*H2, W*C1)

    # conv2 height taps via sublane rolls, masked at per-sample boundaries
    # (replaces the old dsh shift matmuls; the mask reproduces SAME zero pad).
    nh2 = q.shape[0]
    rid = lax.broadcasted_iota(jnp.int32, q.shape, 0) % h2
    zero = jnp.zeros_like(q)
    q_up = jnp.where(rid != 0, pltpu.roll(q, 1, 0), zero)          # row m -> q[m-1]
    q_dn = jnp.where(rid != h2 - 1, pltpu.roll(q, nh2 - 1, 0), zero)  # row m -> q[m+1]

    out = jnp.dot(q_up, w2_ref[0], precision=hi, preferred_element_type=f32)
    out = out + jnp.dot(q, w2_ref[1], precision=hi, preferred_element_type=f32)
    out = out + jnp.dot(q_dn, w2_ref[2], precision=hi, preferred_element_type=f32)
    o_ref[...] = jnp.maximum(out + b2_ref[...], 0.0)             # (N*H2, W2*C2)


# ----------------------------------------------------------------------------
# One-shot constant preparation (numpy, runs ONCE per model, outside jit)
# ----------------------------------------------------------------------------
def prepare_net1_constants(params, input_shape):
    N, Cin, H, W = input_shape
    assert H % 2 == 0 and W % 2 == 0, (H, W)
    C1 = int(params["conv1_w"].shape[0])
    C2 = int(params["conv2_w"].shape[0])
    H2, W2 = H // 2, W // 2

    # conv1 banded weights with eval-mode BatchNorm scale folded in.
    # TODO(synk): BatchNorm is folded in eval mode (running stats); training-
    #             mode batch statistics are not reproduced here.
    bn_s = np.asarray(params["bn_gamma"], np.float32) / np.sqrt(
        np.asarray(params["bn_var"], np.float32) + 1e-5)
    w1 = np.asarray(params["conv1_w"], np.float32) * bn_s[:, None, None, None]
    w1f = np.zeros((3, W * Cin, W * C1), np.float32)
    for dy in range(3):
        for dx in range(3):
            blk = w1[:, :, dy, dx].T                      # (Cin, C1)
            for xo in range(W):
                xi = xo + dx - 1
                if 0 <= xi < W:                           # width SAME zero-pad
                    w1f[dy, xi * Cin:(xi + 1) * Cin, xo * C1:(xo + 1) * C1] += blk
    w1f = w1f.reshape(3 * W * Cin, W * C1)

    shift1 = (np.asarray(params["bn_beta"], np.float32)
              + (np.asarray(params["conv1_b"], np.float32)
                 - np.asarray(params["bn_mean"], np.float32)) * bn_s)
    b1 = np.tile(shift1, W)[None, :]                      # (1, W*C1)

    # conv2 banded weights: rows indexed by the PRE-pool column block x_q;
    # only even x_q rows are populated, which implements the horizontal-pool
    # even-column selection for free.
    w2 = np.asarray(params["conv2_w"], np.float32)
    w2b = np.zeros((3, W * C1, W2 * C2), np.float32)
    for dy in range(3):
        for dx in range(3):
            blk = w2[:, :, dy, dx].T                      # (C1, C2)
            for xo in range(W2):
                xi = xo + dx - 1
                if 0 <= xi < W2:
                    xq = 2 * xi
                    w2b[dy, xq * C1:(xq + 1) * C1, xo * C2:(xo + 1) * C2] += blk
    b2 = np.tile(np.asarray(params["conv2_b"], np.float32), W2)[None, :]

    # Even-row selector for the vertical pool (global row 2r is always inside
    # the same sample as row 2r+1 because H is even).
    sre = np.zeros((N * H2, N * H), np.float32)
    sre[np.arange(N * H2), 2 * np.arange(N * H2)] = 1.0

    return {
        "w1f": jnp.asarray(w1f),
        "b1": jnp.asarray(b1),
        "sre": jnp.asarray(sre),
        "w2b": jnp.asarray(w2b),
        "b2": jnp.asarray(b2),
    }


# ----------------------------------------------------------------------------
# Forward (jitted): pad/stack -> single pallas_call -> transpose
# ----------------------------------------------------------------------------
def net1_forward(consts, x_nchw):
    N, Cin, H, W = x_nchw.shape
    H2, W2 = H // 2, W // 2
    C1 = consts["w1f"].shape[1] // W
    C2 = consts["b2"].shape[1] // W2

    x = jnp.transpose(x_nchw, (0, 2, 3, 1)).astype(jnp.float32)   # NHWC
    # Per-sample height SAME padding; the three dy taps are lane-concatenated
    # so conv1 is a single K = 3*W*Cin matmul in the kernel.
    xp = jnp.pad(x, ((0, 0), (1, 1), (0, 0), (0, 0)))
    xs = jnp.stack([xp[:, 0:H], xp[:, 1:H + 1], xp[:, 2:H + 2]], axis=2)
    xs = xs.reshape(N * H, 3 * W * Cin)

    kernel = functools.partial(_net1_kernel, h2=H2, c1=C1)
    vmem = pl.BlockSpec(memory_space=pltpu.MemorySpace.VMEM)

    o2d = pl.pallas_call(
        kernel,
        out_shape=jax.ShapeDtypeStruct((N * H2, W2 * C2), jnp.float32),
        in_specs=[vmem] * 6,
        out_specs=vmem,
    )(xs, consts["w1f"], consts["b1"], consts["sre"], consts["w2b"], consts["b2"])

    return jnp.transpose(o2d.reshape(N, H2, W2, C2), (0, 3, 1, 2))  # NCHW


# ----------------------------------------------------------------------------
# Pure-JAX reference (lax conv / reduce_window) for correctness check
# ----------------------------------------------------------------------------
def reference_forward(params, x_nchw):
    dn = ("NCHW", "OIHW", "NCHW")
    hi = jax.lax.Precision.HIGHEST
    y = lax.conv_general_dilated(x_nchw, params["conv1_w"], (1, 1), "SAME",
                                 dimension_numbers=dn, precision=hi)
    y = y + params["conv1_b"][None, :, None, None]
    s = params["bn_gamma"] / jnp.sqrt(params["bn_var"] + 1e-5)
    y = (y - params["bn_mean"][None, :, None, None]) * s[None, :, None, None] \
        + params["bn_beta"][None, :, None, None]
    y = jnp.maximum(y, 0.0)
    y = lax.reduce_window(y, -jnp.inf, lax.max, (1, 1, 2, 2), (1, 1, 2, 2), "VALID")
    y = lax.conv_general_dilated(y, params["conv2_w"], (1, 1), "SAME",
                                 dimension_numbers=dn, precision=hi)
    y = y + params["conv2_b"][None, :, None, None]
    return jnp.maximum(y, 0.0)


# ----------------------------------------------------------------------------
# Main
# ----------------------------------------------------------------------------
if __name__ == "__main__":
    key = jax.random.PRNGKey(0)
    ks = jax.random.split(key, 9)

    N, Cin, H, W = 2, 4, 16, 16
    C1, C2 = 8, 16

    params = {
        "conv1_w": 0.1 * jax.random.normal(ks[0], (C1, Cin, 3, 3), jnp.float32),
        "conv1_b": 0.05 * jax.random.normal(ks[1], (C1,), jnp.float32),
        "bn_gamma": 1.0 + 0.1 * jax.random.normal(ks[2], (C1,), jnp.float32),
        "bn_beta": 0.05 * jax.random.normal(ks[3], (C1,), jnp.float32),
        "bn_mean": 0.05 * jax.random.normal(ks[4], (C1,), jnp.float32),
        "bn_var": 0.5 + jax.random.uniform(ks[5], (C1,), jnp.float32),
        "conv2_w": 0.1 * jax.random.normal(ks[6], (C2, C1, 3, 3), jnp.float32),
        "conv2_b": 0.05 * jax.random.normal(ks[7], (C2,), jnp.float32),
    }

    x = jax.random.normal(ks[8], (N, Cin, H, W), jnp.float32)

    # Constants are built once per model, outside the per-call jit path.
    consts = prepare_net1_constants(params, (N, Cin, H, W))

    fwd = jax.jit(net1_forward)
    out = jax.block_until_ready(fwd(consts, x))
    ref = jax.block_until_ready(reference_forward(params, x))

    assert out.shape == (N, C2, H // 2, W // 2), out.shape
    np.testing.assert_allclose(np.asarray(out), np.asarray(ref), rtol=1e-4, atol=1e-4)

    print("KERNEL_OK")
</pallas_src>

<mosaic_0001>
module attributes {stable_mosaic.version = 11 : i64} {
  func.func @_net1_kernel(%arg0: memref<32x192xf32, #tpu.memory_space<vmem>>, %arg1: memref<192x128xf32, #tpu.memory_space<vmem>>, %arg2: memref<1x128xf32, #tpu.memory_space<vmem>>, %arg3: memref<16x32xf32, #tpu.memory_space<vmem>>, %arg4: memref<3x128x128xf32, #tpu.memory_space<vmem>>, %arg5: memref<1x128xf32, #tpu.memory_space<vmem>>, %arg6: memref<16x128xf32, #tpu.memory_space<vmem>>) attributes {dimension_semantics = [], scalar_prefetch = 0 : i64, scratch_operands = 0 : i64, tpu.core_type = #tpu.core_type<tc>} {
    %c0 = arith.constant 0 : index
    %c0_0 = arith.constant 0 : index
    %0 = vector.load %arg0[%c0, %c0_0] : memref<32x192xf32, #tpu.memory_space<vmem>>, vector<32x192xf32>
    %c0_1 = arith.constant 0 : index
    %c0_2 = arith.constant 0 : index
    %1 = vector.load %arg1[%c0_1, %c0_2] : memref<192x128xf32, #tpu.memory_space<vmem>>, vector<192x128xf32>
    %cst = arith.constant dense<0.000000e+00> : vector<32x128xf32>
    %2 = tpu.matmul %0, %1, %cst {dimension_numbers = #tpu.dot_dimension_numbers<[1], [0], [0], [1], [0, 0, 1, 1], [], []>, precision = #tpu.contract_precision<fp32>} : vector<32x192xf32>, vector<192x128xf32>, vector<32x128xf32> -> vector<32x128xf32>
    %c0_3 = arith.constant 0 : index
    %c0_4 = arith.constant 0 : index
    %3 = vector.load %arg2[%c0_3, %c0_4] : memref<1x128xf32, #tpu.memory_space<vmem>>, vector<1x128xf32>
    %4 = vector.broadcast %3 : vector<1x128xf32> to vector<32x128xf32>
    %5 = arith.addf %2, %4 : vector<32x128xf32>
    %cst_5 = arith.constant 0.000000e+00 : f32
    %6 = vector.broadcast %cst_5 : f32 to vector<32x128xf32>
    %7 = arith.maximumf %5, %6 : vector<32x128xf32>
    %c31_i32 = arith.constant 31 : i32
    %8 = tpu.dynamic_rotate %7 by %c31_i32 dim 0 : vector<32x128xf32>, i32 -> vector<32x128xf32>
    %9 = arith.maximumf %7, %8 : vector<32x128xf32>
    %c0_6 = arith.constant 0 : index
    %c0_7 = arith.constant 0 : index
    %10 = vector.load %arg3[%c0_6, %c0_7] : memref<16x32xf32, #tpu.memory_space<vmem>>, vector<16x32xf32>
    %cst_8 = arith.constant dense<0.000000e+00> : vector<16x128xf32>
    %11 = tpu.matmul %10, %9, %cst_8 {dimension_numbers = #tpu.dot_dimension_numbers<[1], [0], [0], [1], [0, 0, 1, 1], [], []>, precision = #tpu.contract_precision<fp32>} : vector<16x32xf32>, vector<32x128xf32>, vector<16x128xf32> -> vector<16x128xf32>
    %c120_i32 = arith.constant 120 : i32
    %12 = tpu.dynamic_rotate %11 by %c120_i32 dim 1 : vector<16x128xf32>, i32 -> vector<16x128xf32>
    %13 = arith.maximumf %11, %12 : vector<16x128xf32>
    %14 = tpu.iota {dimensions = array<i32: 0>} : vector<16x128xi32>
    %c8_i32 = arith.constant 8 : i32
    %c0_i32 = arith.constant 0 : i32
    %15 = arith.cmpi eq, %c8_i32, %c0_i32 : i32
    %c1_i32 = arith.constant 1 : i32
    %16 = arith.select %15, %c1_i32, %c8_i32 : i32
    %17 = vector.broadcast %16 : i32 to vector<16x128xi32>
    %18 = arith.remsi %14, %17 : vector<16x128xi32>
    %c0_i32_9 = arith.constant 0 : i32
    %19 = vector.broadcast %c0_i32_9 : i32 to vector<16x128xi32>
    %20 = arith.cmpi ne, %18, %19 : vector<16x128xi32>
    %c0_i32_10 = arith.constant 0 : i32
    %21 = vector.broadcast %c0_i32_10 : i32 to vector<16x128xi32>
    %22 = arith.cmpi slt, %18, %21 : vector<16x128xi32>
    %c0_i32_11 = arith.constant 0 : i32
    %23 = arith.cmpi slt, %16, %c0_i32_11 : i32
    %24 = vector.broadcast %23 : i1 to vector<16x128xi1>
    %25 = vector.broadcast %24 : vector<16x128xi1> to vector<16x128xi1>
    %26 = arith.xori %22, %25 : vector<16x128xi1>
    %27 = arith.andi %26, %20 : vector<16x128xi1>
    %28 = vector.broadcast %16 : i32 to vector<16x128xi32>
    %29 = arith.addi %18, %28 : vector<16x128xi32>
    %30 = arith.select %27, %29, %18 : vector<16x128xi1>, vector<16x128xi32>
    %cst_12 = arith.constant 0.000000e+00 : f32
    %31 = vector.broadcast %cst_12 : f32 to vector<16x128xf32>
    %c0_i32_13 = arith.constant 0 : i32
    %32 = vector.broadcast %c0_i32_13 : i32 to vector<16x128xi32>
    %33 = arith.cmpi ne, %30, %32 : vector<16x128xi32>
    %c1_i32_14 = arith.constant 1 : i32
    %34 = tpu.dynamic_rotate %13 by %c1_i32_14 dim 0 : vector<16x128xf32>, i32 -> vector<16x128xf32>
    %35 = arith.select %33, %34, %31 : vector<16x128xi1>, vector<16x128xf32>
    %c7_i32 = arith.constant 7 : i32
    %36 = vector.broadcast %c7_i32 : i32 to vector<16x128xi32>
    %37 = arith.cmpi ne, %30, %36 : vector<16x128xi32>
    %c15_i32 = arith.constant 15 : i32
    %38 = tpu.dynamic_rotate %13 by %c15_i32 dim 0 : vector<16x128xf32>, i32 -> vector<16x128xf32>
    %39 = arith.select %37, %38, %31 : vector<16x128xi1>, vector<16x128xf32>
    %c0_15 = arith.constant 0 : index
    %c0_16 = arith.constant 0 : index
    %c0_17 = arith.constant 0 : index
    %40 = vector.load %arg4[%c0_15, %c0_16, %c0_17] : memref<3x128x128xf32, #tpu.memory_space<vmem>>, vector<1x128x128xf32>
    %41 = vector.shape_cast %40 : vector<1x128x128xf32> to vector<128x128xf32>
    %cst_18 = arith.constant dense<0.000000e+00> : vector<16x128xf32>
    %42 = tpu.matmul %35, %41, %cst_18 {dimension_numbers = #tpu.dot_dimension_numbers<[1], [0], [0], [1], [0, 0, 1, 1], [], []>, precision = #tpu.contract_precision<fp32>} : vector<16x128xf32>, vector<128x128xf32>, vector<16x128xf32> -> vector<16x128xf32>
    %c1 = arith.constant 1 : index
    %c0_19 = arith.constant 0 : index
    %c0_20 = arith.constant 0 : index
    %43 = vector.load %arg4[%c1, %c0_19, %c0_20] : memref<3x128x128xf32, #tpu.memory_space<vmem>>, vector<1x128x128xf32>
    %44 = vector.shape_cast %43 : vector<1x128x128xf32> to vector<128x128xf32>
    %cst_21 = arith.constant dense<0.000000e+00> : vector<16x128xf32>
    %45 = tpu.matmul %13, %44, %cst_21 {dimension_numbers = #tpu.dot_dimension_numbers<[1], [0], [0], [1], [0, 0, 1, 1], [], []>, precision = #tpu.contract_precision<fp32>} : vector<16x128xf32>, vector<128x128xf32>, vector<16x128xf32> -> vector<16x128xf32>
    %46 = arith.addf %42, %45 : vector<16x128xf32>
    %c2 = arith.constant 2 : index
    %c0_22 = arith.constant 0 : index
    %c0_23 = arith.constant 0 : index
    %47 = vector.load %arg4[%c2, %c0_22, %c0_23] : memref<3x128x128xf32, #tpu.memory_space<vmem>>, vector<1x128x128xf32>
    %48 = vector.shape_cast %47 : vector<1x128x128xf32> to vector<128x128xf32>
    %cst_24 = arith.constant dense<0.000000e+00> : vector<16x128xf32>
    %49 = tpu.matmul %39, %48, %cst_24 {dimension_numbers = #tpu.dot_dimension_numbers<[1], [0], [0], [1], [0, 0, 1, 1], [], []>, precision = #tpu.contract_precision<fp32>} : vector<16x128xf32>, vector<128x128xf32>, vector<16x128xf32> -> vector<16x128xf32>
    %50 = arith.addf %46, %49 : vector<16x128xf32>
    %c0_25 = arith.constant 0 : index
    %c0_26 = arith.constant 0 : index
    %51 = vector.load %arg5[%c0_25, %c0_26] : memref<1x128xf32, #tpu.memory_space<vmem>>, vector<1x128xf32>
    %52 = vector.broadcast %51 : vector<1x128xf32> to vector<16x128xf32>
    %53 = arith.addf %50, %52 : vector<16x128xf32>
    %cst_27 = arith.constant 0.000000e+00 : f32
    %54 = vector.broadcast %cst_27 : f32 to vector<16x128xf32>
    %55 = arith.maximumf %53, %54 : vector<16x128xf32>
    %c0_28 = arith.constant 0 : index
    %c0_29 = arith.constant 0 : index
    %56 = vector.load %arg6[%c0_28, %c0_29] : memref<16x128xf32, #tpu.memory_space<vmem>>, vector<16x128xf32>
    tpu.vector_store %arg6[%c0_28, %c0_29], %55 {strides = array<i32>} : memref<16x128xf32, #tpu.memory_space<vmem>>, vector<16x128xf32>,
    return
  }
}

</mosaic_0001>

<llo_original>
// kernel: net1_forward.1
$region0: #{net1_forward.1}
  #allocation0 [shape = 'u32[]', space=smem, size = 0x4, offset = 0x4, fixed_abs, tag = 'smem constant byte address 0x4 - core index']
  #allocation1 [shape = 'u32[144,128]{1,0:T(1,128)}', space=vmem, size = 0x12000, scoped, tag = 'internal scratch']
  %s0 = inlined_call_operand.vmem [shape: f32[32,192], index: 0, kind: input, shape index: {}]
  %s1 = inlined_call_operand.vmem [shape: f32[192,128], index: 1, kind: input, shape index: {}]
  %s2 = inlined_call_operand.vmem [shape: f32[1,128], index: 2, kind: input, shape index: {}]
  %s3 = inlined_call_operand.vmem [shape: f32[16,32], index: 3, kind: input, shape index: {}]
  %s4 = inlined_call_operand.vmem [shape: f32[3,128,128], index: 4, kind: input, shape index: {}]
  %s5 = inlined_call_operand.vmem [shape: f32[1,128], index: 5, kind: input, shape index: {}]
  %s6 = inlined_call_operand.vmem [shape: f32[16,128], index: 6, kind: output, shape index: {}]
  %s7 = sld [smem:[#allocation0]]
  $region34: #{net1_forward.1} parent=0
    _
  %s9 = ssub.s32 1, %s7
  %s10 = scalar_select 0, %s9, %s7
  // Predicated region
  $region2: #{net1_forward.1} parent=0 // pred_check
    _
  $region3: #{net1_forward.1} parent=0 // pred_check_branch
    %12 = sbr.rel (0) target = $region5
  $region4: #{net1_forward.1} parent=0 // pred_region
    _
  $region5: #{net1_forward.1} parent=0 // pred_fallthru
    _
  // Predicated region
  $region6: #{net1_forward.1} parent=0 // pred_check
    _
  $region7: #{net1_forward.1} parent=0 // pred_check_branch
    %14 = sbr.rel (0) target = $region9
  $region8: #{net1_forward.1} parent=0 // pred_region
    _
  $region9: #{net1_forward.1} parent=0 // pred_fallthru
    _
  // Predicated region
  $region10: #{net1_forward.1} parent=0 // pred_check
    _
  $region11: #{net1_forward.1} parent=0 // pred_check_branch
    %16 = sbr.rel (0) target = $region13
  $region12: #{net1_forward.1} parent=0 // pred_region
    _
  $region13: #{net1_forward.1} parent=0 // pred_fallthru
    _
  // Predicated region
  $region14: #{net1_forward.1} parent=0 // pred_check
    _
  $region15: #{net1_forward.1} parent=0 // pred_check_branch
    %18 = sbr.rel (0) target = $region17
  $region16: #{net1_forward.1} parent=0 // pred_region
    _
  $region17: #{net1_forward.1} parent=0 // pred_fallthru
    _
  // Predicated region
  $region18: #{net1_forward.1} parent=0 // pred_check
    _
  $region19: #{net1_forward.1} parent=0 // pred_check_branch
    %20 = sbr.rel (0) target = $region21
  $region20: #{net1_forward.1} parent=0 // pred_region
    _
  $region21: #{net1_forward.1} parent=0 // pred_fallthru
    _
  // Predicated region
  $region22: #{net1_forward.1} parent=0 // pred_check
    _
  $region23: #{net1_forward.1} parent=0 // pred_check_branch
    %22 = sbr.rel (0) target = $region25
  $region24: #{net1_forward.1} parent=0 // pred_region
    _
  $region25: #{net1_forward.1} parent=0 // pred_fallthru
    _
  %v23 = vld [vmem:[%s0] sm:$0xff]
  %v24 = vld [vmem:[%s0 + $0x8] sm:$0xff]
  %v25 = vld [vmem:[%s0 + $0x10] sm:$0xff]
  %v26 = vld [vmem:[%s0 + $0x18] sm:$0xff]
  %v27 = vld [vmem:[%s0 + $0x20] sm:$0xff]
  %v28 = vld [vmem:[%s0 + $0x28] sm:$0xff]
  %v29 = vld [vmem:[%s0 + $0x30] sm:$0xff]
  %v30 = vld [vmem:[%s0 + $0x38] sm:$0xff]
  %v31 = vld [vmem:[%s1] sm:$0xff]
  %v32 = vld [vmem:[%s1 + $0x8] sm:$0xff]
  %v33 = vld [vmem:[%s1 + $0x10] sm:$0xff]
  %v34 = vld [vmem:[%s1 + $0x18] sm:$0xff]
  %v35 = vld [vmem:[%s1 + $0x20] sm:$0xff]
  %v36 = vld [vmem:[%s1 + $0x28] sm:$0xff]
  %v37 = vld [vmem:[%s1 + $0x30] sm:$0xff]
  %v38 = vld [vmem:[%s1 + $0x38] sm:$0xff]
  %v39 = vld [vmem:[%s1 + $0x40] sm:$0xff]
  %v40 = vld [vmem:[%s1 + $0x48] sm:$0xff]
  %v41 = vld [vmem:[%s1 + $0x50] sm:$0xff]
  %v42 = vld [vmem:[%s1 + $0x58] sm:$0xff]
  %v43 = vld [vmem:[%s1 + $0x60] sm:$0xff]
  %v44 = vld [vmem:[%s1 + $0x68] sm:$0xff]
  %v45 = vld [vmem:[%s1 + $0x70] sm:$0xff]
  %v46 = vld [vmem:[%s1 + $0x78] sm:$0xff]
  %v47 = vld [vmem:[%s1 + $0x80] sm:$0xff]
  %v48 = vld [vmem:[%s1 + $0x88] sm:$0xff]
  %v49 = vld [vmem:[%s1 + $0x90] sm:$0xff]
  %v50 = vld [vmem:[%s1 + $0x98] sm:$0xff]
  %v51 = vld [vmem:[%s1 + $0xa0] sm:$0xff]
  %v52 = vld [vmem:[%s1 + $0xa8] sm:$0xff]
  %v53 = vld [vmem:[%s1 + $0xb0] sm:$0xff]
  %v54 = vld [vmem:[%s1 + $0xb8] sm:$0xff]
  %v55 = vld [vmem:[%s2] sm:$0x1]
  %v57 = vlaneseq
  %v58 = vshrl.u32 %v57, 7
  %v59 = vsub.s32 0, %v58
  %v60 = vrot.slane %v55, %v59
  %vm62 = vcmask 523264
  %v64 = vsel %vm62, %v24, 0
  %v67 = vsel %vm62, %v26, 0
  %v70 = vsel %vm62, %v28, 0
  %v73 = vsel %vm62, %v30, 0
  %75 = vmatprep.subr.mxu0 0.0
  %v76 = vand.u32 %v46, 4294901760
  %77 = vmatpush1.msra.mxu0 %v76
  %78 = vmatprep.subr.mxu0 0.0
  %v79 = vand.u32 %v45, 4294901760
  %80 = vmatpush1.msra.mxu0 %v79
  %81 = vmatprep.subr.mxu0 0.0
  %v82 = vand.u32 %v44, 4294901760
  %83 = vmatpush1.msra.mxu0 %v82
  %84 = vmatprep.subr.mxu0 0.0
  %v85 = vand.u32 %v43, 4294901760
  %86 = vmatpush1.msra.mxu0 %v85
  %87 = vmatprep.subr.mxu0 0.0
  %v88 = vand.u32 %v42, 4294901760
  %89 = vmatpush1.msra.mxu0 %v88
  %90 = vmatprep.subr.mxu0 0.0
  %v91 = vand.u32 %v41, 4294901760
  %92 = vmatpush1.msra.mxu0 %v91
  %93 = vmatprep.subr.mxu0 0.0
  %v94 = vand.u32 %v40, 4294901760
  %95 = vmatpush1.msra.mxu0 %v94
  %96 = vmatprep.subr.mxu0 0.0
  %v97 = vand.u32 %v39, 4294901760
  %98 = vmatpush1.msra.mxu0 %v97
  %99 = vmatprep.subr.mxu0 0.0
  %v100 = vand.u32 %v38, 4294901760
  %101 = vmatpush1.msra.mxu0 %v100
  %102 = vmatprep.subr.mxu0 0.0
  %v103 = vand.u32 %v37, 4294901760
  %104 = vmatpush1.msra.mxu0 %v103
  %105 = vmatprep.subr.mxu0 0.0
  %v106 = vand.u32 %v36, 4294901760
  %107 = vmatpush1.msra.mxu0 %v106
  %108 = vmatprep.subr.mxu0 0.0
  %v109 = vand.u32 %v35, 4294901760
  %110 = vmatpush1.msra.mxu0 %v109
  %111 = vmatprep.subr.mxu0 0.0
  %v112 = vand.u32 %v34, 4294901760
  %113 = vmatpush1.msra.mxu0 %v112
  %114 = vmatprep.subr.mxu0 0.0
  %v115 = vand.u32 %v33, 4294901760
  %116 = vmatpush1.msra.mxu0 %v115
  %117 = vmatprep.subr.mxu0 0.0
  %v118 = vand.u32 %v32, 4294901760
  %119 = vmatpush1.msra.mxu0 %v118
  %120 = vmatprep.subr.mxu0 0.0
  %v121 = vand.u32 %v31, 4294901760
  %122 = vmatpush1.msra.mxu0 %v121
  %123 = vmatprep.subr.mxu0 0.0
  %124 = vmatpush2.msra.mxu0 0.0
  %125 = vmatprep.subr.mxu0 0.0
  %126 = vmatpush2.msra.mxu0 0.0
  %127 = vmatprep.subr.mxu0 0.0
  %128 = vmatpush2.msra.mxu0 0.0
  %129 = vmatprep.subr.mxu0 0.0
  %130 = vmatpush2.msra.mxu0 0.0
  %131 = vmatprep.subr.mxu0 0.0
  %132 = vmatpush2.msra.mxu0 0.0
  %133 = vmatprep.subr.mxu0 0.0
  %134 = vmatpush2.msra.mxu0 0.0
  %135 = vmatprep.subr.mxu0 0.0
  %136 = vmatpush2.msra.mxu0 0.0
  %137 = vmatprep.subr.mxu0 0.0
  %138 = vmatpush2.msra.mxu0 0.0
  %139 = vmatprep.subr.mxu0 0.0
  %v140 = vand.u32 %v54, 4294901760
  %141 = vmatpush2.msra.mxu0 %v140
  %142 = vmatprep.subr.mxu0 0.0
  %v143 = vand.u32 %v53, 4294901760
  %144 = vmatpush2.msra.mxu0 %v143
  %145 = vmatprep.subr.mxu0 0.0
  %v146 = vand.u32 %v52, 4294901760
  %147 = vmatpush2.msra.mxu0 %v146
  %148 = vmatprep.subr.mxu0 0.0
  %v149 = vand.u32 %v51, 4294901760
  %150 = vmatpush2.msra.mxu0 %v149
  %151 = vmatprep.subr.mxu0 0.0
  %v152 = vand.u32 %v50, 4294901760
  %153 = vmatpush2.msra.mxu0 %v152
  %154 = vmatprep.subr.mxu0 0.0
  %v155 = vand.u32 %v49, 4294901760
  %156 = vmatpush2.msra.mxu0 %v155
  %157 = vmatprep.subr.mxu0 0.0
  %v158 = vand.u32 %v48, 4294901760
  %159 = vmatpush2.msra.mxu0 %v158
  %160 = vmatprep.subr.mxu0 0.0
  %v161 = vand.u32 %v47, 4294901760
  %162 = vmatpush2.msra.mxu0 %v161
  %v163 = vand.u32 %v64, 4294901760
  %v164 = vsub.f32 %v64, %v163
  %v165 = vand.u32 %v164, 4294901760
  %v166 = vsub.f32 %v164, %v165
  %v167 = vand.u32 %v166, 4294901760
  %168 = vmatprep.mubr.f32.mxu0 %v167
  %v169 = vand.u32 %v23, 4294901760
  %v170 = vsub.f32 %v23, %v169
  %v171 = vand.u32 %v170, 4294901760
  %v172 = vsub.f32 %v170, %v171
  %v173 = vand.u32 %v172, 4294901760
  %174 = vmatmul.mubr.f32.gmra.mxu0 %v173
  %v175 = vpop.f32.mrf.mxu0
  %v176 = vadd.f32 %v60, %v175
  %v177 = vpop.f32.mrf.mxu0
  %v178 = vand.u32 %v67, 4294901760
  %v179 = vsub.f32 %v67, %v178
  %v180 = vand.u32 %v179, 4294901760
  %v181 = vsub.f32 %v179, %v180
  %v182 = vand.u32 %v181, 4294901760
  %183 = vmatprep.mubr.f32.mxu0 %v182
  %v184 = vand.u32 %v25, 4294901760
  %v185 = vsub.f32 %v25, %v184
  %v186 = vand.u32 %v185, 4294901760
  %v187 = vsub.f32 %v185, %v186
  %v188 = vand.u32 %v187, 4294901760
  %189 = vmatmul.mubr.f32.gmra.mxu0 %v188
  %v190 = vpop.f32.mrf.mxu0
  %v191 = vadd.f32 %v60, %v190
  %v192 = vpop.f32.mrf.mxu0
  %v193 = vand.u32 %v70, 4294901760
  %v194 = vsub.f32 %v70, %v193
  %v195 = vand.u32 %v194, 4294901760
  %v196 = vsub.f32 %v194, %v195
  %v197 = vand.u32 %v196, 4294901760
  %198 = vmatprep.mubr.f32.mxu0 %v197
  %v199 = vand.u32 %v27, 4294901760
  %v200 = vsub.f32 %v27, %v199
  %v201 = vand.u32 %v200, 4294901760
  %v202 = vsub.f32 %v200, %v201
  %v203 = vand.u32 %v202, 4294901760
  %204 = vmatmul.mubr.f32.gmra.mxu0 %v203
  %v205 = vpop.f32.mrf.mxu0
  %v206 = vadd.f32 %v60, %v205
  %v207 = vpop.f32.mrf.mxu0
  %v208 = vand.u32 %v73, 4294901760
  %v209 = vsub.f32 %v73, %v208
  %v210 = vand.u32 %v209, 4294901760
  %v211 = vsub.f32 %v209, %v210
  %v212 = vand.u32 %v211, 4294901760
  %213 = vmatprep.mubr.f32.mxu0 %v212
  %v214 = vand.u32 %v29, 4294901760
  %v215 = vsub.f32 %v29, %v214
  %v216 = vand.u32 %v215, 4294901760
  %v217 = vsub.f32 %v215, %v216
  %v218 = vand.u32 %v217, 4294901760
  %219 = vmatmul.mubr.f32.gmra.mxu0 %v218
  %v220 = vpop.f32.mrf.mxu0
  %v221 = vadd.f32 %v60, %v220
  %v222 = vpop.f32.mrf.mxu0
  %223 = vdwg.mxu0
  %224 = vmatprep.subr.mxu0 0.0
  %v225 = vand.u32 %v46, 4294901760
  %v226 = vsub.f32 %v46, %v225
  %v227 = vand.u32 %v226, 4294901760
  %v228 = vsub.f32 %v226, %v227
  %v229 = vand.u32 %v228, 4294901760
  %230 = vmatpush1.msra.mxu0 %v229
  %231 = vmatprep.subr.mxu0 0.0
  %v232 = vand.u32 %v45, 4294901760
  %v233 = vsub.f32 %v45, %v232
  %v234 = vand.u32 %v233, 4294901760
  %v235 = vsub.f32 %v233, %v234
  %v236 = vand.u32 %v235, 4294901760
  %237 = vmatpush1.msra.mxu0 %v236
  %238 = vmatprep.subr.mxu0 0.0
  %v239 = vand.u32 %v44, 4294901760
  %v240 = vsub.f32 %v44, %v239
  %v241 = vand.u32 %v240, 4294901760
  %v242 = vsub.f32 %v240, %v241
  %v243 = vand.u32 %v242, 4294901760
  %244 = vmatpush1.msra.mxu0 %v243
  %245 = vmatprep.subr.mxu0 0.0
  %v246 = vand.u32 %v43, 4294901760
  %v247 = vsub.f32 %v43, %v246
  %v248 = vand.u32 %v247, 4294901760
  %v249 = vsub.f32 %v247, %v248
  %v250 = vand.u32 %v249, 4294901760
  %251 = vmatpush1.msra.mxu0 %v250
  %252 = vmatprep.subr.mxu0 0.0
  %v253 = vand.u32 %v42, 4294901760
  %v254 = vsub.f32 %v42, %v253
  %v255 = vand.u32 %v254, 4294901760
  %v256 = vsub.f32 %v254, %v255
  %v257 = vand.u32 %v256, 4294901760
  %258 = vmatpush1.msra.mxu0 %v257
  %259 = vmatprep.subr.mxu0 0.0
  %v260 = vand.u32 %v41, 4294901760
  %v261 = vsub.f32 %v41, %v260
  %v262 = vand.u32 %v261, 4294901760
  %v263 = vsub.f32 %v261, %v262
  %v264 = vand.u32 %v263, 4294901760
  %265 = vmatpush1.msra.mxu0 %v264
  %266 = vmatprep.subr.mxu0 0.0
  %v267 = vand.u32 %v40, 4294901760
  %v268 = vsub.f32 %v40, %v267
  %v269 = vand.u32 %v268, 4294901760
  %v270 = vsub.f32 %v268, %v269
  %v271 = vand.u32 %v270, 4294901760
  %272 = vmatpush1.msra.mxu0 %v271
  %273 = vmatprep.subr.mxu0 0.0
  %v274 = vand.u32 %v39, 4294901760
  %v275 = vsub.f32 %v39, %v274
  %v276 = vand.u32 %v275, 4294901760
  %v277 = vsub.f32 %v275, %v276
  %v278 = vand.u32 %v277, 4294901760
  %279 = vmatpush1.msra.mxu0 %v278
  %280 = vmatprep.subr.mxu0 0.0
  %v281 = vand.u32 %v38, 4294901760
  %v282 = vsub.f32 %v38, %v281
  %v283 = vand.u32 %v282, 4294901760
  %v284 = vsub.f32 %v282, %v283
  %v285 = vand.u32 %v284, 4294901760
  %286 = vmatpush1.msra.mxu0 %v285
  %287 = vmatprep.subr.mxu0 0.0
  %v288 = vand.u32 %v37, 4294901760
  %v289 = vsub.f32 %v37, %v288
  %v290 = vand.u32 %v289, 4294901760
  %v291 = vsub.f32 %v289, %v290
  %v292 = vand.u32 %v291, 4294901760
  %293 = vmatpush1.msra.mxu0 %v292
  %294 = vmatprep.subr.mxu0 0.0
  %v295 = vand.u32 %v36, 4294901760
  %v296 = vsub.f32 %v36, %v295
  %v297 = vand.u32 %v296, 4294901760
  %v298 = vsub.f32 %v296, %v297
  %v299 = vand.u32 %v298, 4294901760
  %300 = vmatpush1.msra.mxu0 %v299
  %301 = vmatprep.subr.mxu0 0.0
  %v302 = vand.u32 %v35, 4294901760
  %v303 = vsub.f32 %v35, %v302
  %v304 = vand.u32 %v303, 4294901760
  %v305 = vsub.f32 %v303, %v304
  %v306 = vand.u32 %v305, 4294901760
  %307 = vmatpush1.msra.mxu0 %v306
  %308 = vmatprep.subr.mxu0 0.0
  %v309 = vand.u32 %v34, 4294901760
  %v310 = vsub.f32 %v34, %v309
  %v311 = vand.u32 %v310, 4294901760
  %v312 = vsub.f32 %v310, %v311
  %v313 = vand.u32 %v312, 4294901760
  %314 = vmatpush1.msra.mxu0 %v313
  %315 = vmatprep.subr.mxu0 0.0
  %v316 = vand.u32 %v33, 4294901760
  %v317 = vsub.f32 %v33, %v316
  %v318 = vand.u32 %v317, 4294901760
  %v319 = vsub.f32 %v317, %v318
  %v320 = vand.u32 %v319, 4294901760
  %321 = vmatpush1.msra.mxu0 %v320
  %322 = vmatprep.subr.mxu0 0.0
  %v323 = vand.u32 %v32, 4294901760
  %v324 = vsub.f32 %v32, %v323
  %v325 = vand.u32 %v324, 4294901760
  %v326 = vsub.f32 %v324, %v325
  %v327 = vand.u32 %v326, 4294901760
  %328 = vmatpush1.msra.mxu0 %v327
  %329 = vmatprep.subr.mxu0 0.0
  %v330 = vand.u32 %v31, 4294901760
  %v331 = vsub.f32 %v31, %v330
  %v332 = vand.u32 %v331, 4294901760
  %v333 = vsub.f32 %v331, %v332
  %v334 = vand.u32 %v333, 4294901760
  %335 = vmatpush1.msra.mxu0 %v334
  %336 = vmatprep.subr.mxu0 0.0
  %337 = vmatpush2.msra.mxu0 0.0
  %338 = vmatprep.subr.mxu0 0.0
  %339 = vmatpush2.msra.mxu0 0.0
  %340 = vmatprep.subr.mxu0 0.0
  %341 = vmatpush2.msra.mxu0 0.0
  %342 = vmatprep.subr.mxu0 0.0
  %343 = vmatpush2.msra.mxu0 0.0
  %344 = vmatprep.subr.mxu0 0.0
  %345 = vmatpush2.msra.mxu0 0.0
  %346 = vmatprep.subr.mxu0 0.0
  %347 = vmatpush2.msra.mxu0 0.0
  %348 = vmatprep.subr.mxu0 0.0
  %349 = vmatpush2.msra.mxu0 0.0
  %350 = vmatprep.subr.mxu0 0.0
  %351 = vmatpush2.msra.mxu0 0.0
  %352 = vmatprep.subr.mxu0 0.0
  %v353 = vand.u32 %v54, 4294901760
  %v354 = vsub.f32 %v54, %v353
  %v355 = vand.u32 %v354, 4294901760
  %v356 = vsub.f32 %v354, %v355
  %v357 = vand.u32 %v356, 4294901760
  %358 = vmatpush2.msra.mxu0 %v357
  %359 = vmatprep.subr.mxu0 0.0
  %v360 = vand.u32 %v53, 4294901760
  %v361 = vsub.f32 %v53, %v360
  %v362 = vand.u32 %v361, 4294901760
  %v363 = vsub.f32 %v361, %v362
  %v364 = vand.u32 %v363, 4294901760
  %365 = vmatpush2.msra.mxu0 %v364
  %366 = vmatprep.subr.mxu0 0.0
  %v367 = vand.u32 %v52, 4294901760
  %v368 = vsub.f32 %v52, %v367
  %v369 = vand.u32 %v368, 4294901760
  %v370 = vsub.f32 %v368, %v369
  %v371 = vand.u32 %v370, 4294901760
  %372 = vmatpush2.msra.mxu0 %v371
  %373 = vmatprep.subr.mxu0 0.0
  %v374 = vand.u32 %v51, 4294901760
  %v375 = vsub.f32 %v51, %v374
  %v376 = vand.u32 %v375, 4294901760
  %v377 = vsub.f32 %v375, %v376
  %v378 = vand.u32 %v377, 4294901760
  %379 = vmatpush2.msra.mxu0 %v378
  %380 = vmatprep.subr.mxu0 0.0
  %v381 = vand.u32 %v50, 4294901760
  %v382 = vsub.f32 %v50, %v381
  %v383 = vand.u32 %v382, 4294901760
  %v384 = vsub.f32 %v382, %v383
  %v385 = vand.u32 %v384, 4294901760
  %386 = vmatpush2.msra.mxu0 %v385
  %387 = vmatprep.subr.mxu0 0.0
  %v388 = vand.u32 %v49, 4294901760
  %v389 = vsub.f32 %v49, %v388
  %v390 = vand.u32 %v389, 4294901760
  %v391 = vsub.f32 %v389, %v390
  %v392 = vand.u32 %v391, 4294901760
  %393 = vmatpush2.msra.mxu0 %v392
  %394 = vmatprep.subr.mxu0 0.0
  %v395 = vand.u32 %v48, 4294901760
  %v396 = vsub.f32 %v48, %v395
  %v397 = vand.u32 %v396, 4294901760
  %v398 = vsub.f32 %v396, %v397
  %v399 = vand.u32 %v398, 4294901760
  %400 = vmatpush2.msra.mxu0 %v399
  %401 = vmatprep.subr.mxu0 0.0
  %v402 = vand.u32 %v47, 4294901760
  %v403 = vsub.f32 %v47, %v402
  %v404 = vand.u32 %v403, 4294901760
  %v405 = vsub.f32 %v403, %v404
  %v406 = vand.u32 %v405, 4294901760
  %407 = vmatpush2.msra.mxu0 %v406
  %v408 = vand.u32 %v64, 4294901760
  %409 = vmatprep.mubr.f32.mxu0 %v408
  %v410 = vand.u32 %v23, 4294901760
  %411 = vmatmul.mubr.f32.gmra.mxu0 %v410
  %v412 = vpop.f32.mrf.mxu0
  %v413 = vadd.f32 %v176, %v412
  %v414 = vpop.f32.mrf.mxu0
  %v415 = vand.u32 %v67, 4294901760
  %416 = vmatprep.mubr.f32.mxu0 %v415
  %v417 = vand.u32 %v25, 4294901760
  %418 = vmatmul.mubr.f32.gmra.mxu0 %v417
  %v419 = vpop.f32.mrf.mxu0
  %v420 = vadd.f32 %v191, %v419
  %v421 = vpop.f32.mrf.mxu0
  %v422 = vand.u32 %v70, 4294901760
  %423 = vmatprep.mubr.f32.mxu0 %v422
  %v424 = vand.u32 %v27, 4294901760
  %425 = vmatmul.mubr.f32.gmra.mxu0 %v424
  %v426 = vpop.f32.mrf.mxu0
  %v427 = vadd.f32 %v206, %v426
  %v428 = vpop.f32.mrf.mxu0
  %v429 = vand.u32 %v73, 4294901760
  %430 = vmatprep.mubr.f32.mxu0 %v429
  %v431 = vand.u32 %v29, 4294901760
  %432 = vmatmul.mubr.f32.gmra.mxu0 %v431
  %v433 = vpop.f32.mrf.mxu0
  %v434 = vadd.f32 %v221, %v433
  %v435 = vpop.f32.mrf.mxu0
  %436 = vdwg.mxu0
  %437 = vmatprep.subr.mxu0 0.0
  %v438 = vand.u32 %v46, 4294901760
  %v439 = vsub.f32 %v46, %v438
  %440 = vmatpush1.msra.mxu0 %v439
  %441 = vmatprep.subr.mxu0 0.0
  %v442 = vand.u32 %v45, 4294901760
  %v443 = vsub.f32 %v45, %v442
  %444 = vmatpush1.msra.mxu0 %v443
  %445 = vmatprep.subr.mxu0 0.0
  %v446 = vand.u32 %v44, 4294901760
  %v447 = vsub.f32 %v44, %v446
  %448 = vmatpush1.msra.mxu0 %v447
  %449 = vmatprep.subr.mxu0 0.0
  %v450 = vand.u32 %v43, 4294901760
  %v451 = vsub.f32 %v43, %v450
  %452 = vmatpush1.msra.mxu0 %v451
  %453 = vmatprep.subr.mxu0 0.0
  %v454 = vand.u32 %v42, 4294901760
  %v455 = vsub.f32 %v42, %v454
  %456 = vmatpush1.msra.mxu0 %v455
  %457 = vmatprep.subr.mxu0 0.0
  %v458 = vand.u32 %v41, 4294901760
  %v459 = vsub.f32 %v41, %v458
  %460 = vmatpush1.msra.mxu0 %v459
  %461 = vmatprep.subr.mxu0 0.0
  %v462 = vand.u32 %v40, 4294901760
  %v463 = vsub.f32 %v40, %v462
  %464 = vmatpush1.msra.mxu0 %v463
  %465 = vmatprep.subr.mxu0 0.0
  %v466 = vand.u32 %v39, 4294901760
  %v467 = vsub.f32 %v39, %v466
  %468 = vmatpush1.msra.mxu0 %v467
  %469 = vmatprep.subr.mxu0 0.0
  %v470 = vand.u32 %v38, 4294901760
  %v471 = vsub.f32 %v38, %v470
  %472 = vmatpush1.msra.mxu0 %v471
  %473 = vmatprep.subr.mxu0 0.0
  %v474 = vand.u32 %v37, 4294901760
  %v475 = vsub.f32 %v37, %v474
  %476 = vmatpush1.msra.mxu0 %v475
  %477 = vmatprep.subr.mxu0 0.0
  %v478 = vand.u32 %v36, 4294901760
  %v479 = vsub.f32 %v36, %v478
  %480 = vmatpush1.msra.mxu0 %v479
  %481 = vmatprep.subr.mxu0 0.0
  %v482 = vand.u32 %v35, 4294901760
  %v483 = vsub.f32 %v35, %v482
  %484 = vmatpush1.msra.mxu0 %v483
  %485 = vmatprep.subr.mxu0 0.0
  %v486 = vand.u32 %v34, 4294901760
  %v487 = vsub.f32 %v34, %v486
  %488 = vmatpush1.msra.mxu0 %v487
  %489 = vmatprep.subr.mxu0 0.0
  %v490 = vand.u32 %v33, 4294901760
  %v491 = vsub.f32 %v33, %v490
  %492 = vmatpush1.msra.mxu0 %v491
  %493 = vmatprep.subr.mxu0 0.0
  %v494 = vand.u32 %v32, 4294901760
  %v495 = vsub.f32 %v32, %v494
  %496 = vmatpush1.msra.mxu0 %v495
  %497 = vmatprep.subr.mxu0 0.0
  %v498 = vand.u32 %v31, 4294901760
  %v499 = vsub.f32 %v31, %v498
  %500 = vmatpush1.msra.mxu0 %v499
  %501 = vmatprep.subr.mxu0 0.0
  %502 = vmatpush2.msra.mxu0 0.0
  %503 = vmatprep.subr.mxu0 0.0
  %504 = vmatpush2.msra.mxu0 0.0
  %505 = vmatprep.subr.mxu0 0.0
  %506 = vmatpush2.msra.mxu0 0.0
  %507 = vmatprep.subr.mxu0 0.0
  %508 = vmatpush2.msra.mxu0 0.0
  %509 = vmatprep.subr.mxu0 0.0
  %510 = vmatpush2.msra.mxu0 0.0
  %511 = vmatprep.subr.mxu0 0.0
  %512 = vmatpush2.msra.mxu0 0.0
  %513 = vmatprep.subr.mxu0 0.0
  %514 = vmatpush2.msra.mxu0 0.0
  %515 = vmatprep.subr.mxu0 0.0
  %516 = vmatpush2.msra.mxu0 0.0
  %517 = vmatprep.subr.mxu0 0.0
  %v518 = vand.u32 %v54, 4294901760
  %v519 = vsub.f32 %v54, %v518
  %520 = vmatpush2.msra.mxu0 %v519
  %521 = vmatprep.subr.mxu0 0.0
  %v522 = vand.u32 %v53, 4294901760
  %v523 = vsub.f32 %v53, %v522
  %524 = vmatpush2.msra.mxu0 %v523
  %525 = vmatprep.subr.mxu0 0.0
  %v526 = vand.u32 %v52, 4294901760
  %v527 = vsub.f32 %v52, %v526
  %528 = vmatpush2.msra.mxu0 %v527
  %529 = vmatprep.subr.mxu0 0.0
  %v530 = vand.u32 %v51, 4294901760
  %v531 = vsub.f32 %v51, %v530
  %532 = vmatpush2.msra.mxu0 %v531
  %533 = vmatprep.subr.mxu0 0.0
  %v534 = vand.u32 %v50, 4294901760
  %v535 = vsub.f32 %v50, %v534
  %536 = vmatpush2.msra.mxu0 %v535
  %537 = vmatprep.subr.mxu0 0.0
  %v538 = vand.u32 %v49, 4294901760
  %v539 = vsub.f32 %v49, %v538
  %540 = vmatpush2.msra.mxu0 %v539
  %541 = vmatprep.subr.mxu0 0.0
  %v542 = vand.u32 %v48, 4294901760
  %v543 = vsub.f32 %v48, %v542
  %544 = vmatpush2.msra.mxu0 %v543
  %545 = vmatprep.subr.mxu0 0.0
  %v546 = vand.u32 %v47, 4294901760
  %v547 = vsub.f32 %v47, %v546
  %548 = vmatpush2.msra.mxu0 %v547
  %v549 = vand.u32 %v64, 4294901760
  %v550 = vsub.f32 %v64, %v549
  %551 = vmatprep.mubr.f32.mxu0 %v550
  %v552 = vand.u32 %v23, 4294901760
  %v553 = vsub.f32 %v23, %v552
  %554 = vmatmul.mubr.f32.gmra.mxu0 %v553
  %v555 = vpop.f32.mrf.mxu0
  %v556 = vadd.f32 %v413, %v555
  %v557 = vpop.f32.mrf.mxu0
  %v558 = vand.u32 %v67, 4294901760
  %v559 = vsub.f32 %v67, %v558
  %560 = vmatprep.mubr.f32.mxu0 %v559
  %v561 = vand.u32 %v25, 4294901760
  %v562 = vsub.f32 %v25, %v561
  %563 = vmatmul.mubr.f32.gmra.mxu0 %v562
  %v564 = vpop.f32.mrf.mxu0
  %v565 = vadd.f32 %v420, %v564
  %v566 = vpop.f32.mrf.mxu0
  %v567 = vand.u32 %v70, 4294901760
  %v568 = vsub.f32 %v70, %v567
  %569 = vmatprep.mubr.f32.mxu0 %v568
  %v570 = vand.u32 %v27, 4294901760
  %v571 = vsub.f32 %v27, %v570
  %572 = vmatmul.mubr.f32.gmra.mxu0 %v571
  %v573 = vpop.f32.mrf.mxu0
  %v574 = vadd.f32 %v427, %v573
  %v575 = vpop.f32.mrf.mxu0
  %v576 = vand.u32 %v73, 4294901760
  %v577 = vsub.f32 %v73, %v576
  %578 = vmatprep.mubr.f32.mxu0 %v577
  %v579 = vand.u32 %v29, 4294901760
  %v580 = vsub.f32 %v29, %v579
  %581 = vmatmul.mubr.f32.gmra.mxu0 %v580
  %v582 = vpop.f32.mrf.mxu0
  %v583 = vadd.f32 %v434, %v582
  %v584 = vpop.f32.mrf.mxu0
  %585 = vdwg.mxu0
  %586 = vmatprep.subr.mxu0 0.0
  %v587 = vand.u32 %v46, 4294901760
  %588 = vmatpush1.msra.mxu0 %v587
  %589 = vmatprep.subr.mxu0 0.0
  %v590 = vand.u32 %v45, 4294901760
  %591 = vmatpush1.msra.mxu0 %v590
  %592 = vmatprep.subr.mxu0 0.0
  %v593 = vand.u32 %v44, 4294901760
  %594 = vmatpush1.msra.mxu0 %v593
  %595 = vmatprep.subr.mxu0 0.0
  %v596 = vand.u32 %v43, 4294901760
  %597 = vmatpush1.msra.mxu0 %v596
  %598 = vmatprep.subr.mxu0 0.0
  %v599 = vand.u32 %v42, 4294901760
  %600 = vmatpush1.msra.mxu0 %v599
  %601 = vmatprep.subr.mxu0 0.0
  %v602 = vand.u32 %v41, 4294901760
  %603 = vmatpush1.msra.mxu0 %v602
  %604 = vmatprep.subr.mxu0 0.0
  %v605 = vand.u32 %v40, 4294901760
  %606 = vmatpush1.msra.mxu0 %v605
  %607 = vmatprep.subr.mxu0 0.0
  %v608 = vand.u32 %v39, 4294901760
  %609 = vmatpush1.msra.mxu0 %v608
  %610 = vmatprep.subr.mxu0 0.0
  %v611 = vand.u32 %v38, 4294901760
  %612 = vmatpush1.msra.mxu0 %v611
  %613 = vmatprep.subr.mxu0 0.0
  %v614 = vand.u32 %v37, 4294901760
  %615 = vmatpush1.msra.mxu0 %v614
  %616 = vmatprep.subr.mxu0 0.0
  %v617 = vand.u32 %v36, 4294901760
  %618 = vmatpush1.msra.mxu0 %v617
  %619 = vmatprep.subr.mxu0 0.0
  %v620 = vand.u32 %v35, 4294901760
  %621 = vmatpush1.msra.mxu0 %v620
  %622 = vmatprep.subr.mxu0 0.0
  %v623 = vand.u32 %v34, 4294901760
  %624 = vmatpush1.msra.mxu0 %v623
  %625 = vmatprep.subr.mxu0 0.0
  %v626 = vand.u32 %v33, 4294901760
  %627 = vmatpush1.msra.mxu0 %v626
  %628 = vmatprep.subr.mxu0 0.0
  %v629 = vand.u32 %v32, 4294901760
  %630 = vmatpush1.msra.mxu0 %v629
  %631 = vmatprep.subr.mxu0 0.0
  %v632 = vand.u32 %v31, 4294901760
  %633 = vmatpush1.msra.mxu0 %v632
  %634 = vmatprep.subr.mxu0 0.0
  %635 = vmatpush2.msra.mxu0 0.0
  %636 = vmatprep.subr.mxu0 0.0
  %637 = vmatpush2.msra.mxu0 0.0
  %638 = vmatprep.subr.mxu0 0.0
  %639 = vmatpush2.msra.mxu0 0.0
  %640 = vmatprep.subr.mxu0 0.0
  %641 = vmatpush2.msra.mxu0 0.0
  %642 = vmatprep.subr.mxu0 0.0
  %643 = vmatpush2.msra.mxu0 0.0
  %644 = vmatprep.subr.mxu0 0.0
  %645 = vmatpush2.msra.mxu0 0.0
  %646 = vmatprep.subr.mxu0 0.0
  %647 = vmatpush2.msra.mxu0 0.0
  %648 = vmatprep.subr.mxu0 0.0
  %649 = vmatpush2.msra.mxu0 0.0
  %650 = vmatprep.subr.mxu0 0.0
  %v651 = vand.u32 %v54, 4294901760
  %652 = vmatpush2.msra.mxu0 %v651
  %653 = vmatprep.subr.mxu0 0.0
  %v654 = vand.u32 %v53, 4294901760
  %655 = vmatpush2.msra.mxu0 %v654
  %656 = vmatprep.subr.mxu0 0.0
  %v657 = vand.u32 %v52, 4294901760
  %658 = vmatpush2.msra.mxu0 %v657
  %659 = vmatprep.subr.mxu0 0.0
  %v660 = vand.u32 %v51, 4294901760
  %661 = vmatpush2.msra.mxu0 %v660
  %662 = vmatprep.subr.mxu0 0.0
  %v663 = vand.u32 %v50, 4294901760
  %664 = vmatpush2.msra.mxu0 %v663
  %665 = vmatprep.subr.mxu0 0.0
  %v666 = vand.u32 %v49, 4294901760
  %667 = vmatpush2.msra.mxu0 %v666
  %668 = vmatprep.subr.mxu0 0.0
  %v669 = vand.u32 %v48, 4294901760
  %670 = vmatpush2.msra.mxu0 %v669
  %671 = vmatprep.subr.mxu0 0.0
  %v672 = vand.u32 %v47, 4294901760
  %673 = vmatpush2.msra.mxu0 %v672
  %v674 = vand.u32 %v64, 4294901760
  %v675 = vsub.f32 %v64, %v674
  %v676 = vand.u32 %v675, 4294901760
  %677 = vmatprep.mubr.f32.mxu0 %v676
  %v678 = vand.u32 %v23, 4294901760
  %v679 = vsub.f32 %v23, %v678
  %v680 = vand.u32 %v679, 4294901760
  %681 = vmatmul.mubr.f32.gmra.mxu0 %v680
  %v682 = vpop.f32.mrf.mxu0
  %v683 = vadd.f32 %v556, %v682
  %v684 = vpop.f32.mrf.mxu0
  %v685 = vand.u32 %v67, 4294901760
  %v686 = vsub.f32 %v67, %v685
  %v687 = vand.u32 %v686, 4294901760
  %688 = vmatprep.mubr.f32.mxu0 %v687
  %v689 = vand.u32 %v25, 4294901760
  %v690 = vsub.f32 %v25, %v689
  %v691 = vand.u32 %v690, 4294901760
  %692 = vmatmul.mubr.f32.gmra.mxu0 %v691
  %v693 = vpop.f32.mrf.mxu0
  %v694 = vadd.f32 %v565, %v693
  %v695 = vpop.f32.mrf.mxu0
  %v696 = vand.u32 %v70, 4294901760
  %v697 = vsub.f32 %v70, %v696
  %v698 = vand.u32 %v697, 4294901760
  %699 = vmatprep.mubr.f32.mxu0 %v698
  %v700 = vand.u32 %v27, 4294901760
  %v701 = vsub.f32 %v27, %v700
  %v702 = vand.u32 %v701, 4294901760
  %703 = vmatmul.mubr.f32.gmra.mxu0 %v702
  %v704 = vpop.f32.mrf.mxu0
  %v705 = vadd.f32 %v574, %v704
  %v706 = vpop.f32.mrf.mxu0
  %v707 = vand.u32 %v73, 4294901760
  %v708 = vsub.f32 %v73, %v707
  %v709 = vand.u32 %v708, 4294901760
  %710 = vmatprep.mubr.f32.mxu0 %v709
  %v711 = vand.u32 %v29, 4294901760
  %v712 = vsub.f32 %v29, %v711
  %v713 = vand.u32 %v712, 4294901760
  %714 = vmatmul.mubr.f32.gmra.mxu0 %v713
  %v715 = vpop.f32.mrf.mxu0
  %v716 = vadd.f32 %v583, %v715
  %v717 = vpop.f32.mrf.mxu0
  %718 = vdwg.mxu0
  %719 = vmatprep.subr.mxu0 0.0
  %v720 = vand.u32 %v46, 4294901760
  %v721 = vsub.f32 %v46, %v720
  %v722 = vand.u32 %v721, 4294901760
  %723 = vmatpush1.msra.mxu0 %v722
  %724 = vmatprep.subr.mxu0 0.0
  %v725 = vand.u32 %v45, 4294901760
  %v726 = vsub.f32 %v45, %v725
  %v727 = vand.u32 %v726, 4294901760
  %728 = vmatpush1.msra.mxu0 %v727
  %729 = vmatprep.subr.mxu0 0.0
  %v730 = vand.u32 %v44, 4294901760
  %v731 = vsub.f32 %v44, %v730
  %v732 = vand.u32 %v731, 4294901760
  %733 = vmatpush1.msra.mxu0 %v732
  %734 = vmatprep.subr.mxu0 0.0
  %v735 = vand.u32 %v43, 4294901760
  %v736 = vsub.f32 %v43, %v735
  %v737 = vand.u32 %v736, 4294901760
  %738 = vmatpush1.msra.mxu0 %v737
  %739 = vmatprep.subr.mxu0 0.0
  %v740 = vand.u32 %v42, 4294901760
  %v741 = vsub.f32 %v42, %v740
  %v742 = vand.u32 %v741, 4294901760
  %743 = vmatpush1.msra.mxu0 %v742
  %744 = vmatprep.subr.mxu0 0.0
  %v745 = vand.u32 %v41, 4294901760
  %v746 = vsub.f32 %v41, %v745
  %v747 = vand.u32 %v746, 4294901760
  %748 = vmatpush1.msra.mxu0 %v747
  %749 = vmatprep.subr.mxu0 0.0
  %v750 = vand.u32 %v40, 4294901760
  %v751 = vsub.f32 %v40, %v750
  %v752 = vand.u32 %v751, 4294901760
  %753 = vmatpush1.msra.mxu0 %v752
  %754 = vmatprep.subr.mxu0 0.0
  %v755 = vand.u32 %v39, 4294901760
  %v756 = vsub.f32 %v39, %v755
  %v757 = vand.u32 %v756, 4294901760
  %758 = vmatpush1.msra.mxu0 %v757
  %759 = vmatprep.subr.mxu0 0.0
  %v760 = vand.u32 %v38, 4294901760
  %v761 = vsub.f32 %v38, %v760
  %v762 = vand.u32 %v761, 4294901760
  %763 = vmatpush1.msra.mxu0 %v762
  %764 = vmatprep.subr.mxu0 0.0
  %v765 = vand.u32 %v37, 4294901760
  %v766 = vsub.f32 %v37, %v765
  %v767 = vand.u32 %v766, 4294901760
  %768 = vmatpush1.msra.mxu0 %v767
  %769 = vmatprep.subr.mxu0 0.0
  %v770 = vand.u32 %v36, 4294901760
  %v771 = vsub.f32 %v36, %v770
  %v772 = vand.u32 %v771, 4294901760
  %773 = vmatpush1.msra.mxu0 %v772
  %774 = vmatprep.subr.mxu0 0.0
  %v775 = vand.u32 %v35, 4294901760
  %v776 = vsub.f32 %v35, %v775
  %v777 = vand.u32 %v776, 4294901760
  %778 = vmatpush1.msra.mxu0 %v777
  %779 = vmatprep.subr.mxu0 0.0
  %v780 = vand.u32 %v34, 4294901760
  %v781 = vsub.f32 %v34, %v780
  %v782 = vand.u32 %v781, 4294901760
  %783 = vmatpush1.msra.mxu0 %v782
  %784 = vmatprep.subr.mxu0 0.0
  %v785 = vand.u32 %v33, 4294901760
  %v786 = vsub.f32 %v33, %v785
  %v787 = vand.u32 %v786, 4294901760
  %788 = vmatpush1.msra.mxu0 %v787
  %789 = vmatprep.subr.mxu0 0.0
  %v790 = vand.u32 %v32, 4294901760
  %v791 = vsub.f32 %v32, %v790
  %v792 = vand.u32 %v791, 4294901760
  %793 = vmatpush1.msra.mxu0 %v792
  %794 = vmatprep.subr.mxu0 0.0
  %v795 = vand.u32 %v31, 4294901760
  %v796 = vsub.f32 %v31, %v795
  %v797 = vand.u32 %v796, 4294901760
  %798 = vmatpush1.msra.mxu0 %v797
  %799 = vmatprep.subr.mxu0 0.0
  %800 = vmatpush2.msra.mxu0 0.0
  %801 = vmatprep.subr.mxu0 0.0
  %802 = vmatpush2.msra.mxu0 0.0
  %803 = vmatprep.subr.mxu0 0.0
  %804 = vmatpush2.msra.mxu0 0.0
  %805 = vmatprep.subr.mxu0 0.0
  %806 = vmatpush2.msra.mxu0 0.0
  %807 = vmatprep.subr.mxu0 0.0
  %808 = vmatpush2.msra.mxu0 0.0
  %809 = vmatprep.subr.mxu0 0.0
  %810 = vmatpush2.msra.mxu0 0.0
  %811 = vmatprep.subr.mxu0 0.0
  %812 = vmatpush2.msra.mxu0 0.0
  %813 = vmatprep.subr.mxu0 0.0
  %814 = vmatpush2.msra.mxu0 0.0
  %815 = vmatprep.subr.mxu0 0.0
  %v816 = vand.u32 %v54, 4294901760
  %v817 = vsub.f32 %v54, %v816
  %v818 = vand.u32 %v817, 4294901760
  %819 = vmatpush2.msra.mxu0 %v818
  %820 = vmatprep.subr.mxu0 0.0
  %v821 = vand.u32 %v53, 4294901760
  %v822 = vsub.f32 %v53, %v821
  %v823 = vand.u32 %v822, 4294901760
  %824 = vmatpush2.msra.mxu0 %v823
  %825 = vmatprep.subr.mxu0 0.0
  %v826 = vand.u32 %v52, 4294901760
  %v827 = vsub.f32 %v52, %v826
  %v828 = vand.u32 %v827, 4294901760
  %829 = vmatpush2.msra.mxu0 %v828
  %830 = vmatprep.subr.mxu0 0.0
  %v831 = vand.u32 %v51, 4294901760
  %v832 = vsub.f32 %v51, %v831
  %v833 = vand.u32 %v832, 4294901760
  %834 = vmatpush2.msra.mxu0 %v833
  %835 = vmatprep.subr.mxu0 0.0
  %v836 = vand.u32 %v50, 4294901760
  %v837 = vsub.f32 %v50, %v836
  %v838 = vand.u32 %v837, 4294901760
  %839 = vmatpush2.msra.mxu0 %v838
  %840 = vmatprep.subr.mxu0 0.0
  %v841 = vand.u32 %v49, 4294901760
  %v842 = vsub.f32 %v49, %v841
  %v843 = vand.u32 %v842, 4294901760
  %844 = vmatpush2.msra.mxu0 %v843
  %845 = vmatprep.subr.mxu0 0.0
  %v846 = vand.u32 %v48, 4294901760
  %v847 = vsub.f32 %v48, %v846
  %v848 = vand.u32 %v847, 4294901760
  %849 = vmatpush2.msra.mxu0 %v848
  %850 = vmatprep.subr.mxu0 0.0
  %v851 = vand.u32 %v47, 4294901760
  %v852 = vsub.f32 %v47, %v851
  %v853 = vand.u32 %v852, 4294901760
  %854 = vmatpush2.msra.mxu0 %v853
  %v855 = vand.u32 %v64, 4294901760
  %856 = vmatprep.mubr.f32.mxu0 %v855
  %v857 = vand.u32 %v23, 4294901760
  %858 = vmatmul.mubr.f32.gmra.mxu0 %v857
  %v859 = vpop.f32.mrf.mxu0
  %v860 = vadd.f32 %v683, %v859
  %v861 = vpop.f32.mrf.mxu0
  %v862 = vand.u32 %v67, 4294901760
  %863 = vmatprep.mubr.f32.mxu0 %v862
  %v864 = vand.u32 %v25, 4294901760
  %865 = vmatmul.mubr.f32.gmra.mxu0 %v864
  %v866 = vpop.f32.mrf.mxu0
  %v867 = vadd.f32 %v694, %v866
  %v868 = vpop.f32.mrf.mxu0
  %v869 = vand.u32 %v70, 4294901760
  %870 = vmatprep.mubr.f32.mxu0 %v869
  %v871 = vand.u32 %v27, 4294901760
  %872 = vmatmul.mubr.f32.gmra.mxu0 %v871
  %v873 = vpop.f32.mrf.mxu0
  %v874 = vadd.f32 %v705, %v873
  %v875 = vpop.f32.mrf.mxu0
  %v876 = vand.u32 %v73, 4294901760
  %877 = vmatprep.mubr.f32.mxu0 %v876
  %v878 = vand.u32 %v29, 4294901760
  %879 = vmatmul.mubr.f32.gmra.mxu0 %v878
  %v880 = vpop.f32.mrf.mxu0
  %v881 = vadd.f32 %v716, %v880
  %v882 = vpop.f32.mrf.mxu0
  %883 = vdwg.mxu0
  %884 = vmatprep.subr.mxu0 0.0
  %v885 = vand.u32 %v46, 4294901760
  %886 = vmatpush1.msra.mxu0 %v885
  %887 = vmatprep.subr.mxu0 0.0
  %v888 = vand.u32 %v45, 4294901760
  %889 = vmatpush1.msra.mxu0 %v888
  %890 = vmatprep.subr.mxu0 0.0
  %v891 = vand.u32 %v44, 4294901760
  %892 = vmatpush1.msra.mxu0 %v891
  %893 = vmatprep.subr.mxu0 0.0
  %v894 = vand.u32 %v43, 4294901760
  %895 = vmatpush1.msra.mxu0 %v894
  %896 = vmatprep.subr.mxu0 0.0
  %v897 = vand.u32 %v42, 4294901760
  %898 = vmatpush1.msra.mxu0 %v897
  %899 = vmatprep.subr.mxu0 0.0
  %v900 = vand.u32 %v41, 4294901760
  %901 = vmatpush1.msra.mxu0 %v900
  %902 = vmatprep.subr.mxu0 0.0
  %v903 = vand.u32 %v40, 4294901760
  %904 = vmatpush1.msra.mxu0 %v903
  %905 = vmatprep.subr.mxu0 0.0
  %v906 = vand.u32 %v39, 4294901760
  %907 = vmatpush1.msra.mxu0 %v906
  %908 = vmatprep.subr.mxu0 0.0
  %v909 = vand.u32 %v38, 4294901760
  %910 = vmatpush1.msra.mxu0 %v909
  %911 = vmatprep.subr.mxu0 0.0
  %v912 = vand.u32 %v37, 4294901760
  %913 = vmatpush1.msra.mxu0 %v912
  %914 = vmatprep.subr.mxu0 0.0
  %v915 = vand.u32 %v36, 4294901760
  %916 = vmatpush1.msra.mxu0 %v915
  %917 = vmatprep.subr.mxu0 0.0
  %v918 = vand.u32 %v35, 4294901760
  %919 = vmatpush1.msra.mxu0 %v918
  %920 = vmatprep.subr.mxu0 0.0
  %v921 = vand.u32 %v34, 4294901760
  %922 = vmatpush1.msra.mxu0 %v921
  %923 = vmatprep.subr.mxu0 0.0
  %v924 = vand.u32 %v33, 4294901760
  %925 = vmatpush1.msra.mxu0 %v924
  %926 = vmatprep.subr.mxu0 0.0
  %v927 = vand.u32 %v32, 4294901760
  %928 = vmatpush1.msra.mxu0 %v927
  %929 = vmatprep.subr.mxu0 0.0
  %v930 = vand.u32 %v31, 4294901760
  %931 = vmatpush1.msra.mxu0 %v930
  %932 = vmatprep.subr.mxu0 0.0
  %933 = vmatpush2.msra.mxu0 0.0
  %934 = vmatprep.subr.mxu0 0.0
  %935 = vmatpush2.msra.mxu0 0.0
  %936 = vmatprep.subr.mxu0 0.0
  %937 = vmatpush2.msra.mxu0 0.0
  %938 = vmatprep.subr.mxu0 0.0
  %939 = vmatpush2.msra.mxu0 0.0
  %940 = vmatprep.subr.mxu0 0.0
  %941 = vmatpush2.msra.mxu0 0.0
  %942 = vmatprep.subr.mxu0 0.0
  %943 = vmatpush2.msra.mxu0 0.0
  %944 = vmatprep.subr.mxu0 0.0
  %945 = vmatpush2.msra.mxu0 0.0
  %946 = vmatprep.subr.mxu0 0.0
  %947 = vmatpush2.msra.mxu0 0.0
  %948 = vmatprep.subr.mxu0 0.0
  %v949 = vand.u32 %v54, 4294901760
  %950 = vmatpush2.msra.mxu0 %v949
  %951 = vmatprep.subr.mxu0 0.0
  %v952 = vand.u32 %v53, 4294901760
  %953 = vmatpush2.msra.mxu0 %v952
  %954 = vmatprep.subr.mxu0 0.0
  %v955 = vand.u32 %v52, 4294901760
  %956 = vmatpush2.msra.mxu0 %v955
  %957 = vmatprep.subr.mxu0 0.0
  %v958 = vand.u32 %v51, 4294901760
  %959 = vmatpush2.msra.mxu0 %v958
  %960 = vmatprep.subr.mxu0 0.0
  %v961 = vand.u32 %v50, 4294901760
  %962 = vmatpush2.msra.mxu0 %v961
  %963 = vmatprep.subr.mxu0 0.0
  %v964 = vand.u32 %v49, 4294901760
  %965 = vmatpush2.msra.mxu0 %v964
  %966 = vmatprep.subr.mxu0 0.0
  %v967 = vand.u32 %v48, 4294901760
  %968 = vmatpush2.msra.mxu0 %v967
  %969 = vmatprep.subr.mxu0 0.0
  %v970 = vand.u32 %v47, 4294901760
  %971 = vmatpush2.msra.mxu0 %v970
  %v972 = vand.u32 %v64, 4294901760
  %973 = vmatprep.mubr.f32.mxu0 %v972
  %v974 = vand.u32 %v23, 4294901760
  %975 = vmatmul.mubr.f32.gmra.mxu0 %v974
  %v976 = vpop.f32.mrf.mxu0
  %v977 = vadd.f32 %v860, %v976
  %v978 = vpop.f32.mrf.mxu0
  %v979 = vand.u32 %v67, 4294901760
  %980 = vmatprep.mubr.f32.mxu0 %v979
  %v981 = vand.u32 %v25, 4294901760
  %982 = vmatmul.mubr.f32.gmra.mxu0 %v981
  %v983 = vpop.f32.mrf.mxu0
  %v984 = vadd.f32 %v867, %v983
  %v985 = vpop.f32.mrf.mxu0
  %v986 = vand.u32 %v70, 4294901760
  %987 = vmatprep.mubr.f32.mxu0 %v986
  %v988 = vand.u32 %v27, 4294901760
  %989 = vmatmul.mubr.f32.gmra.mxu0 %v988
  %v990 = vpop.f32.mrf.mxu0
  %v991 = vadd.f32 %v874, %v990
  %v992 = vpop.f32.mrf.mxu0
  %v993 = vand.u32 %v73, 4294901760
  %994 = vmatprep.mubr.f32.mxu0 %v993
  %v995 = vand.u32 %v29, 4294901760
  %996 = vmatmul.mubr.f32.gmra.mxu0 %v995
  %v997 = vpop.f32.mrf.mxu0
  %v998 = vadd.f32 %v881, %v997
  %v999 = vpop.f32.mrf.mxu0
  %1000 = vdwg.mxu0
  %v1001 = vmax.f32 %v977, 0.0
  %v1002 = vmax.f32 %v984, 0.0
  %v1003 = vmax.f32 %v991, 0.0
  %v1004 = vmax.f32 %v998, 0.0
  %v1005 = vrot.slane %v1001, 1
  %v1006 = vrot.slane %v1002, 1
  %v1007 = vrot.slane %v1003, 1
  %v1008 = vrot.slane %v1004, 1
  %v1009 = vlaneseq
  %v1010 = vshrl.u32 %v1009, 7
  %vm1011 = vcmp.lt.s32.totalorder %v1010, 7
  %v1012 = vsel %vm1011, %v1007, %v1008
  %v1013 = vsel %vm1011, %v1006, %v1007
  %v1014 = vsel %vm1011, %v1005, %v1006
  %v1015 = vsel %vm1011, %v1008, %v1005
  %v1016 = vmax.f32 %v1001, %v1014
  %v1017 = vmax.f32 %v1002, %v1013
  %v1018 = vmax.f32 %v1003, %v1012
  %v1019 = vmax.f32 %v1004, %v1015
  %v1020 = vld [vmem:[%s3] sm:$0xff]
  %v1021 = vld [vmem:[%s3 + $0x8] sm:$0xff]
  %vm1022 = vcmask 261120
  %v1024 = vsel %vm1022, %v1020, 0
  %v1027 = vsel %vm1022, %v1021, 0
  %1029 = vmatprep.subr.mxu0 0.0
  %1030 = vmatpush1.msra.mxu0 0.0
  %1031 = vmatprep.subr.mxu0 0.0
  %1032 = vmatpush1.msra.mxu0 0.0
  %1033 = vmatprep.subr.mxu0 0.0
  %1034 = vmatpush1.msra.mxu0 0.0
  %1035 = vmatprep.subr.mxu0 0.0
  %1036 = vmatpush1.msra.mxu0 0.0
  %1037 = vmatprep.subr.mxu0 0.0
  %1038 = vmatpush1.msra.mxu0 0.0
  %1039 = vmatprep.subr.mxu0 0.0
  %1040 = vmatpush1.msra.mxu0 0.0
  %1041 = vmatprep.subr.mxu0 0.0
  %1042 = vmatpush1.msra.mxu0 0.0
  %1043 = vmatprep.subr.mxu0 0.0
  %1044 = vmatpush1.msra.mxu0 0.0
  %1045 = vmatprep.subr.mxu0 0.0
  %1046 = vmatpush1.msra.mxu0 0.0
  %1047 = vmatprep.subr.mxu0 0.0
  %1048 = vmatpush1.msra.mxu0 0.0
  %1049 = vmatprep.subr.mxu0 0.0
  %1050 = vmatpush1.msra.mxu0 0.0
  %1051 = vmatprep.subr.mxu0 0.0
  %1052 = vmatpush1.msra.mxu0 0.0
  %1053 = vmatprep.subr.mxu0 0.0
  %v1054 = vand.u32 %v1019, 4294901760
  %1055 = vmatpush1.msra.mxu0 %v1054
  %1056 = vmatprep.subr.mxu0 0.0
  %v1057 = vand.u32 %v1018, 4294901760
  %1058 = vmatpush1.msra.mxu0 %v1057
  %1059 = vmatprep.subr.mxu0 0.0
  %v1060 = vand.u32 %v1017, 4294901760
  %1061 = vmatpush1.msra.mxu0 %v1060
  %1062 = vmatprep.subr.mxu0 0.0
  %v1063 = vand.u32 %v1016, 4294901760
  %1064 = vmatpush1.msra.mxu0 %v1063
  %1065 = vmatprep.subr.mxu0 0.0
  %1066 = vmatpush2.msra.mxu0 0.0
  %1067 = vmatprep.subr.mxu0 0.0
  %1068 = vmatpush2.msra.mxu0 0.0
  %1069 = vmatprep.subr.mxu0 0.0
  %1070 = vmatpush2.msra.mxu0 0.0
  %1071 = vmatprep.subr.mxu0 0.0
  %1072 = vmatpush2.msra.mxu0 0.0
  %1073 = vmatprep.subr.mxu0 0.0
  %1074 = vmatpush2.msra.mxu0 0.0
  %1075 = vmatprep.subr.mxu0 0.0
  %1076 = vmatpush2.msra.mxu0 0.0
  %1077 = vmatprep.subr.mxu0 0.0
  %1078 = vmatpush2.msra.mxu0 0.0
  %1079 = vmatprep.subr.mxu0 0.0
  %1080 = vmatpush2.msra.mxu0 0.0
  %1081 = vmatprep.subr.mxu0 0.0
  %1082 = vmatpush2.msra.mxu0 0.0
  %1083 = vmatprep.subr.mxu0 0.0
  %1084 = vmatpush2.msra.mxu0 0.0
  %1085 = vmatprep.subr.mxu0 0.0
  %1086 = vmatpush2.msra.mxu0 0.0
  %1087 = vmatprep.subr.mxu0 0.0
  %1088 = vmatpush2.msra.mxu0 0.0
  %1089 = vmatprep.subr.mxu0 0.0
  %1090 = vmatpush2.msra.mxu0 0.0
  %1091 = vmatprep.subr.mxu0 0.0
  %1092 = vmatpush2.msra.mxu0 0.0
  %1093 = vmatprep.subr.mxu0 0.0
  %1094 = vmatpush2.msra.mxu0 0.0
  %1095 = vmatprep.subr.mxu0 0.0
  %1096 = vmatpush2.msra.mxu0 0.0
  %1097 = vmatprep.mubr.f32.mxu0 0.0
  %v1098 = vand.u32 %v1024, 4294901760
  %v1099 = vsub.f32 %v1024, %v1098
  %v1100 = vand.u32 %v1099, 4294901760
  %v1101 = vsub.f32 %v1099, %v1100
  %v1102 = vand.u32 %v1101, 4294901760
  %1103 = vmatmul.mubr.f32.gmra.mxu0 %v1102
  %v1104 = vpop.f32.mrf.mxu0
  %v1105 = vadd.f32 0.0, %v1104
  %v1106 = vpop.f32.mrf.mxu0
  %1107 = vmatprep.mubr.f32.mxu0 0.0
  %v1108 = vand.u32 %v1027, 4294901760
  %v1109 = vsub.f32 %v1027, %v1108
  %v1110 = vand.u32 %v1109, 4294901760
  %v1111 = vsub.f32 %v1109, %v1110
  %v1112 = vand.u32 %v1111, 4294901760
  %1113 = vmatmul.mubr.f32.gmra.mxu0 %v1112
  %v1114 = vpop.f32.mrf.mxu0
  %v1115 = vadd.f32 0.0, %v1114
  %v1116 = vpop.f32.mrf.mxu0
  %1117 = vdwg.mxu0
  %1118 = vmatprep.subr.mxu0 0.0
  %1119 = vmatpush1.msra.mxu0 0.0
  %1120 = vmatprep.subr.mxu0 0.0
  %1121 = vmatpush1.msra.mxu0 0.0
  %1122 = vmatprep.subr.mxu0 0.0
  %1123 = vmatpush1.msra.mxu0 0.0
  %1124 = vmatprep.subr.mxu0 0.0
  %1125 = vmatpush1.msra.mxu0 0.0
  %1126 = vmatprep.subr.mxu0 0.0
  %1127 = vmatpush1.msra.mxu0 0.0
  %1128 = vmatprep.subr.mxu0 0.0
  %1129 = vmatpush1.msra.mxu0 0.0
  %1130 = vmatprep.subr.mxu0 0.0
  %1131 = vmatpush1.msra.mxu0 0.0
  %1132 = vmatprep.subr.mxu0 0.0
  %1133 = vmatpush1.msra.mxu0 0.0
  %1134 = vmatprep.subr.mxu0 0.0
  %1135 = vmatpush1.msra.mxu0 0.0
  %1136 = vmatprep.subr.mxu0 0.0
  %1137 = vmatpush1.msra.mxu0 0.0
  %1138 = vmatprep.subr.mxu0 0.0
  %1139 = vmatpush1.msra.mxu0 0.0
  %1140 = vmatprep.subr.mxu0 0.0
  %1141 = vmatpush1.msra.mxu0 0.0
  %1142 = vmatprep.subr.mxu0 0.0
  %v1143 = vand.u32 %v1019, 4294901760
  %v1144 = vsub.f32 %v1019, %v1143
  %v1145 = vand.u32 %v1144, 4294901760
  %v1146 = vsub.f32 %v1144, %v1145
  %v1147 = vand.u32 %v1146, 4294901760
  %1148 = vmatpush1.msra.mxu0 %v1147
  %1149 = vmatprep.subr.mxu0 0.0
  %v1150 = vand.u32 %v1018, 4294901760
  %v1151 = vsub.f32 %v1018, %v1150
  %v1152 = vand.u32 %v1151, 4294901760
  %v1153 = vsub.f32 %v1151, %v1152
  %v1154 = vand.u32 %v1153, 4294901760
  %1155 = vmatpush1.msra.mxu0 %v1154
  %1156 = vmatprep.subr.mxu0 0.0
  %v1157 = vand.u32 %v1017, 4294901760
  %v1158 = vsub.f32 %v1017, %v1157
  %v1159 = vand.u32 %v1158, 4294901760
  %v1160 = vsub.f32 %v1158, %v1159
  %v1161 = vand.u32 %v1160, 4294901760
  %1162 = vmatpush1.msra.mxu0 %v1161
  %1163 = vmatprep.subr.mxu0 0.0
  %v1164 = vand.u32 %v1016, 4294901760
  %v1165 = vsub.f32 %v1016, %v1164
  %v1166 = vand.u32 %v1165, 4294901760
  %v1167 = vsub.f32 %v1165, %v1166
  %v1168 = vand.u32 %v1167, 4294901760
  %1169 = vmatpush1.msra.mxu0 %v1168
  %1170 = vmatprep.subr.mxu0 0.0
  %1171 = vmatpush2.msra.mxu0 0.0
  %1172 = vmatprep.subr.mxu0 0.0
  %1173 = vmatpush2.msra.mxu0 0.0
  %1174 = vmatprep.subr.mxu0 0.0
  %1175 = vmatpush2.msra.mxu0 0.0
  %1176 = vmatprep.subr.mxu0 0.0
  %1177 = vmatpush2.msra.mxu0 0.0
  %1178 = vmatprep.subr.mxu0 0.0
  %1179 = vmatpush2.msra.mxu0 0.0
  %1180 = vmatprep.subr.mxu0 0.0
  %1181 = vmatpush2.msra.mxu0 0.0
  %1182 = vmatprep.subr.mxu0 0.0
  %1183 = vmatpush2.msra.mxu0 0.0
  %1184 = vmatprep.subr.mxu0 0.0
  %1185 = vmatpush2.msra.mxu0 0.0
  %1186 = vmatprep.subr.mxu0 0.0
  %1187 = vmatpush2.msra.mxu0 0.0
  %1188 = vmatprep.subr.mxu0 0.0
  %1189 = vmatpush2.msra.mxu0 0.0
  %1190 = vmatprep.subr.mxu0 0.0
  %1191 = vmatpush2.msra.mxu0 0.0
  %1192 = vmatprep.subr.mxu0 0.0
  %1193 = vmatpush2.msra.mxu0 0.0
  %1194 = vmatprep.subr.mxu0 0.0
  %1195 = vmatpush2.msra.mxu0 0.0
  %1196 = vmatprep.subr.mxu0 0.0
  %1197 = vmatpush2.msra.mxu0 0.0
  %1198 = vmatprep.subr.mxu0 0.0
  %1199 = vmatpush2.msra.mxu0 0.0
  %1200 = vmatprep.subr.mxu0 0.0
  %1201 = vmatpush2.msra.mxu0 0.0
  %1202 = vmatprep.mubr.f32.mxu0 0.0
  %v1203 = vand.u32 %v1024, 4294901760
  %1204 = vmatmul.mubr.f32.gmra.mxu0 %v1203
  %v1205 = vpop.f32.mrf.mxu0
  %v1206 = vadd.f32 %v1105, %v1205
  %v1207 = vpop.f32.mrf.mxu0
  %1208 = vmatprep.mubr.f32.mxu0 0.0
  %v1209 = vand.u32 %v1027, 4294901760
  %1210 = vmatmul.mubr.f32.gmra.mxu0 %v1209
  %v1211 = vpop.f32.mrf.mxu0
  %v1212 = vadd.f32 %v1115, %v1211
  %v1213 = vpop.f32.mrf.mxu0
  %1214 = vdwg.mxu0
  %1215 = vmatprep.subr.mxu0 0.0
  %1216 = vmatpush1.msra.mxu0 0.0
  %1217 = vmatprep.subr.mxu0 0.0
  %1218 = vmatpush1.msra.mxu0 0.0
  %1219 = vmatprep.subr.mxu0 0.0
  %1220 = vmatpush1.msra.mxu0 0.0
  %1221 = vmatprep.subr.mxu0 0.0
  %1222 = vmatpush1.msra.mxu0 0.0
  %1223 = vmatprep.subr.mxu0 0.0
  %1224 = vmatpush1.msra.mxu0 0.0
  %1225 = vmatprep.subr.mxu0 0.0
  %1226 = vmatpush1.msra.mxu0 0.0
  %1227 = vmatprep.subr.mxu0 0.0
  %1228 = vmatpush1.msra.mxu0 0.0
  %1229 = vmatprep.subr.mxu0 0.0
  %1230 = vmatpush1.msra.mxu0 0.0
  %1231 = vmatprep.subr.mxu0 0.0
  %1232 = vmatpush1.msra.mxu0 0.0
  %1233 = vmatprep.subr.mxu0 0.0
  %1234 = vmatpush1.msra.mxu0 0.0
  %1235 = vmatprep.subr.mxu0 0.0
  %1236 = vmatpush1.msra.mxu0 0.0
  %1237 = vmatprep.subr.mxu0 0.0
  %1238 = vmatpush1.msra.mxu0 0.0
  %1239 = vmatprep.subr.mxu0 0.0
  %v1240 = vand.u32 %v1019, 4294901760
  %v1241 = vsub.f32 %v1019, %v1240
  %1242 = vmatpush1.msra.mxu0 %v1241
  %1243 = vmatprep.subr.mxu0 0.0
  %v1244 = vand.u32 %v1018, 4294901760
  %v1245 = vsub.f32 %v1018, %v1244
  %1246 = vmatpush1.msra.mxu0 %v1245
  %1247 = vmatprep.subr.mxu0 0.0
  %v1248 = vand.u32 %v1017, 4294901760
  %v1249 = vsub.f32 %v1017, %v1248
  %1250 = vmatpush1.msra.mxu0 %v1249
  %1251 = vmatprep.subr.mxu0 0.0
  %v1252 = vand.u32 %v1016, 4294901760
  %v1253 = vsub.f32 %v1016, %v1252
  %1254 = vmatpush1.msra.mxu0 %v1253
  %1255 = vmatprep.subr.mxu0 0.0
  %1256 = vmatpush2.msra.mxu0 0.0
  %1257 = vmatprep.subr.mxu0 0.0
  %1258 = vmatpush2.msra.mxu0 0.0
  %1259 = vmatprep.subr.mxu0 0.0
  %1260 = vmatpush2.msra.mxu0 0.0
  %1261 = vmatprep.subr.mxu0 0.0
  %1262 = vmatpush2.msra.mxu0 0.0
  %1263 = vmatprep.subr.mxu0 0.0
  %1264 = vmatpush2.msra.mxu0 0.0
  %1265 = vmatprep.subr.mxu0 0.0
  %1266 = vmatpush2.msra.mxu0 0.0
  %1267 = vmatprep.subr.mxu0 0.0
  %1268 = vmatpush2.msra.mxu0 0.0
  %1269 = vmatprep.subr.mxu0 0.0
  %1270 = vmatpush2.msra.mxu0 0.0
  %1271 = vmatprep.subr.mxu0 0.0
  %1272 = vmatpush2.msra.mxu0 0.0
  %1273 = vmatprep.subr.mxu0 0.0
  %1274 = vmatpush2.msra.mxu0 0.0
  %1275 = vmatprep.subr.mxu0 0.0
  %1276 = vmatpush2.msra.mxu0 0.0
  %1277 = vmatprep.subr.mxu0 0.0
  %1278 = vmatpush2.msra.mxu0 0.0
  %1279 = vmatprep.subr.mxu0 0.0
  %1280 = vmatpush2.msra.mxu0 0.0
  %1281 = vmatprep.subr.mxu0 0.0
  %1282 = vmatpush2.msra.mxu0 0.0
  %1283 = vmatprep.subr.mxu0 0.0
  %1284 = vmatpush2.msra.mxu0 0.0
  %1285 = vmatprep.subr.mxu0 0.0
  %1286 = vmatpush2.msra.mxu0 0.0
  %1287 = vmatprep.mubr.f32.mxu0 0.0
  %v1288 = vand.u32 %v1024, 4294901760
  %v1289 = vsub.f32 %v1024, %v1288
  %1290 = vmatmul.mubr.f32.gmra.mxu0 %v1289
  %v1291 = vpop.f32.mrf.mxu0
  %v1292 = vadd.f32 %v1206, %v1291
  %v1293 = vpop.f32.mrf.mxu0
  %1294 = vmatprep.mubr.f32.mxu0 0.0
  %v1295 = vand.u32 %v1027, 4294901760
  %v1296 = vsub.f32 %v1027, %v1295
  %1297 = vmatmul.mubr.f32.gmra.mxu0 %v1296
  %v1298 = vpop.f32.mrf.mxu0
  %v1299 = vadd.f32 %v1212, %v1298
  %v1300 = vpop.f32.mrf.mxu0
  %1301 = vdwg.mxu0
  %1302 = vmatprep.subr.mxu0 0.0
  %1303 = vmatpush1.msra.mxu0 0.0
  %1304 = vmatprep.subr.mxu0 0.0
  %1305 = vmatpush1.msra.mxu0 0.0
  %1306 = vmatprep.subr.mxu0 0.0
  %1307 = vmatpush1.msra.mxu0 0.0
  %1308 = vmatprep.subr.mxu0 0.0
  %1309 = vmatpush1.msra.mxu0 0.0
  %1310 = vmatprep.subr.mxu0 0.0
  %1311 = vmatpush1.msra.mxu0 0.0
  %1312 = vmatprep.subr.mxu0 0.0
  %1313 = vmatpush1.msra.mxu0 0.0
  %1314 = vmatprep.subr.mxu0 0.0
  %1315 = vmatpush1.msra.mxu0 0.0
  %1316 = vmatprep.subr.mxu0 0.0
  %1317 = vmatpush1.msra.mxu0 0.0
  %1318 = vmatprep.subr.mxu0 0.0
  %1319 = vmatpush1.msra.mxu0 0.0
  %1320 = vmatprep.subr.mxu0 0.0
  %1321 = vmatpush1.msra.mxu0 0.0
  %1322 = vmatprep.subr.mxu0 0.0
  %1323 = vmatpush1.msra.mxu0 0.0
  %1324 = vmatprep.subr.mxu0 0.0
  %1325 = vmatpush1.msra.mxu0 0.0
  %1326 = vmatprep.subr.mxu0 0.0
  %v1327 = vand.u32 %v1019, 4294901760
  %1328 = vmatpush1.msra.mxu0 %v1327
  %1329 = vmatprep.subr.mxu0 0.0
  %v1330 = vand.u32 %v1018, 4294901760
  %1331 = vmatpush1.msra.mxu0 %v1330
  %1332 = vmatprep.subr.mxu0 0.0
  %v1333 = vand.u32 %v1017, 4294901760
  %1334 = vmatpush1.msra.mxu0 %v1333
  %1335 = vmatprep.subr.mxu0 0.0
  %v1336 = vand.u32 %v1016, 4294901760
  %1337 = vmatpush1.msra.mxu0 %v1336
  %1338 = vmatprep.subr.mxu0 0.0
  %1339 = vmatpush2.msra.mxu0 0.0
  %1340 = vmatprep.subr.mxu0 0.0
  %1341 = vmatpush2.msra.mxu0 0.0
  %1342 = vmatprep.subr.mxu0 0.0
  %1343 = vmatpush2.msra.mxu0 0.0
  %1344 = vmatprep.subr.mxu0 0.0
  %1345 = vmatpush2.msra.mxu0 0.0
  %1346 = vmatprep.subr.mxu0 0.0
  %1347 = vmatpush2.msra.mxu0 0.0
  %1348 = vmatprep.subr.mxu0 0.0
  %1349 = vmatpush2.msra.mxu0 0.0
  %1350 = vmatprep.subr.mxu0 0.0
  %1351 = vmatpush2.msra.mxu0 0.0
  %1352 = vmatprep.subr.mxu0 0.0
  %1353 = vmatpush2.msra.mxu0 0.0
  %1354 = vmatprep.subr.mxu0 0.0
  %1355 = vmatpush2.msra.mxu0 0.0
  %1356 = vmatprep.subr.mxu0 0.0
  %1357 = vmatpush2.msra.mxu0 0.0
  %1358 = vmatprep.subr.mxu0 0.0
  %1359 = vmatpush2.msra.mxu0 0.0
  %1360 = vmatprep.subr.mxu0 0.0
  %1361 = vmatpush2.msra.mxu0 0.0
  %1362 = vmatprep.subr.mxu0 0.0
  %1363 = vmatpush2.msra.mxu0 0.0
  %1364 = vmatprep.subr.mxu0 0.0
  %1365 = vmatpush2.msra.mxu0 0.0
  %1366 = vmatprep.subr.mxu0 0.0
  %1367 = vmatpush2.msra.mxu0 0.0
  %1368 = vmatprep.subr.mxu0 0.0
  %1369 = vmatpush2.msra.mxu0 0.0
  %1370 = vmatprep.mubr.f32.mxu0 0.0
  %v1371 = vand.u32 %v1024, 4294901760
  %v1372 = vsub.f32 %v1024, %v1371
  %v1373 = vand.u32 %v1372, 4294901760
  %1374 = vmatmul.mubr.f32.gmra.mxu0 %v1373
  %v1375 = vpop.f32.mrf.mxu0
  %v1376 = vadd.f32 %v1292, %v1375
  %v1377 = vpop.f32.mrf.mxu0
  %1378 = vmatprep.mubr.f32.mxu0 0.0
  %v1379 = vand.u32 %v1027, 4294901760
  %v1380 = vsub.f32 %v1027, %v1379
  %v1381 = vand.u32 %v1380, 4294901760
  %1382 = vmatmul.mubr.f32.gmra.mxu0 %v1381
  %v1383 = vpop.f32.mrf.mxu0
  %v1384 = vadd.f32 %v1299, %v1383
  %v1385 = vpop.f32.mrf.mxu0
  %1386 = vdwg.mxu0
  %1387 = vmatprep.subr.mxu0 0.0
  %1388 = vmatpush1.msra.mxu0 0.0
  %1389 = vmatprep.subr.mxu0 0.0
  %1390 = vmatpush1.msra.mxu0 0.0
  %1391 = vmatprep.subr.mxu0 0.0
  %1392 = vmatpush1.msra.mxu0 0.0
  %1393 = vmatprep.subr.mxu0 0.0
  %1394 = vmatpush1.msra.mxu0 0.0
  %1395 = vmatprep.subr.mxu0 0.0
  %1396 = vmatpush1.msra.mxu0 0.0
  %1397 = vmatprep.subr.mxu0 0.0
  %1398 = vmatpush1.msra.mxu0 0.0
  %1399 = vmatprep.subr.mxu0 0.0
  %1400 = vmatpush1.msra.mxu0 0.0
  %1401 = vmatprep.subr.mxu0 0.0
  %1402 = vmatpush1.msra.mxu0 0.0
  %1403 = vmatprep.subr.mxu0 0.0
  %1404 = vmatpush1.msra.mxu0 0.0
  %1405 = vmatprep.subr.mxu0 0.0
  %1406 = vmatpush1.msra.mxu0 0.0
  %1407 = vmatprep.subr.mxu0 0.0
  %1408 = vmatpush1.msra.mxu0 0.0
  %1409 = vmatprep.subr.mxu0 0.0
  %1410 = vmatpush1.msra.mxu0 0.0
  %1411 = vmatprep.subr.mxu0 0.0
  %v1412 = vand.u32 %v1019, 4294901760
  %v1413 = vsub.f32 %v1019, %v1412
  %v1414 = vand.u32 %v1413, 4294901760
  %1415 = vmatpush1.msra.mxu0 %v1414
  %1416 = vmatprep.subr.mxu0 0.0
  %v1417 = vand.u32 %v1018, 4294901760
  %v1418 = vsub.f32 %v1018, %v1417
  %v1419 = vand.u32 %v1418, 4294901760
  %1420 = vmatpush1.msra.mxu0 %v1419
  %1421 = vmatprep.subr.mxu0 0.0
  %v1422 = vand.u32 %v1017, 4294901760
  %v1423 = vsub.f32 %v1017, %v1422
  %v1424 = vand.u32 %v1423, 4294901760
  %1425 = vmatpush1.msra.mxu0 %v1424
  %1426 = vmatprep.subr.mxu0 0.0
  %v1427 = vand.u32 %v1016, 4294901760
  %v1428 = vsub.f32 %v1016, %v1427
  %v1429 = vand.u32 %v1428, 4294901760
  %1430 = vmatpush1.msra.mxu0 %v1429
  %1431 = vmatprep.subr.mxu0 0.0
  %1432 = vmatpush2.msra.mxu0 0.0
  %1433 = vmatprep.subr.mxu0 0.0
  %1434 = vmatpush2.msra.mxu0 0.0
  %1435 = vmatprep.subr.mxu0 0.0
  %1436 = vmatpush2.msra.mxu0 0.0
  %1437 = vmatprep.subr.mxu0 0.0
  %1438 = vmatpush2.msra.mxu0 0.0
  %1439 = vmatprep.subr.mxu0 0.0
  %1440 = vmatpush2.msra.mxu0 0.0
  %1441 = vmatprep.subr.mxu0 0.0
  %1442 = vmatpush2.msra.mxu0 0.0
  %1443 = vmatprep.subr.mxu0 0.0
  %1444 = vmatpush2.msra.mxu0 0.0
  %1445 = vmatprep.subr.mxu0 0.0
  %1446 = vmatpush2.msra.mxu0 0.0
  %1447 = vmatprep.subr.mxu0 0.0
  %1448 = vmatpush2.msra.mxu0 0.0
  %1449 = vmatprep.subr.mxu0 0.0
  %1450 = vmatpush2.msra.mxu0 0.0
  %1451 = vmatprep.subr.mxu0 0.0
  %1452 = vmatpush2.msra.mxu0 0.0
  %1453 = vmatprep.subr.mxu0 0.0
  %1454 = vmatpush2.msra.mxu0 0.0
  %1455 = vmatprep.subr.mxu0 0.0
  %1456 = vmatpush2.msra.mxu0 0.0
  %1457 = vmatprep.subr.mxu0 0.0
  %1458 = vmatpush2.msra.mxu0 0.0
  %1459 = vmatprep.subr.mxu0 0.0
  %1460 = vmatpush2.msra.mxu0 0.0
  %1461 = vmatprep.subr.mxu0 0.0
  %1462 = vmatpush2.msra.mxu0 0.0
  %1463 = vmatprep.mubr.f32.mxu0 0.0
  %v1464 = vand.u32 %v1024, 4294901760
  %1465 = vmatmul.mubr.f32.gmra.mxu0 %v1464
  %v1466 = vpop.f32.mrf.mxu0
  %v1467 = vadd.f32 %v1376, %v1466
  %v1468 = vpop.f32.mrf.mxu0
  %1469 = vmatprep.mubr.f32.mxu0 0.0
  %v1470 = vand.u32 %v1027, 4294901760
  %1471 = vmatmul.mubr.f32.gmra.mxu0 %v1470
  %v1472 = vpop.f32.mrf.mxu0
  %v1473 = vadd.f32 %v1384, %v1472
  %v1474 = vpop.f32.mrf.mxu0
  %1475 = vdwg.mxu0
  %1476 = vmatprep.subr.mxu0 0.0
  %1477 = vmatpush1.msra.mxu0 0.0
  %1478 = vmatprep.subr.mxu0 0.0
  %1479 = vmatpush1.msra.mxu0 0.0
  %1480 = vmatprep.subr.mxu0 0.0
  %1481 = vmatpush1.msra.mxu0 0.0
  %1482 = vmatprep.subr.mxu0 0.0
  %1483 = vmatpush1.msra.mxu0 0.0
  %1484 = vmatprep.subr.mxu0 0.0
  %1485 = vmatpush1.msra.mxu0 0.0
  %1486 = vmatprep.subr.mxu0 0.0
  %1487 = vmatpush1.msra.mxu0 0.0
  %1488 = vmatprep.subr.mxu0 0.0
  %1489 = vmatpush1.msra.mxu0 0.0
  %1490 = vmatprep.subr.mxu0 0.0
  %1491 = vmatpush1.msra.mxu0 0.0
  %1492 = vmatprep.subr.mxu0 0.0
  %1493 = vmatpush1.msra.mxu0 0.0
  %1494 = vmatprep.subr.mxu0 0.0
  %1495 = vmatpush1.msra.mxu0 0.0
  %1496 = vmatprep.subr.mxu0 0.0
  %1497 = vmatpush1.msra.mxu0 0.0
  %1498 = vmatprep.subr.mxu0 0.0
  %1499 = vmatpush1.msra.mxu0 0.0
  %1500 = vmatprep.subr.mxu0 0.0
  %v1501 = vand.u32 %v1019, 4294901760
  %1502 = vmatpush1.msra.mxu0 %v1501
  %1503 = vmatprep.subr.mxu0 0.0
  %v1504 = vand.u32 %v1018, 4294901760
  %1505 = vmatpush1.msra.mxu0 %v1504
  %1506 = vmatprep.subr.mxu0 0.0
  %v1507 = vand.u32 %v1017, 4294901760
  %1508 = vmatpush1.msra.mxu0 %v1507
  %1509 = vmatprep.subr.mxu0 0.0
  %v1510 = vand.u32 %v1016, 4294901760
  %1511 = vmatpush1.msra.mxu0 %v1510
  %1512 = vmatprep.subr.mxu0 0.0
  %1513 = vmatpush2.msra.mxu0 0.0
  %1514 = vmatprep.subr.mxu0 0.0
  %1515 = vmatpush2.msra.mxu0 0.0
  %1516 = vmatprep.subr.mxu0 0.0
  %1517 = vmatpush2.msra.mxu0 0.0
  %1518 = vmatprep.subr.mxu0 0.0
  %1519 = vmatpush2.msra.mxu0 0.0
  %1520 = vmatprep.subr.mxu0 0.0
  %1521 = vmatpush2.msra.mxu0 0.0
  %1522 = vmatprep.subr.mxu0 0.0
  %1523 = vmatpush2.msra.mxu0 0.0
  %1524 = vmatprep.subr.mxu0 0.0
  %1525 = vmatpush2.msra.mxu0 0.0
  %1526 = vmatprep.subr.mxu0 0.0
  %1527 = vmatpush2.msra.mxu0 0.0
  %1528 = vmatprep.subr.mxu0 0.0
  %1529 = vmatpush2.msra.mxu0 0.0
  %1530 = vmatprep.subr.mxu0 0.0
  %1531 = vmatpush2.msra.mxu0 0.0
  %1532 = vmatprep.subr.mxu0 0.0
  %1533 = vmatpush2.msra.mxu0 0.0
  %1534 = vmatprep.subr.mxu0 0.0
  %1535 = vmatpush2.msra.mxu0 0.0
  %1536 = vmatprep.subr.mxu0 0.0
  %1537 = vmatpush2.msra.mxu0 0.0
  %1538 = vmatprep.subr.mxu0 0.0
  %1539 = vmatpush2.msra.mxu0 0.0
  %1540 = vmatprep.subr.mxu0 0.0
  %1541 = vmatpush2.msra.mxu0 0.0
  %1542 = vmatprep.subr.mxu0 0.0
  %1543 = vmatpush2.msra.mxu0 0.0
  %1544 = vmatprep.mubr.f32.mxu0 0.0
  %v1545 = vand.u32 %v1024, 4294901760
  %1546 = vmatmul.mubr.f32.gmra.mxu0 %v1545
  %v1547 = vpop.f32.mrf.mxu0
  %v1548 = vadd.f32 %v1467, %v1547
  %v1549 = vpop.f32.mrf.mxu0
  %1550 = vmatprep.mubr.f32.mxu0 0.0
  %v1551 = vand.u32 %v1027, 4294901760
  %1552 = vmatmul.mubr.f32.gmra.mxu0 %v1551
  %v1553 = vpop.f32.mrf.mxu0
  %v1554 = vadd.f32 %v1473, %v1553
  %v1555 = vpop.f32.mrf.mxu0
  %1556 = vdwg.mxu0
  %1557 = vrot.lane.b32.xlu0 %v1548, 120
  %v1558 = vpop.permute.xlu0 %1557
  %1559 = vrot.lane.b32.xlu0 %v1554, 120
  %v1560 = vpop.permute.xlu0 %1559
  %v1561 = vmax.f32 %v1548, %v1558
  %v1562 = vmax.f32 %v1554, %v1560
  %v1563 = vadd.s32 %v1010, 8
  %vm1564 = vcmp.lt.s32.totalorder %v1010, 0
  %v1565 = vsub.s32 0, %v1010
  %v1566 = vsel %vm1564, %v1565, %v1010
  %v1567 = vshrl.u32 %v1566, 3
  %v1568 = vand.u32 %v1566, 7
  %v1569 = vsub.s32 0, %v1568
  %v1570 = vsel %vm1564, %v1569, %v1568
  %vm1571 = vcmp.lt.s32.totalorder %v1563, 0
  %v1572 = vsub.s32 0, %v1563
  %v1573 = vsel %vm1571, %v1572, %v1563
  %v1574 = vshrl.u32 %v1573, 3
  %v1575 = vand.u32 %v1573, 7
  %v1576 = vsub.s32 0, %v1575
  %v1577 = vsel %vm1571, %v1576, %v1575
  %vm1578 = vcmp.ne.s32.totalorder %v1570, 0
  %vm1579 = vcmp.ne.s32.totalorder %v1577, 0
  %vm1580 = vcmp.lt.s32.totalorder %v1570, 0
  %vm1581 = vcmp.lt.s32.totalorder %v1577, 0
  %vm1582 = vmand %vm1580, %vm1578
  %vm1583 = vmand %vm1581, %vm1579
  %v1584 = vadd.s32 %v1570, 8
  %v1585 = vadd.s32 %v1577, 8
  %v1586 = vsel %vm1582, %v1584, %v1570
  %v1587 = vsel %vm1583, %v1585, %v1577
  %vm1588 = vcmp.ne.s32.totalorder %v1586, 0
  %vm1589 = vcmp.ne.s32.totalorder %v1587, 0
  %v1590 = vrot.slane %v1561, 7
  %v1591 = vrot.slane %v1562, 7
  %vm1592 = vcmp.lt.s32.totalorder %v1010, 1
  %v1593 = vsel %vm1592, %v1590, %v1591
  %v1594 = vsel %vm1592, %v1591, %v1590
  %v1595 = vsel %vm1588, %v1594, 0.0
  %v1596 = vsel %vm1589, %v1593, 0.0
  %vm1597 = vcmp.ne.s32.totalorder %v1586, 7
  %vm1598 = vcmp.ne.s32.totalorder %v1587, 7
  %v1599 = vrot.slane %v1561, 1
  %v1600 = vrot.slane %v1562, 1
  %v1601 = vsel %vm1011, %v1599, %v1600
  %v1602 = vsel %vm1011, %v1600, %v1599
  %v1603 = vsel %vm1597, %v1601, 0.0
  %v1604 = vsel %vm1598, %v1602, 0.0
  %v1605 = vld [vmem:[%s4] sm:$0xff]
  %v1606 = vld [vmem:[%s4 + $0x8] sm:$0xff]
  %v1607 = vld [vmem:[%s4 + $0x10] sm:$0xff]
  %v1608 = vld [vmem:[%s4 + $0x18] sm:$0xff]
  %v1609 = vld [vmem:[%s4 + $0x20] sm:$0xff]
  %v1610 = vld [vmem:[%s4 + $0x28] sm:$0xff]
  %v1611 = vld [vmem:[%s4 + $0x30] sm:$0xff]
  %v1612 = vld [vmem:[%s4 + $0x38] sm:$0xff]
  %v1613 = vld [vmem:[%s4 + $0x40] sm:$0xff]
  %v1614 = vld [vmem:[%s4 + $0x48] sm:$0xff]
  %v1615 = vld [vmem:[%s4 + $0x50] sm:$0xff]
  %v1616 = vld [vmem:[%s4 + $0x58] sm:$0xff]
  %v1617 = vld [vmem:[%s4 + $0x60] sm:$0xff]
  %v1618 = vld [vmem:[%s4 + $0x68] sm:$0xff]
  %v1619 = vld [vmem:[%s4 + $0x70] sm:$0xff]
  %v1620 = vld [vmem:[%s4 + $0x78] sm:$0xff]
  %s1621 = scalar_lea.vmem %s4, 128
  %v1622 = vld [vmem:[%s1621] sm:$0xff]
  %v1623 = vld [vmem:[%s1621 + $0x8] sm:$0xff]
  %v1624 = vld [vmem:[%s1621 + $0x10] sm:$0xff]
  %v1625 = vld [vmem:[%s1621 + $0x18] sm:$0xff]
  %v1626 = vld [vmem:[%s1621 + $0x20] sm:$0xff]
  %v1627 = vld [vmem:[%s1621 + $0x28] sm:$0xff]
  %v1628 = vld [vmem:[%s1621 + $0x30] sm:$0xff]
  %v1629 = vld [vmem:[%s1621 + $0x38] sm:$0xff]
  %v1630 = vld [vmem:[%s1621 + $0x40] sm:$0xff]
  %v1631 = vld [vmem:[%s1621 + $0x48] sm:$0xff]
  %v1632 = vld [vmem:[%s1621 + $0x50] sm:$0xff]
  %v1633 = vld [vmem:[%s1621 + $0x58] sm:$0xff]
  %v1634 = vld [vmem:[%s1621 + $0x60] sm:$0xff]
  %v1635 = vld [vmem:[%s1621 + $0x68] sm:$0xff]
  %v1636 = vld [vmem:[%s1621 + $0x70] sm:$0xff]
  %v1637 = vld [vmem:[%s1621 + $0x78] sm:$0xff]
  %1638 = vmatprep.subr.mxu0 0.0
  %v1639 = vand.u32 %v1637, 4294901760
  %1640 = vmatpush1.msra.mxu0 %v1639
  %1641 = vmatprep.subr.mxu0 0.0
  %v1642 = vand.u32 %v1636, 4294901760
  %1643 = vmatpush1.msra.mxu0 %v1642
  %1644 = vmatprep.subr.mxu0 0.0
  %v1645 = vand.u32 %v1635, 4294901760
  %1646 = vmatpush1.msra.mxu0 %v1645
  %1647 = vmatprep.subr.mxu0 0.0
  %v1648 = vand.u32 %v1634, 4294901760
  %1649 = vmatpush1.msra.mxu0 %v1648
  %1650 = vmatprep.subr.mxu0 0.0
  %v1651 = vand.u32 %v1633, 4294901760
  %1652 = vmatpush1.msra.mxu0 %v1651
  %1653 = vmatprep.subr.mxu0 0.0
  %v1654 = vand.u32 %v1632, 4294901760
  %1655 = vmatpush1.msra.mxu0 %v1654
  %1656 = vmatprep.subr.mxu0 0.0
  %v1657 = vand.u32 %v1631, 4294901760
  %1658 = vmatpush1.msra.mxu0 %v1657
  %1659 = vmatprep.subr.mxu0 0.0
  %v1660 = vand.u32 %v1630, 4294901760
  %1661 = vmatpush1.msra.mxu0 %v1660
  %1662 = vmatprep.subr.mxu0 0.0
  %v1663 = vand.u32 %v1629, 4294901760
  %1664 = vmatpush1.msra.mxu0 %v1663
  %1665 = vmatprep.subr.mxu0 0.0
  %v1666 = vand.u32 %v1628, 4294901760
  %1667 = vmatpush1.msra.mxu0 %v1666
  %1668 = vmatprep.subr.mxu0 0.0
  %v1669 = vand.u32 %v1627, 4294901760
  %1670 = vmatpush1.msra.mxu0 %v1669
  %1671 = vmatprep.subr.mxu0 0.0
  %v1672 = vand.u32 %v1626, 4294901760
  %1673 = vmatpush1.msra.mxu0 %v1672
  %1674 = vmatprep.subr.mxu0 0.0
  %v1675 = vand.u32 %v1625, 4294901760
  %1676 = vmatpush1.msra.mxu0 %v1675
  %1677 = vmatprep.subr.mxu0 0.0
  %v1678 = vand.u32 %v1624, 4294901760
  %1679 = vmatpush1.msra.mxu0 %v1678
  %1680 = vmatprep.subr.mxu0 0.0
  %v1681 = vand.u32 %v1623, 4294901760
  %1682 = vmatpush1.msra.mxu0 %v1681
  %1683 = vmatprep.subr.mxu0 0.0
  %v1684 = vand.u32 %v1622, 4294901760
  %1685 = vmatpush1.msra.mxu0 %v1684
  %1686 = vmatprep.subr.mxu0 0.0
  %1687 = vmatpush2.msra.mxu0 0.0
  %1688 = vmatprep.subr.mxu0 0.0
  %1689 = vmatpush2.msra.mxu0 0.0
  %1690 = vmatprep.subr.mxu0 0.0
  %1691 = vmatpush2.msra.mxu0 0.0
  %1692 = vmatprep.subr.mxu0 0.0
  %1693 = vmatpush2.msra.mxu0 0.0
  %1694 = vmatprep.subr.mxu0 0.0
  %1695 = vmatpush2.msra.mxu0 0.0
  %1696 = vmatprep.subr.mxu0 0.0
  %1697 = vmatpush2.msra.mxu0 0.0
  %1698 = vmatprep.subr.mxu0 0.0
  %1699 = vmatpush2.msra.mxu0 0.0
  %1700 = vmatprep.subr.mxu0 0.0
  %1701 = vmatpush2.msra.mxu0 0.0
  %1702 = vmatprep.subr.mxu0 0.0
  %1703 = vmatpush2.msra.mxu0 0.0
  %1704 = vmatprep.subr.mxu0 0.0
  %1705 = vmatpush2.msra.mxu0 0.0
  %1706 = vmatprep.subr.mxu0 0.0
  %1707 = vmatpush2.msra.mxu0 0.0
  %1708 = vmatprep.subr.mxu0 0.0
  %1709 = vmatpush2.msra.mxu0 0.0
  %1710 = vmatprep.subr.mxu0 0.0
  %1711 = vmatpush2.msra.mxu0 0.0
  %1712 = vmatprep.subr.mxu0 0.0
  %1713 = vmatpush2.msra.mxu0 0.0
  %1714 = vmatprep.subr.mxu0 0.0
  %1715 = vmatpush2.msra.mxu0 0.0
  %1716 = vmatprep.subr.mxu0 0.0
  %1717 = vmatpush2.msra.mxu0 0.0
  %1718 = vmatprep.mubr.f32.mxu0 0.0
  %v1719 = vand.u32 %v1561, 4294901760
  %v1720 = vsub.f32 %v1561, %v1719
  %v1721 = vand.u32 %v1720, 4294901760
  %v1722 = vsub.f32 %v1720, %v1721
  %v1723 = vand.u32 %v1722, 4294901760
  %1724 = vmatmul.mubr.f32.gmra.mxu0 %v1723
  %v1725 = vpop.f32.mrf.mxu0
  %v1726 = vadd.f32 0.0, %v1725
  %v1727 = vpop.f32.mrf.mxu0
  %1728 = vmatprep.mubr.f32.mxu0 0.0
  %v1729 = vand.u32 %v1562, 4294901760
  %v1730 = vsub.f32 %v1562, %v1729
  %v1731 = vand.u32 %v1730, 4294901760
  %v1732 = vsub.f32 %v1730, %v1731
  %v1733 = vand.u32 %v1732, 4294901760
  %1734 = vmatmul.mubr.f32.gmra.mxu0 %v1733
  %v1735 = vpop.f32.mrf.mxu0
  %v1736 = vadd.f32 0.0, %v1735
  %v1737 = vpop.f32.mrf.mxu0
  %1738 = vdwg.mxu0
  %1739 = vmatprep.subr.mxu0 0.0
  %v1740 = vand.u32 %v1637, 4294901760
  %v1741 = vsub.f32 %v1637, %v1740
  %v1742 = vand.u32 %v1741, 4294901760
  %v1743 = vsub.f32 %v1741, %v1742
  %v1744 = vand.u32 %v1743, 4294901760
  %1745 = vmatpush1.msra.mxu0 %v1744
  %1746 = vmatprep.subr.mxu0 0.0
  %v1747 = vand.u32 %v1636, 4294901760
  %v1748 = vsub.f32 %v1636, %v1747
  %v1749 = vand.u32 %v1748, 4294901760
  %v1750 = vsub.f32 %v1748, %v1749
  %v1751 = vand.u32 %v1750, 4294901760
  %1752 = vmatpush1.msra.mxu0 %v1751
  %1753 = vmatprep.subr.mxu0 0.0
  %v1754 = vand.u32 %v1635, 4294901760
  %v1755 = vsub.f32 %v1635, %v1754
  %v1756 = vand.u32 %v1755, 4294901760
  %v1757 = vsub.f32 %v1755, %v1756
  %v1758 = vand.u32 %v1757, 4294901760
  %1759 = vmatpush1.msra.mxu0 %v1758
  %1760 = vmatprep.subr.mxu0 0.0
  %v1761 = vand.u32 %v1634, 4294901760
  %v1762 = vsub.f32 %v1634, %v1761
  %v1763 = vand.u32 %v1762, 4294901760
  %v1764 = vsub.f32 %v1762, %v1763
  %v1765 = vand.u32 %v1764, 4294901760
  %1766 = vmatpush1.msra.mxu0 %v1765
  %1767 = vmatprep.subr.mxu0 0.0
  %v1768 = vand.u32 %v1633, 4294901760
  %v1769 = vsub.f32 %v1633, %v1768
  %v1770 = vand.u32 %v1769, 4294901760
  %v1771 = vsub.f32 %v1769, %v1770
  %v1772 = vand.u32 %v1771, 4294901760
  %1773 = vmatpush1.msra.mxu0 %v1772
  %1774 = vmatprep.subr.mxu0 0.0
  %v1775 = vand.u32 %v1632, 4294901760
  %v1776 = vsub.f32 %v1632, %v1775
  %v1777 = vand.u32 %v1776, 4294901760
  %v1778 = vsub.f32 %v1776, %v1777
  %v1779 = vand.u32 %v1778, 4294901760
  %1780 = vmatpush1.msra.mxu0 %v1779
  %1781 = vmatprep.subr.mxu0 0.0
  %v1782 = vand.u32 %v1631, 4294901760
  %v1783 = vsub.f32 %v1631, %v1782
  %v1784 = vand.u32 %v1783, 4294901760
  %v1785 = vsub.f32 %v1783, %v1784
  %v1786 = vand.u32 %v1785, 4294901760
  %1787 = vmatpush1.msra.mxu0 %v1786
  %1788 = vmatprep.subr.mxu0 0.0
  %v1789 = vand.u32 %v1630, 4294901760
  %v1790 = vsub.f32 %v1630, %v1789
  %v1791 = vand.u32 %v1790, 4294901760
  %v1792 = vsub.f32 %v1790, %v1791
  %v1793 = vand.u32 %v1792, 4294901760
  %1794 = vmatpush1.msra.mxu0 %v1793
  %1795 = vmatprep.subr.mxu0 0.0
  %v1796 = vand.u32 %v1629, 4294901760
  %v1797 = vsub.f32 %v1629, %v1796
  %v1798 = vand.u32 %v1797, 4294901760
  %v1799 = vsub.f32 %v1797, %v1798
  %v1800 = vand.u32 %v1799, 4294901760
  %1801 = vmatpush1.msra.mxu0 %v1800
  %1802 = vmatprep.subr.mxu0 0.0
  %v1803 = vand.u32 %v1628, 4294901760
  %v1804 = vsub.f32 %v1628, %v1803
  %v1805 = vand.u32 %v1804, 4294901760
  %v1806 = vsub.f32 %v1804, %v1805
  %v1807 = vand.u32 %v1806, 4294901760
  %1808 = vmatpush1.msra.mxu0 %v1807
  %1809 = vmatprep.subr.mxu0 0.0
  %v1810 = vand.u32 %v1627, 4294901760
  %v1811 = vsub.f32 %v1627, %v1810
  %v1812 = vand.u32 %v1811, 4294901760
  %v1813 = vsub.f32 %v1811, %v1812
  %v1814 = vand.u32 %v1813, 4294901760
  %1815 = vmatpush1.msra.mxu0 %v1814
  %1816 = vmatprep.subr.mxu0 0.0
  %v1817 = vand.u32 %v1626, 4294901760
  %v1818 = vsub.f32 %v1626, %v1817
  %v1819 = vand.u32 %v1818, 4294901760
  %v1820 = vsub.f32 %v1818, %v1819
  %v1821 = vand.u32 %v1820, 4294901760
  %1822 = vmatpush1.msra.mxu0 %v1821
  %1823 = vmatprep.subr.mxu0 0.0
  %v1824 = vand.u32 %v1625, 4294901760
  %v1825 = vsub.f32 %v1625, %v1824
  %v1826 = vand.u32 %v1825, 4294901760
  %v1827 = vsub.f32 %v1825, %v1826
  %v1828 = vand.u32 %v1827, 4294901760
  %1829 = vmatpush1.msra.mxu0 %v1828
  %1830 = vmatprep.subr.mxu0 0.0
  %v1831 = vand.u32 %v1624, 4294901760
  %v1832 = vsub.f32 %v1624, %v1831
  %v1833 = vand.u32 %v1832, 4294901760
  %v1834 = vsub.f32 %v1832, %v1833
  %v1835 = vand.u32 %v1834, 4294901760
  %1836 = vmatpush1.msra.mxu0 %v1835
  %1837 = vmatprep.subr.mxu0 0.0
  %v1838 = vand.u32 %v1623, 4294901760
  %v1839 = vsub.f32 %v1623, %v1838
  %v1840 = vand.u32 %v1839, 4294901760
  %v1841 = vsub.f32 %v1839, %v1840
  %v1842 = vand.u32 %v1841, 4294901760
  %1843 = vmatpush1.msra.mxu0 %v1842
  %1844 = vmatprep.subr.mxu0 0.0
  %v1845 = vand.u32 %v1622, 4294901760
  %v1846 = vsub.f32 %v1622, %v1845
  %v1847 = vand.u32 %v1846, 4294901760
  %v1848 = vsub.f32 %v1846, %v1847
  %v1849 = vand.u32 %v1848, 4294901760
  %1850 = vmatpush1.msra.mxu0 %v1849
  %1851 = vmatprep.subr.mxu0 0.0
  %1852 = vmatpush2.msra.mxu0 0.0
  %1853 = vmatprep.subr.mxu0 0.0
  %1854 = vmatpush2.msra.mxu0 0.0
  %1855 = vmatprep.subr.mxu0 0.0
  %1856 = vmatpush2.msra.mxu0 0.0
  %1857 = vmatprep.subr.mxu0 0.0
  %1858 = vmatpush2.msra.mxu0 0.0
  %1859 = vmatprep.subr.mxu0 0.0
  %1860 = vmatpush2.msra.mxu0 0.0
  %1861 = vmatprep.subr.mxu0 0.0
  %1862 = vmatpush2.msra.mxu0 0.0
  %1863 = vmatprep.subr.mxu0 0.0
  %1864 = vmatpush2.msra.mxu0 0.0
  %1865 = vmatprep.subr.mxu0 0.0
  %1866 = vmatpush2.msra.mxu0 0.0
  %1867 = vmatprep.subr.mxu0 0.0
  %1868 = vmatpush2.msra.mxu0 0.0
  %1869 = vmatprep.subr.mxu0 0.0
  %1870 = vmatpush2.msra.mxu0 0.0
  %1871 = vmatprep.subr.mxu0 0.0
  %1872 = vmatpush2.msra.mxu0 0.0
  %1873 = vmatprep.subr.mxu0 0.0
  %1874 = vmatpush2.msra.mxu0 0.0
  %1875 = vmatprep.subr.mxu0 0.0
  %1876 = vmatpush2.msra.mxu0 0.0
  %1877 = vmatprep.subr.mxu0 0.0
  %1878 = vmatpush2.msra.mxu0 0.0
  %1879 = vmatprep.subr.mxu0 0.0
  %1880 = vmatpush2.msra.mxu0 0.0
  %1881 = vmatprep.subr.mxu0 0.0
  %1882 = vmatpush2.msra.mxu0 0.0
  %1883 = vmatprep.mubr.f32.mxu0 0.0
  %v1884 = vand.u32 %v1561, 4294901760
  %1885 = vmatmul.mubr.f32.gmra.mxu0 %v1884
  %v1886 = vpop.f32.mrf.mxu0
  %v1887 = vadd.f32 %v1726, %v1886
  %v1888 = vpop.f32.mrf.mxu0
  %1889 = vmatprep.mubr.f32.mxu0 0.0
  %v1890 = vand.u32 %v1562, 4294901760
  %1891 = vmatmul.mubr.f32.gmra.mxu0 %v1890
  %v1892 = vpop.f32.mrf.mxu0
  %v1893 = vadd.f32 %v1736, %v1892
  %v1894 = vpop.f32.mrf.mxu0
  %1895 = vdwg.mxu0
  %1896 = vmatprep.subr.mxu0 0.0
  %v1897 = vand.u32 %v1637, 4294901760
  %v1898 = vsub.f32 %v1637, %v1897
  %1899 = vmatpush1.msra.mxu0 %v1898
  %1900 = vmatprep.subr.mxu0 0.0
  %v1901 = vand.u32 %v1636, 4294901760
  %v1902 = vsub.f32 %v1636, %v1901
  %1903 = vmatpush1.msra.mxu0 %v1902
  %1904 = vmatprep.subr.mxu0 0.0
  %v1905 = vand.u32 %v1635, 4294901760
  %v1906 = vsub.f32 %v1635, %v1905
  %1907 = vmatpush1.msra.mxu0 %v1906
  %1908 = vmatprep.subr.mxu0 0.0
  %v1909 = vand.u32 %v1634, 4294901760
  %v1910 = vsub.f32 %v1634, %v1909
  %1911 = vmatpush1.msra.mxu0 %v1910
  %1912 = vmatprep.subr.mxu0 0.0
  %v1913 = vand.u32 %v1633, 4294901760
  %v1914 = vsub.f32 %v1633, %v1913
  %1915 = vmatpush1.msra.mxu0 %v1914
  %1916 = vmatprep.subr.mxu0 0.0
  %v1917 = vand.u32 %v1632, 4294901760
  %v1918 = vsub.f32 %v1632, %v1917
  %1919 = vmatpush1.msra.mxu0 %v1918
  %1920 = vmatprep.subr.mxu0 0.0
  %v1921 = vand.u32 %v1631, 4294901760
  %v1922 = vsub.f32 %v1631, %v1921
  %1923 = vmatpush1.msra.mxu0 %v1922
  %1924 = vmatprep.subr.mxu0 0.0
  %v1925 = vand.u32 %v1630, 4294901760
  %v1926 = vsub.f32 %v1630, %v1925
  %1927 = vmatpush1.msra.mxu0 %v1926
  %1928 = vmatprep.subr.mxu0 0.0
  %v1929 = vand.u32 %v1629, 4294901760
  %v1930 = vsub.f32 %v1629, %v1929
  %1931 = vmatpush1.msra.mxu0 %v1930
  %1932 = vmatprep.subr.mxu0 0.0
  %v1933 = vand.u32 %v1628, 4294901760
  %v1934 = vsub.f32 %v1628, %v1933
  %1935 = vmatpush1.msra.mxu0 %v1934
  %1936 = vmatprep.subr.mxu0 0.0
  %v1937 = vand.u32 %v1627, 4294901760
  %v1938 = vsub.f32 %v1627, %v1937
  %1939 = vmatpush1.msra.mxu0 %v1938
  %1940 = vmatprep.subr.mxu0 0.0
  %v1941 = vand.u32 %v1626, 4294901760
  %v1942 = vsub.f32 %v1626, %v1941
  %1943 = vmatpush1.msra.mxu0 %v1942
  %1944 = vmatprep.subr.mxu0 0.0
  %v1945 = vand.u32 %v1625, 4294901760
  %v1946 = vsub.f32 %v1625, %v1945
  %1947 = vmatpush1.msra.mxu0 %v1946
  %1948 = vmatprep.subr.mxu0 0.0
  %v1949 = vand.u32 %v1624, 4294901760
  %v1950 = vsub.f32 %v1624, %v1949
  %1951 = vmatpush1.msra.mxu0 %v1950
  %1952 = vmatprep.subr.mxu0 0.0
  %v1953 = vand.u32 %v1623, 4294901760
  %v1954 = vsub.f32 %v1623, %v1953
  %1955 = vmatpush1.msra.mxu0 %v1954
  %1956 = vmatprep.subr.mxu0 0.0
  %v1957 = vand.u32 %v1622, 4294901760
  %v1958 = vsub.f32 %v1622, %v1957
  %1959 = vmatpush1.msra.mxu0 %v1958
  %1960 = vmatprep.subr.mxu0 0.0
  %1961 = vmatpush2.msra.mxu0 0.0
  %1962 = vmatprep.subr.mxu0 0.0
  %1963 = vmatpush2.msra.mxu0 0.0
  %1964 = vmatprep.subr.mxu0 0.0
  %1965 = vmatpush2.msra.mxu0 0.0
  %1966 = vmatprep.subr.mxu0 0.0
  %1967 = vmatpush2.msra.mxu0 0.0
  %1968 = vmatprep.subr.mxu0 0.0
  %1969 = vmatpush2.msra.mxu0 0.0
  %1970 = vmatprep.subr.mxu0 0.0
  %1971 = vmatpush2.msra.mxu0 0.0
  %1972 = vmatprep.subr.mxu0 0.0
  %1973 = vmatpush2.msra.mxu0 0.0
  %1974 = vmatprep.subr.mxu0 0.0
  %1975 = vmatpush2.msra.mxu0 0.0
  %1976 = vmatprep.subr.mxu0 0.0
  %1977 = vmatpush2.msra.mxu0 0.0
  %1978 = vmatprep.subr.mxu0 0.0
  %1979 = vmatpush2.msra.mxu0 0.0
  %1980 = vmatprep.subr.mxu0 0.0
  %1981 = vmatpush2.msra.mxu0 0.0
  %1982 = vmatprep.subr.mxu0 0.0
  %1983 = vmatpush2.msra.mxu0 0.0
  %1984 = vmatprep.subr.mxu0 0.0
  %1985 = vmatpush2.msra.mxu0 0.0
  %1986 = vmatprep.subr.mxu0 0.0
  %1987 = vmatpush2.msra.mxu0 0.0
  %1988 = vmatprep.subr.mxu0 0.0
  %1989 = vmatpush2.msra.mxu0 0.0
  %1990 = vmatprep.subr.mxu0 0.0
  %1991 = vmatpush2.msra.mxu0 0.0
  %1992 = vmatprep.mubr.f32.mxu0 0.0
  %v1993 = vand.u32 %v1561, 4294901760
  %v1994 = vsub.f32 %v1561, %v1993
  %1995 = vmatmul.mubr.f32.gmra.mxu0 %v1994
  %v1996 = vpop.f32.mrf.mxu0
  %v1997 = vadd.f32 %v1887, %v1996
  %v1998 = vpop.f32.mrf.mxu0
  %1999 = vmatprep.mubr.f32.mxu0 0.0
  %v2000 = vand.u32 %v1562, 4294901760
  %v2001 = vsub.f32 %v1562, %v2000
  %2002 = vmatmul.mubr.f32.gmra.mxu0 %v2001
  %v2003 = vpop.f32.mrf.mxu0
  %v2004 = vadd.f32 %v1893, %v2003
  %v2005 = vpop.f32.mrf.mxu0
  %2006 = vdwg.mxu0
  %2007 = vmatprep.subr.mxu0 0.0
  %v2008 = vand.u32 %v1637, 4294901760
  %2009 = vmatpush1.msra.mxu0 %v2008
  %2010 = vmatprep.subr.mxu0 0.0
  %v2011 = vand.u32 %v1636, 4294901760
  %2012 = vmatpush1.msra.mxu0 %v2011
  %2013 = vmatprep.subr.mxu0 0.0
  %v2014 = vand.u32 %v1635, 4294901760
  %2015 = vmatpush1.msra.mxu0 %v2014
  %2016 = vmatprep.subr.mxu0 0.0
  %v2017 = vand.u32 %v1634, 4294901760
  %2018 = vmatpush1.msra.mxu0 %v2017
  %2019 = vmatprep.subr.mxu0 0.0
  %v2020 = vand.u32 %v1633, 4294901760
  %2021 = vmatpush1.msra.mxu0 %v2020
  %2022 = vmatprep.subr.mxu0 0.0
  %v2023 = vand.u32 %v1632, 4294901760
  %2024 = vmatpush1.msra.mxu0 %v2023
  %2025 = vmatprep.subr.mxu0 0.0
  %v2026 = vand.u32 %v1631, 4294901760
  %2027 = vmatpush1.msra.mxu0 %v2026
  %2028 = vmatprep.subr.mxu0 0.0
  %v2029 = vand.u32 %v1630, 4294901760
  %2030 = vmatpush1.msra.mxu0 %v2029
  %2031 = vmatprep.subr.mxu0 0.0
  %v2032 = vand.u32 %v1629, 4294901760
  %2033 = vmatpush1.msra.mxu0 %v2032
  %2034 = vmatprep.subr.mxu0 0.0
  %v2035 = vand.u32 %v1628, 4294901760
  %2036 = vmatpush1.msra.mxu0 %v2035
  %2037 = vmatprep.subr.mxu0 0.0
  %v2038 = vand.u32 %v1627, 4294901760
  %2039 = vmatpush1.msra.mxu0 %v2038
  %2040 = vmatprep.subr.mxu0 0.0
  %v2041 = vand.u32 %v1626, 4294901760
  %2042 = vmatpush1.msra.mxu0 %v2041
  %2043 = vmatprep.subr.mxu0 0.0
  %v2044 = vand.u32 %v1625, 4294901760
  %2045 = vmatpush1.msra.mxu0 %v2044
  %2046 = vmatprep.subr.mxu0 0.0
  %v2047 = vand.u32 %v1624, 4294901760
  %2048 = vmatpush1.msra.mxu0 %v2047
  %2049 = vmatprep.subr.mxu0 0.0
  %v2050 = vand.u32 %v1623, 4294901760
  %2051 = vmatpush1.msra.mxu0 %v2050
  %2052 = vmatprep.subr.mxu0 0.0
  %v2053 = vand.u32 %v1622, 4294901760
  %2054 = vmatpush1.msra.mxu0 %v2053
  %2055 = vmatprep.subr.mxu0 0.0
  %2056 = vmatpush2.msra.mxu0 0.0
  %2057 = vmatprep.subr.mxu0 0.0
  %2058 = vmatpush2.msra.mxu0 0.0
  %2059 = vmatprep.subr.mxu0 0.0
  %2060 = vmatpush2.msra.mxu0 0.0
  %2061 = vmatprep.subr.mxu0 0.0
  %2062 = vmatpush2.msra.mxu0 0.0
  %2063 = vmatprep.subr.mxu0 0.0
  %2064 = vmatpush2.msra.mxu0 0.0
  %2065 = vmatprep.subr.mxu0 0.0
  %2066 = vmatpush2.msra.mxu0 0.0
  %2067 = vmatprep.subr.mxu0 0.0
  %2068 = vmatpush2.msra.mxu0 0.0
  %2069 = vmatprep.subr.mxu0 0.0
  %2070 = vmatpush2.msra.mxu0 0.0
  %2071 = vmatprep.subr.mxu0 0.0
  %2072 = vmatpush2.msra.mxu0 0.0
  %2073 = vmatprep.subr.mxu0 0.0
  %2074 = vmatpush2.msra.mxu0 0.0
  %2075 = vmatprep.subr.mxu0 0.0
  %2076 = vmatpush2.msra.mxu0 0.0
  %2077 = vmatprep.subr.mxu0 0.0
  %2078 = vmatpush2.msra.mxu0 0.0
  %2079 = vmatprep.subr.mxu0 0.0
  %2080 = vmatpush2.msra.mxu0 0.0
  %2081 = vmatprep.subr.mxu0 0.0
  %2082 = vmatpush2.msra.mxu0 0.0
  %2083 = vmatprep.subr.mxu0 0.0
  %2084 = vmatpush2.msra.mxu0 0.0
  %2085 = vmatprep.subr.mxu0 0.0
  %2086 = vmatpush2.msra.mxu0 0.0
  %2087 = vmatprep.mubr.f32.mxu0 0.0
  %v2088 = vand.u32 %v1561, 4294901760
  %v2089 = vsub.f32 %v1561, %v2088
  %v2090 = vand.u32 %v2089, 4294901760
  %2091 = vmatmul.mubr.f32.gmra.mxu0 %v2090
  %v2092 = vpop.f32.mrf.mxu0
  %v2093 = vadd.f32 %v1997, %v2092
  %v2094 = vpop.f32.mrf.mxu0
  %2095 = vmatprep.mubr.f32.mxu0 0.0
  %v2096 = vand.u32 %v1562, 4294901760
  %v2097 = vsub.f32 %v1562, %v2096
  %v2098 = vand.u32 %v2097, 4294901760
  %2099 = vmatmul.mubr.f32.gmra.mxu0 %v2098
  %v2100 = vpop.f32.mrf.mxu0
  %v2101 = vadd.f32 %v2004, %v2100
  %v2102 = vpop.f32.mrf.mxu0
  %2103 = vdwg.mxu0
  %2104 = vmatprep.subr.mxu0 0.0
  %v2105 = vand.u32 %v1637, 4294901760
  %v2106 = vsub.f32 %v1637, %v2105
  %v2107 = vand.u32 %v2106, 4294901760
  %2108 = vmatpush1.msra.mxu0 %v2107
  %2109 = vmatprep.subr.mxu0 0.0
  %v2110 = vand.u32 %v1636, 4294901760
  %v2111 = vsub.f32 %v1636, %v2110
  %v2112 = vand.u32 %v2111, 4294901760
  %2113 = vmatpush1.msra.mxu0 %v2112
  %2114 = vmatprep.subr.mxu0 0.0
  %v2115 = vand.u32 %v1635, 4294901760
  %v2116 = vsub.f32 %v1635, %v2115
  %v2117 = vand.u32 %v2116, 4294901760
  %2118 = vmatpush1.msra.mxu0 %v2117
  %2119 = vmatprep.subr.mxu0 0.0
  %v2120 = vand.u32 %v1634, 4294901760
  %v2121 = vsub.f32 %v1634, %v2120
  %v2122 = vand.u32 %v2121, 4294901760
  %2123 = vmatpush1.msra.mxu0 %v2122
  %2124 = vmatprep.subr.mxu0 0.0
  %v2125 = vand.u32 %v1633, 4294901760
  %v2126 = vsub.f32 %v1633, %v2125
  %v2127 = vand.u32 %v2126, 4294901760
  %2128 = vmatpush1.msra.mxu0 %v2127
  %2129 = vmatprep.subr.mxu0 0.0
  %v2130 = vand.u32 %v1632, 4294901760
  %v2131 = vsub.f32 %v1632, %v2130
  %v2132 = vand.u32 %v2131, 4294901760
  %2133 = vmatpush1.msra.mxu0 %v2132
  %2134 = vmatprep.subr.mxu0 0.0
  %v2135 = vand.u32 %v1631, 4294901760
  %v2136 = vsub.f32 %v1631, %v2135
  %v2137 = vand.u32 %v2136, 4294901760
  %2138 = vmatpush1.msra.mxu0 %v2137
  %2139 = vmatprep.subr.mxu0 0.0
  %v2140 = vand.u32 %v1630, 4294901760
  %v2141 = vsub.f32 %v1630, %v2140
  %v2142 = vand.u32 %v2141, 4294901760
  %2143 = vmatpush1.msra.mxu0 %v2142
  %2144 = vmatprep.subr.mxu0 0.0
  %v2145 = vand.u32 %v1629, 4294901760
  %v2146 = vsub.f32 %v1629, %v2145
  %v2147 = vand.u32 %v2146, 4294901760
  %2148 = vmatpush1.msra.mxu0 %v2147
  %2149 = vmatprep.subr.mxu0 0.0
  %v2150 = vand.u32 %v1628, 4294901760
  %v2151 = vsub.f32 %v1628, %v2150
  %v2152 = vand.u32 %v2151, 4294901760
  %2153 = vmatpush1.msra.mxu0 %v2152
  %2154 = vmatprep.subr.mxu0 0.0
  %v2155 = vand.u32 %v1627, 4294901760
  %v2156 = vsub.f32 %v1627, %v2155
  %v2157 = vand.u32 %v2156, 4294901760
  %2158 = vmatpush1.msra.mxu0 %v2157
  %2159 = vmatprep.subr.mxu0 0.0
  %v2160 = vand.u32 %v1626, 4294901760
  %v2161 = vsub.f32 %v1626, %v2160
  %v2162 = vand.u32 %v2161, 4294901760
  %2163 = vmatpush1.msra.mxu0 %v2162
  %2164 = vmatprep.subr.mxu0 0.0
  %v2165 = vand.u32 %v1625, 4294901760
  %v2166 = vsub.f32 %v1625, %v2165
  %v2167 = vand.u32 %v2166, 4294901760
  %2168 = vmatpush1.msra.mxu0 %v2167
  %2169 = vmatprep.subr.mxu0 0.0
  %v2170 = vand.u32 %v1624, 4294901760
  %v2171 = vsub.f32 %v1624, %v2170
  %v2172 = vand.u32 %v2171, 4294901760
  %2173 = vmatpush1.msra.mxu0 %v2172
  %2174 = vmatprep.subr.mxu0 0.0
  %v2175 = vand.u32 %v1623, 4294901760
  %v2176 = vsub.f32 %v1623, %v2175
  %v2177 = vand.u32 %v2176, 4294901760
  %2178 = vmatpush1.msra.mxu0 %v2177
  %2179 = vmatprep.subr.mxu0 0.0
  %v2180 = vand.u32 %v1622, 4294901760
  %v2181 = vsub.f32 %v1622, %v2180
  %v2182 = vand.u32 %v2181, 4294901760
  %2183 = vmatpush1.msra.mxu0 %v2182
  %2184 = vmatprep.subr.mxu0 0.0
  %2185 = vmatpush2.msra.mxu0 0.0
  %2186 = vmatprep.subr.mxu0 0.0
  %2187 = vmatpush2.msra.mxu0 0.0
  %2188 = vmatprep.subr.mxu0 0.0
  %2189 = vmatpush2.msra.mxu0 0.0
  %2190 = vmatprep.subr.mxu0 0.0
  %2191 = vmatpush2.msra.mxu0 0.0
  %2192 = vmatprep.subr.mxu0 0.0
  %2193 = vmatpush2.msra.mxu0 0.0
  %2194 = vmatprep.subr.mxu0 0.0
  %2195 = vmatpush2.msra.mxu0 0.0
  %2196 = vmatprep.subr.mxu0 0.0
  %2197 = vmatpush2.msra.mxu0 0.0
  %2198 = vmatprep.subr.mxu0 0.0
  %2199 = vmatpush2.msra.mxu0 0.0
  %2200 = vmatprep.subr.mxu0 0.0
  %2201 = vmatpush2.msra.mxu0 0.0
  %2202 = vmatprep.subr.mxu0 0.0
  %2203 = vmatpush2.msra.mxu0 0.0
  %2204 = vmatprep.subr.mxu0 0.0
  %2205 = vmatpush2.msra.mxu0 0.0
  %2206 = vmatprep.subr.mxu0 0.0
  %2207 = vmatpush2.msra.mxu0 0.0
  %2208 = vmatprep.subr.mxu0 0.0
  %2209 = vmatpush2.msra.mxu0 0.0
  %2210 = vmatprep.subr.mxu0 0.0
  %2211 = vmatpush2.msra.mxu0 0.0
  %2212 = vmatprep.subr.mxu0 0.0
  %2213 = vmatpush2.msra.mxu0 0.0
  %2214 = vmatprep.subr.mxu0 0.0
  %2215 = vmatpush2.msra.mxu0 0.0
  %2216 = vmatprep.mubr.f32.mxu0 0.0
  %v2217 = vand.u32 %v1561, 4294901760
  %2218 = vmatmul.mubr.f32.gmra.mxu0 %v2217
  %v2219 = vpop.f32.mrf.mxu0
  %v2220 = vadd.f32 %v2093, %v2219
  %v2221 = vpop.f32.mrf.mxu0
  %2222 = vmatprep.mubr.f32.mxu0 0.0
  %v2223 = vand.u32 %v1562, 4294901760
  %2224 = vmatmul.mubr.f32.gmra.mxu0 %v2223
  %v2225 = vpop.f32.mrf.mxu0
  %v2226 = vadd.f32 %v2101, %v2225
  %v2227 = vpop.f32.mrf.mxu0
  %2228 = vdwg.mxu0
  %2229 = vmatprep.subr.mxu0 0.0
  %v2230 = vand.u32 %v1637, 4294901760
  %2231 = vmatpush1.msra.mxu0 %v2230
  %2232 = vmatprep.subr.mxu0 0.0
  %v2233 = vand.u32 %v1636, 4294901760
  %2234 = vmatpush1.msra.mxu0 %v2233
  %2235 = vmatprep.subr.mxu0 0.0
  %v2236 = vand.u32 %v1635, 4294901760
  %2237 = vmatpush1.msra.mxu0 %v2236
  %2238 = vmatprep.subr.mxu0 0.0
  %v2239 = vand.u32 %v1634, 4294901760
  %2240 = vmatpush1.msra.mxu0 %v2239
  %2241 = vmatprep.subr.mxu0 0.0
  %v2242 = vand.u32 %v1633, 4294901760
  %2243 = vmatpush1.msra.mxu0 %v2242
  %2244 = vmatprep.subr.mxu0 0.0
  %v2245 = vand.u32 %v1632, 4294901760
  %2246 = vmatpush1.msra.mxu0 %v2245
  %2247 = vmatprep.subr.mxu0 0.0
  %v2248 = vand.u32 %v1631, 4294901760
  %2249 = vmatpush1.msra.mxu0 %v2248
  %2250 = vmatprep.subr.mxu0 0.0
  %v2251 = vand.u32 %v1630, 4294901760
  %2252 = vmatpush1.msra.mxu0 %v2251
  %2253 = vmatprep.subr.mxu0 0.0
  %v2254 = vand.u32 %v1629, 4294901760
  %2255 = vmatpush1.msra.mxu0 %v2254
  %2256 = vmatprep.subr.mxu0 0.0
  %v2257 = vand.u32 %v1628, 4294901760
  %2258 = vmatpush1.msra.mxu0 %v2257
  %2259 = vmatprep.subr.mxu0 0.0
  %v2260 = vand.u32 %v1627, 4294901760
  %2261 = vmatpush1.msra.mxu0 %v2260
  %2262 = vmatprep.subr.mxu0 0.0
  %v2263 = vand.u32 %v1626, 4294901760
  %2264 = vmatpush1.msra.mxu0 %v2263
  %2265 = vmatprep.subr.mxu0 0.0
  %v2266 = vand.u32 %v1625, 4294901760
  %2267 = vmatpush1.msra.mxu0 %v2266
  %2268 = vmatprep.subr.mxu0 0.0
  %v2269 = vand.u32 %v1624, 4294901760
  %2270 = vmatpush1.msra.mxu0 %v2269
  %2271 = vmatprep.subr.mxu0 0.0
  %v2272 = vand.u32 %v1623, 4294901760
  %2273 = vmatpush1.msra.mxu0 %v2272
  %2274 = vmatprep.subr.mxu0 0.0
  %v2275 = vand.u32 %v1622, 4294901760
  %2276 = vmatpush1.msra.mxu0 %v2275
  %2277 = vmatprep.subr.mxu0 0.0
  %2278 = vmatpush2.msra.mxu0 0.0
  %2279 = vmatprep.subr.mxu0 0.0
  %2280 = vmatpush2.msra.mxu0 0.0
  %2281 = vmatprep.subr.mxu0 0.0
  %2282 = vmatpush2.msra.mxu0 0.0
  %2283 = vmatprep.subr.mxu0 0.0
  %2284 = vmatpush2.msra.mxu0 0.0
  %2285 = vmatprep.subr.mxu0 0.0
  %2286 = vmatpush2.msra.mxu0 0.0
  %2287 = vmatprep.subr.mxu0 0.0
  %2288 = vmatpush2.msra.mxu0 0.0
  %2289 = vmatprep.subr.mxu0 0.0
  %2290 = vmatpush2.msra.mxu0 0.0
  %2291 = vmatprep.subr.mxu0 0.0
  %2292 = vmatpush2.msra.mxu0 0.0
  %2293 = vmatprep.subr.mxu0 0.0
  %2294 = vmatpush2.msra.mxu0 0.0
  %2295 = vmatprep.subr.mxu0 0.0
  %2296 = vmatpush2.msra.mxu0 0.0
  %2297 = vmatprep.subr.mxu0 0.0
  %2298 = vmatpush2.msra.mxu0 0.0
  %2299 = vmatprep.subr.mxu0 0.0
  %2300 = vmatpush2.msra.mxu0 0.0
  %2301 = vmatprep.subr.mxu0 0.0
  %2302 = vmatpush2.msra.mxu0 0.0
  %2303 = vmatprep.subr.mxu0 0.0
  %2304 = vmatpush2.msra.mxu0 0.0
  %2305 = vmatprep.subr.mxu0 0.0
  %2306 = vmatpush2.msra.mxu0 0.0
  %2307 = vmatprep.subr.mxu0 0.0
  %2308 = vmatpush2.msra.mxu0 0.0
  %2309 = vmatprep.mubr.f32.mxu0 0.0
  %v2310 = vand.u32 %v1561, 4294901760
  %2311 = vmatmul.mubr.f32.gmra.mxu0 %v2310
  %v2312 = vpop.f32.mrf.mxu0
  %v2313 = vadd.f32 %v2220, %v2312
  %v2314 = vpop.f32.mrf.mxu0
  %2315 = vmatprep.mubr.f32.mxu0 0.0
  %v2316 = vand.u32 %v1562, 4294901760
  %2317 = vmatmul.mubr.f32.gmra.mxu0 %v2316
  %v2318 = vpop.f32.mrf.mxu0
  %v2319 = vadd.f32 %v2226, %v2318
  %v2320 = vpop.f32.mrf.mxu0
  %2321 = vdwg.mxu0
  %2322 = vmatprep.subr.mxu0 0.0
  %v2323 = vand.u32 %v1620, 4294901760
  %2324 = vmatpush1.msra.mxu0 %v2323
  %2325 = vmatprep.subr.mxu0 0.0
  %v2326 = vand.u32 %v1619, 4294901760
  %2327 = vmatpush1.msra.mxu0 %v2326
  %2328 = vmatprep.subr.mxu0 0.0
  %v2329 = vand.u32 %v1618, 4294901760
  %2330 = vmatpush1.msra.mxu0 %v2329
  %2331 = vmatprep.subr.mxu0 0.0
  %v2332 = vand.u32 %v1617, 4294901760
  %2333 = vmatpush1.msra.mxu0 %v2332
  %2334 = vmatprep.subr.mxu0 0.0
  %v2335 = vand.u32 %v1616, 4294901760
  %2336 = vmatpush1.msra.mxu0 %v2335
  %2337 = vmatprep.subr.mxu0 0.0
  %v2338 = vand.u32 %v1615, 4294901760
  %2339 = vmatpush1.msra.mxu0 %v2338
  %2340 = vmatprep.subr.mxu0 0.0
  %v2341 = vand.u32 %v1614, 4294901760
  %2342 = vmatpush1.msra.mxu0 %v2341
  %2343 = vmatprep.subr.mxu0 0.0
  %v2344 = vand.u32 %v1613, 4294901760
  %2345 = vmatpush1.msra.mxu0 %v2344
  %2346 = vmatprep.subr.mxu0 0.0
  %v2347 = vand.u32 %v1612, 4294901760
  %2348 = vmatpush1.msra.mxu0 %v2347
  %2349 = vmatprep.subr.mxu0 0.0
  %v2350 = vand.u32 %v1611, 4294901760
  %2351 = vmatpush1.msra.mxu0 %v2350
  %2352 = vmatprep.subr.mxu0 0.0
  %v2353 = vand.u32 %v1610, 4294901760
  %2354 = vmatpush1.msra.mxu0 %v2353
  %2355 = vmatprep.subr.mxu0 0.0
  %v2356 = vand.u32 %v1609, 4294901760
  %2357 = vmatpush1.msra.mxu0 %v2356
  %2358 = vmatprep.subr.mxu0 0.0
  %v2359 = vand.u32 %v1608, 4294901760
  %2360 = vmatpush1.msra.mxu0 %v2359
  %2361 = vmatprep.subr.mxu0 0.0
  %v2362 = vand.u32 %v1607, 4294901760
  %2363 = vmatpush1.msra.mxu0 %v2362
  %2364 = vmatprep.subr.mxu0 0.0
  %v2365 = vand.u32 %v1606, 4294901760
  %2366 = vmatpush1.msra.mxu0 %v2365
  %2367 = vmatprep.subr.mxu0 0.0
  %v2368 = vand.u32 %v1605, 4294901760
  %2369 = vmatpush1.msra.mxu0 %v2368
  %2370 = vmatprep.subr.mxu0 0.0
  %2371 = vmatpush2.msra.mxu0 0.0
  %2372 = vmatprep.subr.mxu0 0.0
  %2373 = vmatpush2.msra.mxu0 0.0
  %2374 = vmatprep.subr.mxu0 0.0
  %2375 = vmatpush2.msra.mxu0 0.0
  %2376 = vmatprep.subr.mxu0 0.0
  %2377 = vmatpush2.msra.mxu0 0.0
  %2378 = vmatprep.subr.mxu0 0.0
  %2379 = vmatpush2.msra.mxu0 0.0
  %2380 = vmatprep.subr.mxu0 0.0
  %2381 = vmatpush2.msra.mxu0 0.0
  %2382 = vmatprep.subr.mxu0 0.0
  %2383 = vmatpush2.msra.mxu0 0.0
  %2384 = vmatprep.subr.mxu0 0.0
  %2385 = vmatpush2.msra.mxu0 0.0
  %2386 = vmatprep.subr.mxu0 0.0
  %2387 = vmatpush2.msra.mxu0 0.0
  %2388 = vmatprep.subr.mxu0 0.0
  %2389 = vmatpush2.msra.mxu0 0.0
  %2390 = vmatprep.subr.mxu0 0.0
  %2391 = vmatpush2.msra.mxu0 0.0
  %2392 = vmatprep.subr.mxu0 0.0
  %2393 = vmatpush2.msra.mxu0 0.0
  %2394 = vmatprep.subr.mxu0 0.0
  %2395 = vmatpush2.msra.mxu0 0.0
  %2396 = vmatprep.subr.mxu0 0.0
  %2397 = vmatpush2.msra.mxu0 0.0
  %2398 = vmatprep.subr.mxu0 0.0
  %2399 = vmatpush2.msra.mxu0 0.0
  %2400 = vmatprep.subr.mxu0 0.0
  %2401 = vmatpush2.msra.mxu0 0.0
  %2402 = vmatprep.mubr.f32.mxu0 0.0
  %v2403 = vand.u32 %v1595, 4294901760
  %v2404 = vsub.f32 %v1595, %v2403
  %v2405 = vand.u32 %v2404, 4294901760
  %v2406 = vsub.f32 %v2404, %v2405
  %v2407 = vand.u32 %v2406, 4294901760
  %2408 = vmatmul.mubr.f32.gmra.mxu0 %v2407
  %v2409 = vpop.f32.mrf.mxu0
  %v2410 = vadd.f32 %v2313, %v2409
  %v2411 = vpop.f32.mrf.mxu0
  %2412 = vmatprep.mubr.f32.mxu0 0.0
  %v2413 = vand.u32 %v1596, 4294901760
  %v2414 = vsub.f32 %v1596, %v2413
  %v2415 = vand.u32 %v2414, 4294901760
  %v2416 = vsub.f32 %v2414, %v2415
  %v2417 = vand.u32 %v2416, 4294901760
  %2418 = vmatmul.mubr.f32.gmra.mxu0 %v2417
  %v2419 = vpop.f32.mrf.mxu0
  %v2420 = vadd.f32 %v2319, %v2419
  %v2421 = vpop.f32.mrf.mxu0
  %2422 = vdwg.mxu0
  %2423 = vmatprep.subr.mxu0 0.0
  %v2424 = vand.u32 %v1620, 4294901760
  %v2425 = vsub.f32 %v1620, %v2424
  %v2426 = vand.u32 %v2425, 4294901760
  %v2427 = vsub.f32 %v2425, %v2426
  %v2428 = vand.u32 %v2427, 4294901760
  %2429 = vmatpush1.msra.mxu0 %v2428
  %2430 = vmatprep.subr.mxu0 0.0
  %v2431 = vand.u32 %v1619, 4294901760
  %v2432 = vsub.f32 %v1619, %v2431
  %v2433 = vand.u32 %v2432, 4294901760
  %v2434 = vsub.f32 %v2432, %v2433
  %v2435 = vand.u32 %v2434, 4294901760
  %2436 = vmatpush1.msra.mxu0 %v2435
  %2437 = vmatprep.subr.mxu0 0.0
  %v2438 = vand.u32 %v1618, 4294901760
  %v2439 = vsub.f32 %v1618, %v2438
  %v2440 = vand.u32 %v2439, 4294901760
  %v2441 = vsub.f32 %v2439, %v2440
  %v2442 = vand.u32 %v2441, 4294901760
  %2443 = vmatpush1.msra.mxu0 %v2442
  %2444 = vmatprep.subr.mxu0 0.0
  %v2445 = vand.u32 %v1617, 4294901760
  %v2446 = vsub.f32 %v1617, %v2445
  %v2447 = vand.u32 %v2446, 4294901760
  %v2448 = vsub.f32 %v2446, %v2447
  %v2449 = vand.u32 %v2448, 4294901760
  %2450 = vmatpush1.msra.mxu0 %v2449
  %2451 = vmatprep.subr.mxu0 0.0
  %v2452 = vand.u32 %v1616, 4294901760
  %v2453 = vsub.f32 %v1616, %v2452
  %v2454 = vand.u32 %v2453, 4294901760
  %v2455 = vsub.f32 %v2453, %v2454
  %v2456 = vand.u32 %v2455, 4294901760
  %2457 = vmatpush1.msra.mxu0 %v2456
  %2458 = vmatprep.subr.mxu0 0.0
  %v2459 = vand.u32 %v1615, 4294901760
  %v2460 = vsub.f32 %v1615, %v2459
  %v2461 = vand.u32 %v2460, 4294901760
  %v2462 = vsub.f32 %v2460, %v2461
  %v2463 = vand.u32 %v2462, 4294901760
  %2464 = vmatpush1.msra.mxu0 %v2463
  %2465 = vmatprep.subr.mxu0 0.0
  %v2466 = vand.u32 %v1614, 4294901760
  %v2467 = vsub.f32 %v1614, %v2466
  %v2468 = vand.u32 %v2467, 4294901760
  %v2469 = vsub.f32 %v2467, %v2468
  %v2470 = vand.u32 %v2469, 4294901760
  %2471 = vmatpush1.msra.mxu0 %v2470
  %2472 = vmatprep.subr.mxu0 0.0
  %v2473 = vand.u32 %v1613, 4294901760
  %v2474 = vsub.f32 %v1613, %v2473
  %v2475 = vand.u32 %v2474, 4294901760
  %v2476 = vsub.f32 %v2474, %v2475
  %v2477 = vand.u32 %v2476, 4294901760
  %2478 = vmatpush1.msra.mxu0 %v2477
  %2479 = vmatprep.subr.mxu0 0.0
  %v2480 = vand.u32 %v1612, 4294901760
  %v2481 = vsub.f32 %v1612, %v2480
  %v2482 = vand.u32 %v2481, 4294901760
  %v2483 = vsub.f32 %v2481, %v2482
  %v2484 = vand.u32 %v2483, 4294901760
  %2485 = vmatpush1.msra.mxu0 %v2484
  %2486 = vmatprep.subr.mxu0 0.0
  %v2487 = vand.u32 %v1611, 4294901760
  %v2488 = vsub.f32 %v1611, %v2487
  %v2489 = vand.u32 %v2488, 4294901760
  %v2490 = vsub.f32 %v2488, %v2489
  %v2491 = vand.u32 %v2490, 4294901760
  %2492 = vmatpush1.msra.mxu0 %v2491
  %2493 = vmatprep.subr.mxu0 0.0
  %v2494 = vand.u32 %v1610, 4294901760
  %v2495 = vsub.f32 %v1610, %v2494
  %v2496 = vand.u32 %v2495, 4294901760
  %v2497 = vsub.f32 %v2495, %v2496
  %v2498 = vand.u32 %v2497, 4294901760
  %2499 = vmatpush1.msra.mxu0 %v2498
  %2500 = vmatprep.subr.mxu0 0.0
  %v2501 = vand.u32 %v1609, 4294901760
  %v2502 = vsub.f32 %v1609, %v2501
  %v2503 = vand.u32 %v2502, 4294901760
  %v2504 = vsub.f32 %v2502, %v2503
  %v2505 = vand.u32 %v2504, 4294901760
  %2506 = vmatpush1.msra.mxu0 %v2505
  %2507 = vmatprep.subr.mxu0 0.0
  %v2508 = vand.u32 %v1608, 4294901760
  %v2509 = vsub.f32 %v1608, %v2508
  %v2510 = vand.u32 %v2509, 4294901760
  %v2511 = vsub.f32 %v2509, %v2510
  %v2512 = vand.u32 %v2511, 4294901760
  %2513 = vmatpush1.msra.mxu0 %v2512
  %2514 = vmatprep.subr.mxu0 0.0
  %v2515 = vand.u32 %v1607, 4294901760
  %v2516 = vsub.f32 %v1607, %v2515
  %v2517 = vand.u32 %v2516, 4294901760
  %v2518 = vsub.f32 %v2516, %v2517
  %v2519 = vand.u32 %v2518, 4294901760
  %2520 = vmatpush1.msra.mxu0 %v2519
  %2521 = vmatprep.subr.mxu0 0.0
  %v2522 = vand.u32 %v1606, 4294901760
  %v2523 = vsub.f32 %v1606, %v2522
  %v2524 = vand.u32 %v2523, 4294901760
  %v2525 = vsub.f32 %v2523, %v2524
  %v2526 = vand.u32 %v2525, 4294901760
  %2527 = vmatpush1.msra.mxu0 %v2526
  %2528 = vmatprep.subr.mxu0 0.0
  %v2529 = vand.u32 %v1605, 4294901760
  %v2530 = vsub.f32 %v1605, %v2529
  %v2531 = vand.u32 %v2530, 4294901760
  %v2532 = vsub.f32 %v2530, %v2531
  %v2533 = vand.u32 %v2532, 4294901760
  %2534 = vmatpush1.msra.mxu0 %v2533
  %2535 = vmatprep.subr.mxu0 0.0
  %2536 = vmatpush2.msra.mxu0 0.0
  %2537 = vmatprep.subr.mxu0 0.0
  %2538 = vmatpush2.msra.mxu0 0.0
  %2539 = vmatprep.subr.mxu0 0.0
  %2540 = vmatpush2.msra.mxu0 0.0
  %2541 = vmatprep.subr.mxu0 0.0
  %2542 = vmatpush2.msra.mxu0 0.0
  %2543 = vmatprep.subr.mxu0 0.0
  %2544 = vmatpush2.msra.mxu0 0.0
  %2545 = vmatprep.subr.mxu0 0.0
  %2546 = vmatpush2.msra.mxu0 0.0
  %2547 = vmatprep.subr.mxu0 0.0
  %2548 = vmatpush2.msra.mxu0 0.0
  %2549 = vmatprep.subr.mxu0 0.0
  %2550 = vmatpush2.msra.mxu0 0.0
  %2551 = vmatprep.subr.mxu0 0.0
  %2552 = vmatpush2.msra.mxu0 0.0
  %2553 = vmatprep.subr.mxu0 0.0
  %2554 = vmatpush2.msra.mxu0 0.0
  %2555 = vmatprep.subr.mxu0 0.0
  %2556 = vmatpush2.msra.mxu0 0.0
  %2557 = vmatprep.subr.mxu0 0.0
  %2558 = vmatpush2.msra.mxu0 0.0
  %2559 = vmatprep.subr.mxu0 0.0
  %2560 = vmatpush2.msra.mxu0 0.0
  %2561 = vmatprep.subr.mxu0 0.0
  %2562 = vmatpush2.msra.mxu0 0.0
  %2563 = vmatprep.subr.mxu0 0.0
  %2564 = vmatpush2.msra.mxu0 0.0
  %2565 = vmatprep.subr.mxu0 0.0
  %2566 = vmatpush2.msra.mxu0 0.0
  %2567 = vmatprep.mubr.f32.mxu0 0.0
  %v2568 = vand.u32 %v1595, 4294901760
  %2569 = vmatmul.mubr.f32.gmra.mxu0 %v2568
  %v2570 = vpop.f32.mrf.mxu0
  %v2571 = vadd.f32 %v2410, %v2570
  %v2572 = vpop.f32.mrf.mxu0
  %2573 = vmatprep.mubr.f32.mxu0 0.0
  %v2574 = vand.u32 %v1596, 4294901760
  %2575 = vmatmul.mubr.f32.gmra.mxu0 %v2574
  %v2576 = vpop.f32.mrf.mxu0
  %v2577 = vadd.f32 %v2420, %v2576
  %v2578 = vpop.f32.mrf.mxu0
  %2579 = vdwg.mxu0
  %2580 = vmatprep.subr.mxu0 0.0
  %v2581 = vand.u32 %v1620, 4294901760
  %v2582 = vsub.f32 %v1620, %v2581
  %2583 = vmatpush1.msra.mxu0 %v2582
  %2584 = vmatprep.subr.mxu0 0.0
  %v2585 = vand.u32 %v1619, 4294901760
  %v2586 = vsub.f32 %v1619, %v2585
  %2587 = vmatpush1.msra.mxu0 %v2586
  %2588 = vmatprep.subr.mxu0 0.0
  %v2589 = vand.u32 %v1618, 4294901760
  %v2590 = vsub.f32 %v1618, %v2589
  %2591 = vmatpush1.msra.mxu0 %v2590
  %2592 = vmatprep.subr.mxu0 0.0
  %v2593 = vand.u32 %v1617, 4294901760
  %v2594 = vsub.f32 %v1617, %v2593
  %2595 = vmatpush1.msra.mxu0 %v2594
  %2596 = vmatprep.subr.mxu0 0.0
  %v2597 = vand.u32 %v1616, 4294901760
  %v2598 = vsub.f32 %v1616, %v2597
  %2599 = vmatpush1.msra.mxu0 %v2598
  %2600 = vmatprep.subr.mxu0 0.0
  %v2601 = vand.u32 %v1615, 4294901760
  %v2602 = vsub.f32 %v1615, %v2601
  %2603 = vmatpush1.msra.mxu0 %v2602
  %2604 = vmatprep.subr.mxu0 0.0
  %v2605 = vand.u32 %v1614, 4294901760
  %v2606 = vsub.f32 %v1614, %v2605
  %2607 = vmatpush1.msra.mxu0 %v2606
  %2608 = vmatprep.subr.mxu0 0.0
  %v2609 = vand.u32 %v1613, 4294901760
  %v2610 = vsub.f32 %v1613, %v2609
  %2611 = vmatpush1.msra.mxu0 %v2610
  %2612 = vmatprep.subr.mxu0 0.0
  %v2613 = vand.u32 %v1612, 4294901760
  %v2614 = vsub.f32 %v1612, %v2613
  %2615 = vmatpush1.msra.mxu0 %v2614
  %2616 = vmatprep.subr.mxu0 0.0
  %v2617 = vand.u32 %v1611, 4294901760
  %v2618 = vsub.f32 %v1611, %v2617
  %2619 = vmatpush1.msra.mxu0 %v2618
  %2620 = vmatprep.subr.mxu0 0.0
  %v2621 = vand.u32 %v1610, 4294901760
  %v2622 = vsub.f32 %v1610, %v2621
  %2623 = vmatpush1.msra.mxu0 %v2622
  %2624 = vmatprep.subr.mxu0 0.0
  %v2625 = vand.u32 %v1609, 4294901760
  %v2626 = vsub.f32 %v1609, %v2625
  %2627 = vmatpush1.msra.mxu0 %v2626
  %2628 = vmatprep.subr.mxu0 0.0
  %v2629 = vand.u32 %v1608, 4294901760
  %v2630 = vsub.f32 %v1608, %v2629
  %2631 = vmatpush1.msra.mxu0 %v2630
  %2632 = vmatprep.subr.mxu0 0.0
  %v2633 = vand.u32 %v1607, 4294901760
  %v2634 = vsub.f32 %v1607, %v2633
  %2635 = vmatpush1.msra.mxu0 %v2634
  %2636 = vmatprep.subr.mxu0 0.0
  %v2637 = vand.u32 %v1606, 4294901760
  %v2638 = vsub.f32 %v1606, %v2637
  %2639 = vmatpush1.msra.mxu0 %v2638
  %2640 = vmatprep.subr.mxu0 0.0
  %v2641 = vand.u32 %v1605, 4294901760
  %v2642 = vsub.f32 %v1605, %v2641
  %2643 = vmatpush1.msra.mxu0 %v2642
  %2644 = vmatprep.subr.mxu0 0.0
  %2645 = vmatpush2.msra.mxu0 0.0
  %2646 = vmatprep.subr.mxu0 0.0
  %2647 = vmatpush2.msra.mxu0 0.0
  %2648 = vmatprep.subr.mxu0 0.0
  %2649 = vmatpush2.msra.mxu0 0.0
  %2650 = vmatprep.subr.mxu0 0.0
  %2651 = vmatpush2.msra.mxu0 0.0
  %2652 = vmatprep.subr.mxu0 0.0
  %2653 = vmatpush2.msra.mxu0 0.0
  %2654 = vmatprep.subr.mxu0 0.0
  %2655 = vmatpush2.msra.mxu0 0.0
  %2656 = vmatprep.subr.mxu0 0.0
  %2657 = vmatpush2.msra.mxu0 0.0
  %2658 = vmatprep.subr.mxu0 0.0
  %2659 = vmatpush2.msra.mxu0 0.0
  %2660 = vmatprep.subr.mxu0 0.0
  %2661 = vmatpush2.msra.mxu0 0.0
  %2662 = vmatprep.subr.mxu0 0.0
  %2663 = vmatpush2.msra.mxu0 0.0
  %2664 = vmatprep.subr.mxu0 0.0
  %2665 = vmatpush2.msra.mxu0 0.0
  %2666 = vmatprep.subr.mxu0 0.0
  %2667 = vmatpush2.msra.mxu0 0.0
  %2668 = vmatprep.subr.mxu0 0.0
  %2669 = vmatpush2.msra.mxu0 0.0
  %2670 = vmatprep.subr.mxu0 0.0
  %2671 = vmatpush2.msra.mxu0 0.0
  %2672 = vmatprep.subr.mxu0 0.0
  %2673 = vmatpush2.msra.mxu0 0.0
  %2674 = vmatprep.subr.mxu0 0.0
  %2675 = vmatpush2.msra.mxu0 0.0
  %2676 = vmatprep.mubr.f32.mxu0 0.0
  %v2677 = vand.u32 %v1595, 4294901760
  %v2678 = vsub.f32 %v1595, %v2677
  %2679 = vmatmul.mubr.f32.gmra.mxu0 %v2678
  %v2680 = vpop.f32.mrf.mxu0
  %v2681 = vadd.f32 %v2571, %v2680
  %v2682 = vpop.f32.mrf.mxu0
  %2683 = vmatprep.mubr.f32.mxu0 0.0
  %v2684 = vand.u32 %v1596, 4294901760
  %v2685 = vsub.f32 %v1596, %v2684
  %2686 = vmatmul.mubr.f32.gmra.mxu0 %v2685
  %v2687 = vpop.f32.mrf.mxu0
  %v2688 = vadd.f32 %v2577, %v2687
  %v2689 = vpop.f32.mrf.mxu0
  %2690 = vdwg.mxu0
  %2691 = vmatprep.subr.mxu0 0.0
  %v2692 = vand.u32 %v1620, 4294901760
  %2693 = vmatpush1.msra.mxu0 %v2692
  %2694 = vmatprep.subr.mxu0 0.0
  %v2695 = vand.u32 %v1619, 4294901760
  %2696 = vmatpush1.msra.mxu0 %v2695
  %2697 = vmatprep.subr.mxu0 0.0
  %v2698 = vand.u32 %v1618, 4294901760
  %2699 = vmatpush1.msra.mxu0 %v2698
  %2700 = vmatprep.subr.mxu0 0.0
  %v2701 = vand.u32 %v1617, 4294901760
  %2702 = vmatpush1.msra.mxu0 %v2701
  %2703 = vmatprep.subr.mxu0 0.0
  %v2704 = vand.u32 %v1616, 4294901760
  %2705 = vmatpush1.msra.mxu0 %v2704
  %2706 = vmatprep.subr.mxu0 0.0
  %v2707 = vand.u32 %v1615, 4294901760
  %2708 = vmatpush1.msra.mxu0 %v2707
  %2709 = vmatprep.subr.mxu0 0.0
  %v2710 = vand.u32 %v1614, 4294901760
  %2711 = vmatpush1.msra.mxu0 %v2710
  %2712 = vmatprep.subr.mxu0 0.0
  %v2713 = vand.u32 %v1613, 4294901760
  %2714 = vmatpush1.msra.mxu0 %v2713
  %2715 = vmatprep.subr.mxu0 0.0
  %v2716 = vand.u32 %v1612, 4294901760
  %2717 = vmatpush1.msra.mxu0 %v2716
  %2718 = vmatprep.subr.mxu0 0.0
  %v2719 = vand.u32 %v1611, 4294901760
  %2720 = vmatpush1.msra.mxu0 %v2719
  %2721 = vmatprep.subr.mxu0 0.0
  %v2722 = vand.u32 %v1610, 4294901760
  %2723 = vmatpush1.msra.mxu0 %v2722
  %2724 = vmatprep.subr.mxu0 0.0
  %v2725 = vand.u32 %v1609, 4294901760
  %2726 = vmatpush1.msra.mxu0 %v2725
  %2727 = vmatprep.subr.mxu0 0.0
  %v2728 = vand.u32 %v1608, 4294901760
  %2729 = vmatpush1.msra.mxu0 %v2728
  %2730 = vmatprep.subr.mxu0 0.0
  %v2731 = vand.u32 %v1607, 4294901760
  %2732 = vmatpush1.msra.mxu0 %v2731
  %2733 = vmatprep.subr.mxu0 0.0
  %v2734 = vand.u32 %v1606, 4294901760
  %2735 = vmatpush1.msra.mxu0 %v2734
  %2736 = vmatprep.subr.mxu0 0.0
  %v2737 = vand.u32 %v1605, 4294901760
  %2738 = vmatpush1.msra.mxu0 %v2737
  %2739 = vmatprep.subr.mxu0 0.0
  %2740 = vmatpush2.msra.mxu0 0.0
  %2741 = vmatprep.subr.mxu0 0.0
  %2742 = vmatpush2.msra.mxu0 0.0
  %2743 = vmatprep.subr.mxu0 0.0
  %2744 = vmatpush2.msra.mxu0 0.0
  %2745 = vmatprep.subr.mxu0 0.0
  %2746 = vmatpush2.msra.mxu0 0.0
  %2747 = vmatprep.subr.mxu0 0.0
  %2748 = vmatpush2.msra.mxu0 0.0
  %2749 = vmatprep.subr.mxu0 0.0
  %2750 = vmatpush2.msra.mxu0 0.0
  %2751 = vmatprep.subr.mxu0 0.0
  %2752 = vmatpush2.msra.mxu0 0.0
  %2753 = vmatprep.subr.mxu0 0.0
  %2754 = vmatpush2.msra.mxu0 0.0
  %2755 = vmatprep.subr.mxu0 0.0
  %2756 = vmatpush2.msra.mxu0 0.0
  %2757 = vmatprep.subr.mxu0 0.0
  %2758 = vmatpush2.msra.mxu0 0.0
  %2759 = vmatprep.subr.mxu0 0.0
  %2760 = vmatpush2.msra.mxu0 0.0
  %2761 = vmatprep.subr.mxu0 0.0
  %2762 = vmatpush2.msra.mxu0 0.0
  %2763 = vmatprep.subr.mxu0 0.0
  %2764 = vmatpush2.msra.mxu0 0.0
  %2765 = vmatprep.subr.mxu0 0.0
  %2766 = vmatpush2.msra.mxu0 0.0
  %2767 = vmatprep.subr.mxu0 0.0
  %2768 = vmatpush2.msra.mxu0 0.0
  %2769 = vmatprep.subr.mxu0 0.0
  %2770 = vmatpush2.msra.mxu0 0.0
  %2771 = vmatprep.mubr.f32.mxu0 0.0
  %v2772 = vand.u32 %v1595, 4294901760
  %v2773 = vsub.f32 %v1595, %v2772
  %v2774 = vand.u32 %v2773, 4294901760
  %2775 = vmatmul.mubr.f32.gmra.mxu0 %v2774
  %v2776 = vpop.f32.mrf.mxu0
  %v2777 = vadd.f32 %v2681, %v2776
  %v2778 = vpop.f32.mrf.mxu0
  %2779 = vmatprep.mubr.f32.mxu0 0.0
  %v2780 = vand.u32 %v1596, 4294901760
  %v2781 = vsub.f32 %v1596, %v2780
  %v2782 = vand.u32 %v2781, 4294901760
  %2783 = vmatmul.mubr.f32.gmra.mxu0 %v2782
  %v2784 = vpop.f32.mrf.mxu0
  %v2785 = vadd.f32 %v2688, %v2784
  %v2786 = vpop.f32.mrf.mxu0
  %2787 = vdwg.mxu0
  %2788 = vmatprep.subr.mxu0 0.0
  %v2789 = vand.u32 %v1620, 4294901760
  %v2790 = vsub.f32 %v1620, %v2789
  %v2791 = vand.u32 %v2790, 4294901760
  %2792 = vmatpush1.msra.mxu0 %v2791
  %2793 = vmatprep.subr.mxu0 0.0
  %v2794 = vand.u32 %v1619, 4294901760
  %v2795 = vsub.f32 %v1619, %v2794
  %v2796 = vand.u32 %v2795, 4294901760
  %2797 = vmatpush1.msra.mxu0 %v2796
  %2798 = vmatprep.subr.mxu0 0.0
  %v2799 = vand.u32 %v1618, 4294901760
  %v2800 = vsub.f32 %v1618, %v2799
  %v2801 = vand.u32 %v2800, 4294901760
  %2802 = vmatpush1.msra.mxu0 %v2801
  %2803 = vmatprep.subr.mxu0 0.0
  %v2804 = vand.u32 %v1617, 4294901760
  %v2805 = vsub.f32 %v1617, %v2804
  %v2806 = vand.u32 %v2805, 4294901760
  %2807 = vmatpush1.msra.mxu0 %v2806
  %2808 = vmatprep.subr.mxu0 0.0
  %v2809 = vand.u32 %v1616, 4294901760
  %v2810 = vsub.f32 %v1616, %v2809
  %v2811 = vand.u32 %v2810, 4294901760
  %2812 = vmatpush1.msra.mxu0 %v2811
  %2813 = vmatprep.subr.mxu0 0.0
  %v2814 = vand.u32 %v1615, 4294901760
  %v2815 = vsub.f32 %v1615, %v2814
  %v2816 = vand.u32 %v2815, 4294901760
  %2817 = vmatpush1.msra.mxu0 %v2816
  %2818 = vmatprep.subr.mxu0 0.0
  %v2819 = vand.u32 %v1614, 4294901760
  %v2820 = vsub.f32 %v1614, %v2819
  %v2821 = vand.u32 %v2820, 4294901760
  %2822 = vmatpush1.msra.mxu0 %v2821
  %2823 = vmatprep.subr.mxu0 0.0
  %v2824 = vand.u32 %v1613, 4294901760
  %v2825 = vsub.f32 %v1613, %v2824
  %v2826 = vand.u32 %v2825, 4294901760
  %2827 = vmatpush1.msra.mxu0 %v2826
  %2828 = vmatprep.subr.mxu0 0.0
  %v2829 = vand.u32 %v1612, 4294901760
  %v2830 = vsub.f32 %v1612, %v2829
  %v2831 = vand.u32 %v2830, 4294901760
  %2832 = vmatpush1.msra.mxu0 %v2831
  %2833 = vmatprep.subr.mxu0 0.0
  %v2834 = vand.u32 %v1611, 4294901760
  %v2835 = vsub.f32 %v1611, %v2834
  %v2836 = vand.u32 %v2835, 4294901760
  %2837 = vmatpush1.msra.mxu0 %v2836
  %2838 = vmatprep.subr.mxu0 0.0
  %v2839 = vand.u32 %v1610, 4294901760
  %v2840 = vsub.f32 %v1610, %v2839
  %v2841 = vand.u32 %v2840, 4294901760
  %2842 = vmatpush1.msra.mxu0 %v2841
  %2843 = vmatprep.subr.mxu0 0.0
  %v2844 = vand.u32 %v1609, 4294901760
  %v2845 = vsub.f32 %v1609, %v2844
  %v2846 = vand.u32 %v2845, 4294901760
  %2847 = vmatpush1.msra.mxu0 %v2846
  %2848 = vmatprep.subr.mxu0 0.0
  %v2849 = vand.u32 %v1608, 4294901760
  %v2850 = vsub.f32 %v1608, %v2849
  %v2851 = vand.u32 %v2850, 4294901760
  %2852 = vmatpush1.msra.mxu0 %v2851
  %2853 = vmatprep.subr.mxu0 0.0
  %v2854 = vand.u32 %v1607, 4294901760
  %v2855 = vsub.f32 %v1607, %v2854
  %v2856 = vand.u32 %v2855, 4294901760
  %2857 = vmatpush1.msra.mxu0 %v2856
  %2858 = vmatprep.subr.mxu0 0.0
  %v2859 = vand.u32 %v1606, 4294901760
  %v2860 = vsub.f32 %v1606, %v2859
  %v2861 = vand.u32 %v2860, 4294901760
  %2862 = vmatpush1.msra.mxu0 %v2861
  %2863 = vmatprep.subr.mxu0 0.0
  %v2864 = vand.u32 %v1605, 4294901760
  %v2865 = vsub.f32 %v1605, %v2864
  %v2866 = vand.u32 %v2865, 4294901760
  %2867 = vmatpush1.msra.mxu0 %v2866
  %2868 = vmatprep.subr.mxu0 0.0
  %2869 = vmatpush2.msra.mxu0 0.0
  %2870 = vmatprep.subr.mxu0 0.0
  %2871 = vmatpush2.msra.mxu0 0.0
  %2872 = vmatprep.subr.mxu0 0.0
  %2873 = vmatpush2.msra.mxu0 0.0
  %2874 = vmatprep.subr.mxu0 0.0
  %2875 = vmatpush2.msra.mxu0 0.0
  %2876 = vmatprep.subr.mxu0 0.0
  %2877 = vmatpush2.msra.mxu0 0.0
  %2878 = vmatprep.subr.mxu0 0.0
  %2879 = vmatpush2.msra.mxu0 0.0
  %2880 = vmatprep.subr.mxu0 0.0
  %2881 = vmatpush2.msra.mxu0 0.0
  %2882 = vmatprep.subr.mxu0 0.0
  %2883 = vmatpush2.msra.mxu0 0.0
  %2884 = vmatprep.subr.mxu0 0.0
  %2885 = vmatpush2.msra.mxu0 0.0
  %2886 = vmatprep.subr.mxu0 0.0
  %2887 = vmatpush2.msra.mxu0 0.0
  %2888 = vmatprep.subr.mxu0 0.0
  %2889 = vmatpush2.msra.mxu0 0.0
  %2890 = vmatprep.subr.mxu0 0.0
  %2891 = vmatpush2.msra.mxu0 0.0
  %2892 = vmatprep.subr.mxu0 0.0
  %2893 = vmatpush2.msra.mxu0 0.0
  %2894 = vmatprep.subr.mxu0 0.0
  %2895 = vmatpush2.msra.mxu0 0.0
  %2896 = vmatprep.subr.mxu0 0.0
  %2897 = vmatpush2.msra.mxu0 0.0
  %2898 = vmatprep.subr.mxu0 0.0
  %2899 = vmatpush2.msra.mxu0 0.0
  %2900 = vmatprep.mubr.f32.mxu0 0.0
  %v2901 = vand.u32 %v1595, 4294901760
  %2902 = vmatmul.mubr.f32.gmra.mxu0 %v2901
  %v2903 = vpop.f32.mrf.mxu0
  %v2904 = vadd.f32 %v2777, %v2903
  %v2905 = vpop.f32.mrf.mxu0
  %2906 = vmatprep.mubr.f32.mxu0 0.0
  %v2907 = vand.u32 %v1596, 4294901760
  %2908 = vmatmul.mubr.f32.gmra.mxu0 %v2907
  %v2909 = vpop.f32.mrf.mxu0
  %v2910 = vadd.f32 %v2785, %v2909
  %v2911 = vpop.f32.mrf.mxu0
  %2912 = vdwg.mxu0
  %2913 = vmatprep.subr.mxu0 0.0
  %v2914 = vand.u32 %v1620, 4294901760
  %2915 = vmatpush1.msra.mxu0 %v2914
  %2916 = vmatprep.subr.mxu0 0.0
  %v2917 = vand.u32 %v1619, 4294901760
  %2918 = vmatpush1.msra.mxu0 %v2917
  %2919 = vmatprep.subr.mxu0 0.0
  %v2920 = vand.u32 %v1618, 4294901760
  %2921 = vmatpush1.msra.mxu0 %v2920
  %2922 = vmatprep.subr.mxu0 0.0
  %v2923 = vand.u32 %v1617, 4294901760
  %2924 = vmatpush1.msra.mxu0 %v2923
  %2925 = vmatprep.subr.mxu0 0.0
  %v2926 = vand.u32 %v1616, 4294901760
  %2927 = vmatpush1.msra.mxu0 %v2926
  %2928 = vmatprep.subr.mxu0 0.0
  %v2929 = vand.u32 %v1615, 4294901760
  %2930 = vmatpush1.msra.mxu0 %v2929
  %2931 = vmatprep.subr.mxu0 0.0
  %v2932 = vand.u32 %v1614, 4294901760
  %2933 = vmatpush1.msra.mxu0 %v2932
  %2934 = vmatprep.subr.mxu0 0.0
  %v2935 = vand.u32 %v1613, 4294901760
  %2936 = vmatpush1.msra.mxu0 %v2935
  %2937 = vmatprep.subr.mxu0 0.0
  %v2938 = vand.u32 %v1612, 4294901760
  %2939 = vmatpush1.msra.mxu0 %v2938
  %2940 = vmatprep.subr.mxu0 0.0
  %v2941 = vand.u32 %v1611, 4294901760
  %2942 = vmatpush1.msra.mxu0 %v2941
  %2943 = vmatprep.subr.mxu0 0.0
  %v2944 = vand.u32 %v1610, 4294901760
  %2945 = vmatpush1.msra.mxu0 %v2944
  %2946 = vmatprep.subr.mxu0 0.0
  %v2947 = vand.u32 %v1609, 4294901760
  %2948 = vmatpush1.msra.mxu0 %v2947
  %2949 = vmatprep.subr.mxu0 0.0
  %v2950 = vand.u32 %v1608, 4294901760
  %2951 = vmatpush1.msra.mxu0 %v2950
  %2952 = vmatprep.subr.mxu0 0.0
  %v2953 = vand.u32 %v1607, 4294901760
  %2954 = vmatpush1.msra.mxu0 %v2953
  %2955 = vmatprep.subr.mxu0 0.0
  %v2956 = vand.u32 %v1606, 4294901760
  %2957 = vmatpush1.msra.mxu0 %v2956
  %2958 = vmatprep.subr.mxu0 0.0
  %v2959 = vand.u32 %v1605, 4294901760
  %2960 = vmatpush1.msra.mxu0 %v2959
  %2961 = vmatprep.subr.mxu0 0.0
  %2962 = vmatpush2.msra.mxu0 0.0
  %2963 = vmatprep.subr.mxu0 0.0
  %2964 = vmatpush2.msra.mxu0 0.0
  %2965 = vmatprep.subr.mxu0 0.0
  %2966 = vmatpush2.msra.mxu0 0.0
  %2967 = vmatprep.subr.mxu0 0.0
  %2968 = vmatpush2.msra.mxu0 0.0
  %2969 = vmatprep.subr.mxu0 0.0
  %2970 = vmatpush2.msra.mxu0 0.0
  %2971 = vmatprep.subr.mxu0 0.0
  %2972 = vmatpush2.msra.mxu0 0.0
  %2973 = vmatprep.subr.mxu0 0.0
  %2974 = vmatpush2.msra.mxu0 0.0
  %2975 = vmatprep.subr.mxu0 0.0
  %2976 = vmatpush2.msra.mxu0 0.0
  %2977 = vmatprep.subr.mxu0 0.0
  %2978 = vmatpush2.msra.mxu0 0.0
  %2979 = vmatprep.subr.mxu0 0.0
  %2980 = vmatpush2.msra.mxu0 0.0
  %2981 = vmatprep.subr.mxu0 0.0
  %2982 = vmatpush2.msra.mxu0 0.0
  %2983 = vmatprep.subr.mxu0 0.0
  %2984 = vmatpush2.msra.mxu0 0.0
  %2985 = vmatprep.subr.mxu0 0.0
  %2986 = vmatpush2.msra.mxu0 0.0
  %2987 = vmatprep.subr.mxu0 0.0
  %2988 = vmatpush2.msra.mxu0 0.0
  %2989 = vmatprep.subr.mxu0 0.0
  %2990 = vmatpush2.msra.mxu0 0.0
  %2991 = vmatprep.subr.mxu0 0.0
  %2992 = vmatpush2.msra.mxu0 0.0
  %2993 = vmatprep.mubr.f32.mxu0 0.0
  %v2994 = vand.u32 %v1595, 4294901760
  %2995 = vmatmul.mubr.f32.gmra.mxu0 %v2994
  %v2996 = vpop.f32.mrf.mxu0
  %v2997 = vadd.f32 %v2904, %v2996
  %v2998 = vpop.f32.mrf.mxu0
  %2999 = vmatprep.mubr.f32.mxu0 0.0
  %v3000 = vand.u32 %v1596, 4294901760
  %3001 = vmatmul.mubr.f32.gmra.mxu0 %v3000
  %v3002 = vpop.f32.mrf.mxu0
  %v3003 = vadd.f32 %v2910, %v3002
  %v3004 = vpop.f32.mrf.mxu0
  %3005 = vdwg.mxu0
  %s3006 = scalar_lea.vmem %s4, 256
  %v3007 = vld [vmem:[%s3006] sm:$0xff]
  %v3008 = vld [vmem:[%s3006 + $0x8] sm:$0xff]
  %v3009 = vld [vmem:[%s3006 + $0x10] sm:$0xff]
  %v3010 = vld [vmem:[%s3006 + $0x18] sm:$0xff]
  %v3011 = vld [vmem:[%s3006 + $0x20] sm:$0xff]
  %v3012 = vld [vmem:[%s3006 + $0x28] sm:$0xff]
  %v3013 = vld [vmem:[%s3006 + $0x30] sm:$0xff]
  %v3014 = vld [vmem:[%s3006 + $0x38] sm:$0xff]
  %v3015 = vld [vmem:[%s3006 + $0x40] sm:$0xff]
  %v3016 = vld [vmem:[%s3006 + $0x48] sm:$0xff]
  %v3017 = vld [vmem:[%s3006 + $0x50] sm:$0xff]
  %v3018 = vld [vmem:[%s3006 + $0x58] sm:$0xff]
  %v3019 = vld [vmem:[%s3006 + $0x60] sm:$0xff]
  %v3020 = vld [vmem:[%s3006 + $0x68] sm:$0xff]
  %v3021 = vld [vmem:[%s3006 + $0x70] sm:$0xff]
  %v3022 = vld [vmem:[%s3006 + $0x78] sm:$0xff]
  %3023 = vmatprep.subr.mxu0 0.0
  %v3024 = vand.u32 %v3022, 4294901760
  %3025 = vmatpush1.msra.mxu0 %v3024
  %3026 = vmatprep.subr.mxu0 0.0
  %v3027 = vand.u32 %v3021, 4294901760
  %3028 = vmatpush1.msra.mxu0 %v3027
  %3029 = vmatprep.subr.mxu0 0.0
  %v3030 = vand.u32 %v3020, 4294901760
  %3031 = vmatpush1.msra.mxu0 %v3030
  %3032 = vmatprep.subr.mxu0 0.0
  %v3033 = vand.u32 %v3019, 4294901760
  %3034 = vmatpush1.msra.mxu0 %v3033
  %3035 = vmatprep.subr.mxu0 0.0
  %v3036 = vand.u32 %v3018, 4294901760
  %3037 = vmatpush1.msra.mxu0 %v3036
  %3038 = vmatprep.subr.mxu0 0.0
  %v3039 = vand.u32 %v3017, 4294901760
  %3040 = vmatpush1.msra.mxu0 %v3039
  %3041 = vmatprep.subr.mxu0 0.0
  %v3042 = vand.u32 %v3016, 4294901760
  %3043 = vmatpush1.msra.mxu0 %v3042
  %3044 = vmatprep.subr.mxu0 0.0
  %v3045 = vand.u32 %v3015, 4294901760
  %3046 = vmatpush1.msra.mxu0 %v3045
  %3047 = vmatprep.subr.mxu0 0.0
  %v3048 = vand.u32 %v3014, 4294901760
  %3049 = vmatpush1.msra.mxu0 %v3048
  %3050 = vmatprep.subr.mxu0 0.0
  %v3051 = vand.u32 %v3013, 4294901760
  %3052 = vmatpush1.msra.mxu0 %v3051
  %3053 = vmatprep.subr.mxu0 0.0
  %v3054 = vand.u32 %v3012, 4294901760
  %3055 = vmatpush1.msra.mxu0 %v3054
  %3056 = vmatprep.subr.mxu0 0.0
  %v3057 = vand.u32 %v3011, 4294901760
  %3058 = vmatpush1.msra.mxu0 %v3057
  %3059 = vmatprep.subr.mxu0 0.0
  %v3060 = vand.u32 %v3010, 4294901760
  %3061 = vmatpush1.msra.mxu0 %v3060
  %3062 = vmatprep.subr.mxu0 0.0
  %v3063 = vand.u32 %v3009, 4294901760
  %3064 = vmatpush1.msra.mxu0 %v3063
  %3065 = vmatprep.subr.mxu0 0.0
  %v3066 = vand.u32 %v3008, 4294901760
  %3067 = vmatpush1.msra.mxu0 %v3066
  %3068 = vmatprep.subr.mxu0 0.0
  %v3069 = vand.u32 %v3007, 4294901760
  %3070 = vmatpush1.msra.mxu0 %v3069
  %3071 = vmatprep.subr.mxu0 0.0
  %3072 = vmatpush2.msra.mxu0 0.0
  %3073 = vmatprep.subr.mxu0 0.0
  %3074 = vmatpush2.msra.mxu0 0.0
  %3075 = vmatprep.subr.mxu0 0.0
  %3076 = vmatpush2.msra.mxu0 0.0
  %3077 = vmatprep.subr.mxu0 0.0
  %3078 = vmatpush2.msra.mxu0 0.0
  %3079 = vmatprep.subr.mxu0 0.0
  %3080 = vmatpush2.msra.mxu0 0.0
  %3081 = vmatprep.subr.mxu0 0.0
  %3082 = vmatpush2.msra.mxu0 0.0
  %3083 = vmatprep.subr.mxu0 0.0
  %3084 = vmatpush2.msra.mxu0 0.0
  %3085 = vmatprep.subr.mxu0 0.0
  %3086 = vmatpush2.msra.mxu0 0.0
  %3087 = vmatprep.subr.mxu0 0.0
  %3088 = vmatpush2.msra.mxu0 0.0
  %3089 = vmatprep.subr.mxu0 0.0
  %3090 = vmatpush2.msra.mxu0 0.0
  %3091 = vmatprep.subr.mxu0 0.0
  %3092 = vmatpush2.msra.mxu0 0.0
  %3093 = vmatprep.subr.mxu0 0.0
  %3094 = vmatpush2.msra.mxu0 0.0
  %3095 = vmatprep.subr.mxu0 0.0
  %3096 = vmatpush2.msra.mxu0 0.0
  %3097 = vmatprep.subr.mxu0 0.0
  %3098 = vmatpush2.msra.mxu0 0.0
  %3099 = vmatprep.subr.mxu0 0.0
  %3100 = vmatpush2.msra.mxu0 0.0
  %3101 = vmatprep.subr.mxu0 0.0
  %3102 = vmatpush2.msra.mxu0 0.0
  %3103 = vmatprep.mubr.f32.mxu0 0.0
  %v3104 = vand.u32 %v1603, 4294901760
  %v3105 = vsub.f32 %v1603, %v3104
  %v3106 = vand.u32 %v3105, 4294901760
  %v3107 = vsub.f32 %v3105, %v3106
  %v3108 = vand.u32 %v3107, 4294901760
  %3109 = vmatmul.mubr.f32.gmra.mxu0 %v3108
  %v3110 = vpop.f32.mrf.mxu0
  %v3111 = vadd.f32 0.0, %v3110
  %v3112 = vpop.f32.mrf.mxu0
  %3113 = vmatprep.mubr.f32.mxu0 0.0
  %v3114 = vand.u32 %v1604, 4294901760
  %v3115 = vsub.f32 %v1604, %v3114
  %v3116 = vand.u32 %v3115, 4294901760
  %v3117 = vsub.f32 %v3115, %v3116
  %v3118 = vand.u32 %v3117, 4294901760
  %3119 = vmatmul.mubr.f32.gmra.mxu0 %v3118
  %v3120 = vpop.f32.mrf.mxu0
  %v3121 = vadd.f32 0.0, %v3120
  %v3122 = vpop.f32.mrf.mxu0
  %3123 = vdwg.mxu0
  %3124 = vmatprep.subr.mxu0 0.0
  %v3125 = vand.u32 %v3022, 4294901760
  %v3126 = vsub.f32 %v3022, %v3125
  %v3127 = vand.u32 %v3126, 4294901760
  %v3128 = vsub.f32 %v3126, %v3127
  %v3129 = vand.u32 %v3128, 4294901760
  %3130 = vmatpush1.msra.mxu0 %v3129
  %3131 = vmatprep.subr.mxu0 0.0
  %v3132 = vand.u32 %v3021, 4294901760
  %v3133 = vsub.f32 %v3021, %v3132
  %v3134 = vand.u32 %v3133, 4294901760
  %v3135 = vsub.f32 %v3133, %v3134
  %v3136 = vand.u32 %v3135, 4294901760
  %3137 = vmatpush1.msra.mxu0 %v3136
  %3138 = vmatprep.subr.mxu0 0.0
  %v3139 = vand.u32 %v3020, 4294901760
  %v3140 = vsub.f32 %v3020, %v3139
  %v3141 = vand.u32 %v3140, 4294901760
  %v3142 = vsub.f32 %v3140, %v3141
  %v3143 = vand.u32 %v3142, 4294901760
  %3144 = vmatpush1.msra.mxu0 %v3143
  %3145 = vmatprep.subr.mxu0 0.0
  %v3146 = vand.u32 %v3019, 4294901760
  %v3147 = vsub.f32 %v3019, %v3146
  %v3148 = vand.u32 %v3147, 4294901760
  %v3149 = vsub.f32 %v3147, %v3148
  %v3150 = vand.u32 %v3149, 4294901760
  %3151 = vmatpush1.msra.mxu0 %v3150
  %3152 = vmatprep.subr.mxu0 0.0
  %v3153 = vand.u32 %v3018, 4294901760
  %v3154 = vsub.f32 %v3018, %v3153
  %v3155 = vand.u32 %v3154, 4294901760
  %v3156 = vsub.f32 %v3154, %v3155
  %v3157 = vand.u32 %v3156, 4294901760
  %3158 = vmatpush1.msra.mxu0 %v3157
  %3159 = vmatprep.subr.mxu0 0.0
  %v3160 = vand.u32 %v3017, 4294901760
  %v3161 = vsub.f32 %v3017, %v3160
  %v3162 = vand.u32 %v3161, 4294901760
  %v3163 = vsub.f32 %v3161, %v3162
  %v3164 = vand.u32 %v3163, 4294901760
  %3165 = vmatpush1.msra.mxu0 %v3164
  %3166 = vmatprep.subr.mxu0 0.0
  %v3167 = vand.u32 %v3016, 4294901760
  %v3168 = vsub.f32 %v3016, %v3167
  %v3169 = vand.u32 %v3168, 4294901760
  %v3170 = vsub.f32 %v3168, %v3169
  %v3171 = vand.u32 %v3170, 4294901760
  %3172 = vmatpush1.msra.mxu0 %v3171
  %3173 = vmatprep.subr.mxu0 0.0
  %v3174 = vand.u32 %v3015, 4294901760
  %v3175 = vsub.f32 %v3015, %v3174
  %v3176 = vand.u32 %v3175, 4294901760
  %v3177 = vsub.f32 %v3175, %v3176
  %v3178 = vand.u32 %v3177, 4294901760
  %3179 = vmatpush1.msra.mxu0 %v3178
  %3180 = vmatprep.subr.mxu0 0.0
  %v3181 = vand.u32 %v3014, 4294901760
  %v3182 = vsub.f32 %v3014, %v3181
  %v3183 = vand.u32 %v3182, 4294901760
  %v3184 = vsub.f32 %v3182, %v3183
  %v3185 = vand.u32 %v3184, 4294901760
  %3186 = vmatpush1.msra.mxu0 %v3185
  %3187 = vmatprep.subr.mxu0 0.0
  %v3188 = vand.u32 %v3013, 4294901760
  %v3189 = vsub.f32 %v3013, %v3188
  %v3190 = vand.u32 %v3189, 4294901760
  %v3191 = vsub.f32 %v3189, %v3190
  %v3192 = vand.u32 %v3191, 4294901760
  %3193 = vmatpush1.msra.mxu0 %v3192
  %3194 = vmatprep.subr.mxu0 0.0
  %v3195 = vand.u32 %v3012, 4294901760
  %v3196 = vsub.f32 %v3012, %v3195
  %v3197 = vand.u32 %v3196, 4294901760
  %v3198 = vsub.f32 %v3196, %v3197
  %v3199 = vand.u32 %v3198, 4294901760
  %3200 = vmatpush1.msra.mxu0 %v3199
  %3201 = vmatprep.subr.mxu0 0.0
  %v3202 = vand.u32 %v3011, 4294901760
  %v3203 = vsub.f32 %v3011, %v3202
  %v3204 = vand.u32 %v3203, 4294901760
  %v3205 = vsub.f32 %v3203, %v3204
  %v3206 = vand.u32 %v3205, 4294901760
  %3207 = vmatpush1.msra.mxu0 %v3206
  %3208 = vmatprep.subr.mxu0 0.0
  %v3209 = vand.u32 %v3010, 4294901760
  %v3210 = vsub.f32 %v3010, %v3209
  %v3211 = vand.u32 %v3210, 4294901760
  %v3212 = vsub.f32 %v3210, %v3211
  %v3213 = vand.u32 %v3212, 4294901760
  %3214 = vmatpush1.msra.mxu0 %v3213
  %3215 = vmatprep.subr.mxu0 0.0
  %v3216 = vand.u32 %v3009, 4294901760
  %v3217 = vsub.f32 %v3009, %v3216
  %v3218 = vand.u32 %v3217, 4294901760
  %v3219 = vsub.f32 %v3217, %v3218
  %v3220 = vand.u32 %v3219, 4294901760
  %3221 = vmatpush1.msra.mxu0 %v3220
  %3222 = vmatprep.subr.mxu0 0.0
  %v3223 = vand.u32 %v3008, 4294901760
  %v3224 = vsub.f32 %v3008, %v3223
  %v3225 = vand.u32 %v3224, 4294901760
  %v3226 = vsub.f32 %v3224, %v3225
  %v3227 = vand.u32 %v3226, 4294901760
  %3228 = vmatpush1.msra.mxu0 %v3227
  %3229 = vmatprep.subr.mxu0 0.0
  %v3230 = vand.u32 %v3007, 4294901760
  %v3231 = vsub.f32 %v3007, %v3230
  %v3232 = vand.u32 %v3231, 4294901760
  %v3233 = vsub.f32 %v3231, %v3232
  %v3234 = vand.u32 %v3233, 4294901760
  %3235 = vmatpush1.msra.mxu0 %v3234
  %3236 = vmatprep.subr.mxu0 0.0
  %3237 = vmatpush2.msra.mxu0 0.0
  %3238 = vmatprep.subr.mxu0 0.0
  %3239 = vmatpush2.msra.mxu0 0.0
  %3240 = vmatprep.subr.mxu0 0.0
  %3241 = vmatpush2.msra.mxu0 0.0
  %3242 = vmatprep.subr.mxu0 0.0
  %3243 = vmatpush2.msra.mxu0 0.0
  %3244 = vmatprep.subr.mxu0 0.0
  %3245 = vmatpush2.msra.mxu0 0.0
  %3246 = vmatprep.subr.mxu0 0.0
  %3247 = vmatpush2.msra.mxu0 0.0
  %3248 = vmatprep.subr.mxu0 0.0
  %3249 = vmatpush2.msra.mxu0 0.0
  %3250 = vmatprep.subr.mxu0 0.0
  %3251 = vmatpush2.msra.mxu0 0.0
  %3252 = vmatprep.subr.mxu0 0.0
  %3253 = vmatpush2.msra.mxu0 0.0
  %3254 = vmatprep.subr.mxu0 0.0
  %3255 = vmatpush2.msra.mxu0 0.0
  %3256 = vmatprep.subr.mxu0 0.0
  %3257 = vmatpush2.msra.mxu0 0.0
  %3258 = vmatprep.subr.mxu0 0.0
  %3259 = vmatpush2.msra.mxu0 0.0
  %3260 = vmatprep.subr.mxu0 0.0
  %3261 = vmatpush2.msra.mxu0 0.0
  %3262 = vmatprep.subr.mxu0 0.0
  %3263 = vmatpush2.msra.mxu0 0.0
  %3264 = vmatprep.subr.mxu0 0.0
  %3265 = vmatpush2.msra.mxu0 0.0
  %3266 = vmatprep.subr.mxu0 0.0
  %3267 = vmatpush2.msra.mxu0 0.0
  %3268 = vmatprep.mubr.f32.mxu0 0.0
  %v3269 = vand.u32 %v1603, 4294901760
  %3270 = vmatmul.mubr.f32.gmra.mxu0 %v3269
  %v3271 = vpop.f32.mrf.mxu0
  %v3272 = vadd.f32 %v3111, %v3271
  %v3273 = vpop.f32.mrf.mxu0
  %3274 = vmatprep.mubr.f32.mxu0 0.0
  %v3275 = vand.u32 %v1604, 4294901760
  %3276 = vmatmul.mubr.f32.gmra.mxu0 %v3275
  %v3277 = vpop.f32.mrf.mxu0
  %v3278 = vadd.f32 %v3121, %v3277
  %v3279 = vpop.f32.mrf.mxu0
  %3280 = vdwg.mxu0
  %3281 = vmatprep.subr.mxu0 0.0
  %v3282 = vand.u32 %v3022, 4294901760
  %v3283 = vsub.f32 %v3022, %v3282
  %3284 = vmatpush1.msra.mxu0 %v3283
  %3285 = vmatprep.subr.mxu0 0.0
  %v3286 = vand.u32 %v3021, 4294901760
  %v3287 = vsub.f32 %v3021, %v3286
  %3288 = vmatpush1.msra.mxu0 %v3287
  %3289 = vmatprep.subr.mxu0 0.0
  %v3290 = vand.u32 %v3020, 4294901760
  %v3291 = vsub.f32 %v3020, %v3290
  %3292 = vmatpush1.msra.mxu0 %v3291
  %3293 = vmatprep.subr.mxu0 0.0
  %v3294 = vand.u32 %v3019, 4294901760
  %v3295 = vsub.f32 %v3019, %v3294
  %3296 = vmatpush1.msra.mxu0 %v3295
  %3297 = vmatprep.subr.mxu0 0.0
  %v3298 = vand.u32 %v3018, 4294901760
  %v3299 = vsub.f32 %v3018, %v3298
  %3300 = vmatpush1.msra.mxu0 %v3299
  %3301 = vmatprep.subr.mxu0 0.0
  %v3302 = vand.u32 %v3017, 4294901760
  %v3303 = vsub.f32 %v3017, %v3302
  %3304 = vmatpush1.msra.mxu0 %v3303
  %3305 = vmatprep.subr.mxu0 0.0
  %v3306 = vand.u32 %v3016, 4294901760
  %v3307 = vsub.f32 %v3016, %v3306
  %3308 = vmatpush1.msra.mxu0 %v3307
  %3309 = vmatprep.subr.mxu0 0.0
  %v3310 = vand.u32 %v3015, 4294901760
  %v3311 = vsub.f32 %v3015, %v3310
  %3312 = vmatpush1.msra.mxu0 %v3311
  %3313 = vmatprep.subr.mxu0 0.0
  %v3314 = vand.u32 %v3014, 4294901760
  %v3315 = vsub.f32 %v3014, %v3314
  %3316 = vmatpush1.msra.mxu0 %v3315
  %3317 = vmatprep.subr.mxu0 0.0
  %v3318 = vand.u32 %v3013, 4294901760
  %v3319 = vsub.f32 %v3013, %v3318
  %3320 = vmatpush1.msra.mxu0 %v3319
  %3321 = vmatprep.subr.mxu0 0.0
  %v3322 = vand.u32 %v3012, 4294901760
  %v3323 = vsub.f32 %v3012, %v3322
  %3324 = vmatpush1.msra.mxu0 %v3323
  %3325 = vmatprep.subr.mxu0 0.0
  %v3326 = vand.u32 %v3011, 4294901760
  %v3327 = vsub.f32 %v3011, %v3326
  %3328 = vmatpush1.msra.mxu0 %v3327
  %3329 = vmatprep.subr.mxu0 0.0
  %v3330 = vand.u32 %v3010, 4294901760
  %v3331 = vsub.f32 %v3010, %v3330
  %3332 = vmatpush1.msra.mxu0 %v3331
  %3333 = vmatprep.subr.mxu0 0.0
  %v3334 = vand.u32 %v3009, 4294901760
  %v3335 = vsub.f32 %v3009, %v3334
  %3336 = vmatpush1.msra.mxu0 %v3335
  %3337 = vmatprep.subr.mxu0 0.0
  %v3338 = vand.u32 %v3008, 4294901760
  %v3339 = vsub.f32 %v3008, %v3338
  %3340 = vmatpush1.msra.mxu0 %v3339
  %3341 = vmatprep.subr.mxu0 0.0
  %v3342 = vand.u32 %v3007, 4294901760
  %v3343 = vsub.f32 %v3007, %v3342
  %3344 = vmatpush1.msra.mxu0 %v3343
  %3345 = vmatprep.subr.mxu0 0.0
  %3346 = vmatpush2.msra.mxu0 0.0
  %3347 = vmatprep.subr.mxu0 0.0
  %3348 = vmatpush2.msra.mxu0 0.0
  %3349 = vmatprep.subr.mxu0 0.0
  %3350 = vmatpush2.msra.mxu0 0.0
  %3351 = vmatprep.subr.mxu0 0.0
  %3352 = vmatpush2.msra.mxu0 0.0
  %3353 = vmatprep.subr.mxu0 0.0
  %3354 = vmatpush2.msra.mxu0 0.0
  %3355 = vmatprep.subr.mxu0 0.0
  %3356 = vmatpush2.msra.mxu0 0.0
  %3357 = vmatprep.subr.mxu0 0.0
  %3358 = vmatpush2.msra.mxu0 0.0
  %3359 = vmatprep.subr.mxu0 0.0
  %3360 = vmatpush2.msra.mxu0 0.0
  %3361 = vmatprep.subr.mxu0 0.0
  %3362 = vmatpush2.msra.mxu0 0.0
  %3363 = vmatprep.subr.mxu0 0.0
  %3364 = vmatpush2.msra.mxu0 0.0
  %3365 = vmatprep.subr.mxu0 0.0
  %3366 = vmatpush2.msra.mxu0 0.0
  %3367 = vmatprep.subr.mxu0 0.0
  %3368 = vmatpush2.msra.mxu0 0.0
  %3369 = vmatprep.subr.mxu0 0.0
  %3370 = vmatpush2.msra.mxu0 0.0
  %3371 = vmatprep.subr.mxu0 0.0
  %3372 = vmatpush2.msra.mxu0 0.0
  %3373 = vmatprep.subr.mxu0 0.0
  %3374 = vmatpush2.msra.mxu0 0.0
  %3375 = vmatprep.subr.mxu0 0.0
  %3376 = vmatpush2.msra.mxu0 0.0
  %3377 = vmatprep.mubr.f32.mxu0 0.0
  %v3378 = vand.u32 %v1603, 4294901760
  %v3379 = vsub.f32 %v1603, %v3378
  %3380 = vmatmul.mubr.f32.gmra.mxu0 %v3379
  %v3381 = vpop.f32.mrf.mxu0
  %v3382 = vadd.f32 %v3272, %v3381
  %v3383 = vpop.f32.mrf.mxu0
  %3384 = vmatprep.mubr.f32.mxu0 0.0
  %v3385 = vand.u32 %v1604, 4294901760
  %v3386 = vsub.f32 %v1604, %v3385
  %3387 = vmatmul.mubr.f32.gmra.mxu0 %v3386
  %v3388 = vpop.f32.mrf.mxu0
  %v3389 = vadd.f32 %v3278, %v3388
  %v3390 = vpop.f32.mrf.mxu0
  %3391 = vdwg.mxu0
  %3392 = vmatprep.subr.mxu0 0.0
  %v3393 = vand.u32 %v3022, 4294901760
  %3394 = vmatpush1.msra.mxu0 %v3393
  %3395 = vmatprep.subr.mxu0 0.0
  %v3396 = vand.u32 %v3021, 4294901760
  %3397 = vmatpush1.msra.mxu0 %v3396
  %3398 = vmatprep.subr.mxu0 0.0
  %v3399 = vand.u32 %v3020, 4294901760
  %3400 = vmatpush1.msra.mxu0 %v3399
  %3401 = vmatprep.subr.mxu0 0.0
  %v3402 = vand.u32 %v3019, 4294901760
  %3403 = vmatpush1.msra.mxu0 %v3402
  %3404 = vmatprep.subr.mxu0 0.0
  %v3405 = vand.u32 %v3018, 4294901760
  %3406 = vmatpush1.msra.mxu0 %v3405
  %3407 = vmatprep.subr.mxu0 0.0
  %v3408 = vand.u32 %v3017, 4294901760
  %3409 = vmatpush1.msra.mxu0 %v3408
  %3410 = vmatprep.subr.mxu0 0.0
  %v3411 = vand.u32 %v3016, 4294901760
  %3412 = vmatpush1.msra.mxu0 %v3411
  %3413 = vmatprep.subr.mxu0 0.0
  %v3414 = vand.u32 %v3015, 4294901760
  %3415 = vmatpush1.msra.mxu0 %v3414
  %3416 = vmatprep.subr.mxu0 0.0
  %v3417 = vand.u32 %v3014, 4294901760
  %3418 = vmatpush1.msra.mxu0 %v3417
  %3419 = vmatprep.subr.mxu0 0.0
  %v3420 = vand.u32 %v3013, 4294901760
  %3421 = vmatpush1.msra.mxu0 %v3420
  %3422 = vmatprep.subr.mxu0 0.0
  %v3423 = vand.u32 %v3012, 4294901760
  %3424 = vmatpush1.msra.mxu0 %v3423
  %3425 = vmatprep.subr.mxu0 0.0
  %v3426 = vand.u32 %v3011, 4294901760
  %3427 = vmatpush1.msra.mxu0 %v3426
  %3428 = vmatprep.subr.mxu0 0.0
  %v3429 = vand.u32 %v3010, 4294901760
  %3430 = vmatpush1.msra.mxu0 %v3429
  %3431 = vmatprep.subr.mxu0 0.0
  %v3432 = vand.u32 %v3009, 4294901760
  %3433 = vmatpush1.msra.mxu0 %v3432
  %3434 = vmatprep.subr.mxu0 0.0
  %v3435 = vand.u32 %v3008, 4294901760
  %3436 = vmatpush1.msra.mxu0 %v3435
  %3437 = vmatprep.subr.mxu0 0.0
  %v3438 = vand.u32 %v3007, 4294901760
  %3439 = vmatpush1.msra.mxu0 %v3438
  %3440 = vmatprep.subr.mxu0 0.0
  %3441 = vmatpush2.msra.mxu0 0.0
  %3442 = vmatprep.subr.mxu0 0.0
  %3443 = vmatpush2.msra.mxu0 0.0
  %3444 = vmatprep.subr.mxu0 0.0
  %3445 = vmatpush2.msra.mxu0 0.0
  %3446 = vmatprep.subr.mxu0 0.0
  %3447 = vmatpush2.msra.mxu0 0.0
  %3448 = vmatprep.subr.mxu0 0.0
  %3449 = vmatpush2.msra.mxu0 0.0
  %3450 = vmatprep.subr.mxu0 0.0
  %3451 = vmatpush2.msra.mxu0 0.0
  %3452 = vmatprep.subr.mxu0 0.0
  %3453 = vmatpush2.msra.mxu0 0.0
  %3454 = vmatprep.subr.mxu0 0.0
  %3455 = vmatpush2.msra.mxu0 0.0
  %3456 = vmatprep.subr.mxu0 0.0
  %3457 = vmatpush2.msra.mxu0 0.0
  %3458 = vmatprep.subr.mxu0 0.0
  %3459 = vmatpush2.msra.mxu0 0.0
  %3460 = vmatprep.subr.mxu0 0.0
  %3461 = vmatpush2.msra.mxu0 0.0
  %3462 = vmatprep.subr.mxu0 0.0
  %3463 = vmatpush2.msra.mxu0 0.0
  %3464 = vmatprep.subr.mxu0 0.0
  %3465 = vmatpush2.msra.mxu0 0.0
  %3466 = vmatprep.subr.mxu0 0.0
  %3467 = vmatpush2.msra.mxu0 0.0
  %3468 = vmatprep.subr.mxu0 0.0
  %3469 = vmatpush2.msra.mxu0 0.0
  %3470 = vmatprep.subr.mxu0 0.0
  %3471 = vmatpush2.msra.mxu0 0.0
  %3472 = vmatprep.mubr.f32.mxu0 0.0
  %v3473 = vand.u32 %v1603, 4294901760
  %v3474 = vsub.f32 %v1603, %v3473
  %v3475 = vand.u32 %v3474, 4294901760
  %3476 = vmatmul.mubr.f32.gmra.mxu0 %v3475
  %v3477 = vpop.f32.mrf.mxu0
  %v3478 = vadd.f32 %v3382, %v3477
  %v3479 = vpop.f32.mrf.mxu0
  %3480 = vmatprep.mubr.f32.mxu0 0.0
  %v3481 = vand.u32 %v1604, 4294901760
  %v3482 = vsub.f32 %v1604, %v3481
  %v3483 = vand.u32 %v3482, 4294901760
  %3484 = vmatmul.mubr.f32.gmra.mxu0 %v3483
  %v3485 = vpop.f32.mrf.mxu0
  %v3486 = vadd.f32 %v3389, %v3485
  %v3487 = vpop.f32.mrf.mxu0
  %3488 = vdwg.mxu0
  %3489 = vmatprep.subr.mxu0 0.0
  %v3490 = vand.u32 %v3022, 4294901760
  %v3491 = vsub.f32 %v3022, %v3490
  %v3492 = vand.u32 %v3491, 4294901760
  %3493 = vmatpush1.msra.mxu0 %v3492
  %3494 = vmatprep.subr.mxu0 0.0
  %v3495 = vand.u32 %v3021, 4294901760
  %v3496 = vsub.f32 %v3021, %v3495
  %v3497 = vand.u32 %v3496, 4294901760
  %3498 = vmatpush1.msra.mxu0 %v3497
  %3499 = vmatprep.subr.mxu0 0.0
  %v3500 = vand.u32 %v3020, 4294901760
  %v3501 = vsub.f32 %v3020, %v3500
  %v3502 = vand.u32 %v3501, 4294901760
  %3503 = vmatpush1.msra.mxu0 %v3502
  %3504 = vmatprep.subr.mxu0 0.0
  %v3505 = vand.u32 %v3019, 4294901760
  %v3506 = vsub.f32 %v3019, %v3505
  %v3507 = vand.u32 %v3506, 4294901760
  %3508 = vmatpush1.msra.mxu0 %v3507
  %3509 = vmatprep.subr.mxu0 0.0
  %v3510 = vand.u32 %v3018, 4294901760
  %v3511 = vsub.f32 %v3018, %v3510
  %v3512 = vand.u32 %v3511, 4294901760
  %3513 = vmatpush1.msra.mxu0 %v3512
  %3514 = vmatprep.subr.mxu0 0.0
  %v3515 = vand.u32 %v3017, 4294901760
  %v3516 = vsub.f32 %v3017, %v3515
  %v3517 = vand.u32 %v3516, 4294901760
  %3518 = vmatpush1.msra.mxu0 %v3517
  %3519 = vmatprep.subr.mxu0 0.0
  %v3520 = vand.u32 %v3016, 4294901760
  %v3521 = vsub.f32 %v3016, %v3520
  %v3522 = vand.u32 %v3521, 4294901760
  %3523 = vmatpush1.msra.mxu0 %v3522
  %3524 = vmatprep.subr.mxu0 0.0
  %v3525 = vand.u32 %v3015, 4294901760
  %v3526 = vsub.f32 %v3015, %v3525
  %v3527 = vand.u32 %v3526, 4294901760
  %3528 = vmatpush1.msra.mxu0 %v3527
  %3529 = vmatprep.subr.mxu0 0.0
  %v3530 = vand.u32 %v3014, 4294901760
  %v3531 = vsub.f32 %v3014, %v3530
  %v3532 = vand.u32 %v3531, 4294901760
  %3533 = vmatpush1.msra.mxu0 %v3532
  %3534 = vmatprep.subr.mxu0 0.0
  %v3535 = vand.u32 %v3013, 4294901760
  %v3536 = vsub.f32 %v3013, %v3535
  %v3537 = vand.u32 %v3536, 4294901760
  %3538 = vmatpush1.msra.mxu0 %v3537
  %3539 = vmatprep.subr.mxu0 0.0
  %v3540 = vand.u32 %v3012, 4294901760
  %v3541 = vsub.f32 %v3012, %v3540
  %v3542 = vand.u32 %v3541, 4294901760
  %3543 = vmatpush1.msra.mxu0 %v3542
  %3544 = vmatprep.subr.mxu0 0.0
  %v3545 = vand.u32 %v3011, 4294901760
  %v3546 = vsub.f32 %v3011, %v3545
  %v3547 = vand.u32 %v3546, 4294901760
  %3548 = vmatpush1.msra.mxu0 %v3547
  %3549 = vmatprep.subr.mxu0 0.0
  %v3550 = vand.u32 %v3010, 4294901760
  %v3551 = vsub.f32 %v3010, %v3550
  %v3552 = vand.u32 %v3551, 4294901760
  %3553 = vmatpush1.msra.mxu0 %v3552
  %3554 = vmatprep.subr.mxu0 0.0
  %v3555 = vand.u32 %v3009, 4294901760
  %v3556 = vsub.f32 %v3009, %v3555
  %v3557 = vand.u32 %v3556, 4294901760
  %3558 = vmatpush1.msra.mxu0 %v3557
  %3559 = vmatprep.subr.mxu0 0.0
  %v3560 = vand.u32 %v3008, 4294901760
  %v3561 = vsub.f32 %v3008, %v3560
  %v3562 = vand.u32 %v3561, 4294901760
  %3563 = vmatpush1.msra.mxu0 %v3562
  %3564 = vmatprep.subr.mxu0 0.0
  %v3565 = vand.u32 %v3007, 4294901760
  %v3566 = vsub.f32 %v3007, %v3565
  %v3567 = vand.u32 %v3566, 4294901760
  %3568 = vmatpush1.msra.mxu0 %v3567
  %3569 = vmatprep.subr.mxu0 0.0
  %3570 = vmatpush2.msra.mxu0 0.0
  %3571 = vmatprep.subr.mxu0 0.0
  %3572 = vmatpush2.msra.mxu0 0.0
  %3573 = vmatprep.subr.mxu0 0.0
  %3574 = vmatpush2.msra.mxu0 0.0
  %3575 = vmatprep.subr.mxu0 0.0
  %3576 = vmatpush2.msra.mxu0 0.0
  %3577 = vmatprep.subr.mxu0 0.0
  %3578 = vmatpush2.msra.mxu0 0.0
  %3579 = vmatprep.subr.mxu0 0.0
  %3580 = vmatpush2.msra.mxu0 0.0
  %3581 = vmatprep.subr.mxu0 0.0
  %3582 = vmatpush2.msra.mxu0 0.0
  %3583 = vmatprep.subr.mxu0 0.0
  %3584 = vmatpush2.msra.mxu0 0.0
  %3585 = vmatprep.subr.mxu0 0.0
  %3586 = vmatpush2.msra.mxu0 0.0
  %3587 = vmatprep.subr.mxu0 0.0
  %3588 = vmatpush2.msra.mxu0 0.0
  %3589 = vmatprep.subr.mxu0 0.0
  %3590 = vmatpush2.msra.mxu0 0.0
  %3591 = vmatprep.subr.mxu0 0.0
  %3592 = vmatpush2.msra.mxu0 0.0
  %3593 = vmatprep.subr.mxu0 0.0
  %3594 = vmatpush2.msra.mxu0 0.0
  %3595 = vmatprep.subr.mxu0 0.0
  %3596 = vmatpush2.msra.mxu0 0.0
  %3597 = vmatprep.subr.mxu0 0.0
  %3598 = vmatpush2.msra.mxu0 0.0
  %3599 = vmatprep.subr.mxu0 0.0
  %3600 = vmatpush2.msra.mxu0 0.0
  %3601 = vmatprep.mubr.f32.mxu0 0.0
  %v3602 = vand.u32 %v1603, 4294901760
  %3603 = vmatmul.mubr.f32.gmra.mxu0 %v3602
  %v3604 = vpop.f32.mrf.mxu0
  %v3605 = vadd.f32 %v3478, %v3604
  %v3606 = vpop.f32.mrf.mxu0
  %3607 = vmatprep.mubr.f32.mxu0 0.0
  %v3608 = vand.u32 %v1604, 4294901760
  %3609 = vmatmul.mubr.f32.gmra.mxu0 %v3608
  %v3610 = vpop.f32.mrf.mxu0
  %v3611 = vadd.f32 %v3486, %v3610
  %v3612 = vpop.f32.mrf.mxu0
  %3613 = vdwg.mxu0
  %3614 = vmatprep.subr.mxu0 0.0
  %v3615 = vand.u32 %v3022, 4294901760
  %3616 = vmatpush1.msra.mxu0 %v3615
  %3617 = vmatprep.subr.mxu0 0.0
  %v3618 = vand.u32 %v3021, 4294901760
  %3619 = vmatpush1.msra.mxu0 %v3618
  %3620 = vmatprep.subr.mxu0 0.0
  %v3621 = vand.u32 %v3020, 4294901760
  %3622 = vmatpush1.msra.mxu0 %v3621
  %3623 = vmatprep.subr.mxu0 0.0
  %v3624 = vand.u32 %v3019, 4294901760
  %3625 = vmatpush1.msra.mxu0 %v3624
  %3626 = vmatprep.subr.mxu0 0.0
  %v3627 = vand.u32 %v3018, 4294901760
  %3628 = vmatpush1.msra.mxu0 %v3627
  %3629 = vmatprep.subr.mxu0 0.0
  %v3630 = vand.u32 %v3017, 4294901760
  %3631 = vmatpush1.msra.mxu0 %v3630
  %3632 = vmatprep.subr.mxu0 0.0
  %v3633 = vand.u32 %v3016, 4294901760
  %3634 = vmatpush1.msra.mxu0 %v3633
  %3635 = vmatprep.subr.mxu0 0.0
  %v3636 = vand.u32 %v3015, 4294901760
  %3637 = vmatpush1.msra.mxu0 %v3636
  %3638 = vmatprep.subr.mxu0 0.0
  %v3639 = vand.u32 %v3014, 4294901760
  %3640 = vmatpush1.msra.mxu0 %v3639
  %3641 = vmatprep.subr.mxu0 0.0
  %v3642 = vand.u32 %v3013, 4294901760
  %3643 = vmatpush1.msra.mxu0 %v3642
  %3644 = vmatprep.subr.mxu0 0.0
  %v3645 = vand.u32 %v3012, 4294901760
  %3646 = vmatpush1.msra.mxu0 %v3645
  %3647 = vmatprep.subr.mxu0 0.0
  %v3648 = vand.u32 %v3011, 4294901760
  %3649 = vmatpush1.msra.mxu0 %v3648
  %3650 = vmatprep.subr.mxu0 0.0
  %v3651 = vand.u32 %v3010, 4294901760
  %3652 = vmatpush1.msra.mxu0 %v3651
  %3653 = vmatprep.subr.mxu0 0.0
  %v3654 = vand.u32 %v3009, 4294901760
  %3655 = vmatpush1.msra.mxu0 %v3654
  %3656 = vmatprep.subr.mxu0 0.0
  %v3657 = vand.u32 %v3008, 4294901760
  %3658 = vmatpush1.msra.mxu0 %v3657
  %3659 = vmatprep.subr.mxu0 0.0
  %v3660 = vand.u32 %v3007, 4294901760
  %3661 = vmatpush1.msra.mxu0 %v3660
  %3662 = vmatprep.subr.mxu0 0.0
  %3663 = vmatpush2.msra.mxu0 0.0
  %3664 = vmatprep.subr.mxu0 0.0
  %3665 = vmatpush2.msra.mxu0 0.0
  %3666 = vmatprep.subr.mxu0 0.0
  %3667 = vmatpush2.msra.mxu0 0.0
  %3668 = vmatprep.subr.mxu0 0.0
  %3669 = vmatpush2.msra.mxu0 0.0
  %3670 = vmatprep.subr.mxu0 0.0
  %3671 = vmatpush2.msra.mxu0 0.0
  %3672 = vmatprep.subr.mxu0 0.0
  %3673 = vmatpush2.msra.mxu0 0.0
  %3674 = vmatprep.subr.mxu0 0.0
  %3675 = vmatpush2.msra.mxu0 0.0
  %3676 = vmatprep.subr.mxu0 0.0
  %3677 = vmatpush2.msra.mxu0 0.0
  %3678 = vmatprep.subr.mxu0 0.0
  %3679 = vmatpush2.msra.mxu0 0.0
  %3680 = vmatprep.subr.mxu0 0.0
  %3681 = vmatpush2.msra.mxu0 0.0
  %3682 = vmatprep.subr.mxu0 0.0
  %3683 = vmatpush2.msra.mxu0 0.0
  %3684 = vmatprep.subr.mxu0 0.0
  %3685 = vmatpush2.msra.mxu0 0.0
  %3686 = vmatprep.subr.mxu0 0.0
  %3687 = vmatpush2.msra.mxu0 0.0
  %3688 = vmatprep.subr.mxu0 0.0
  %3689 = vmatpush2.msra.mxu0 0.0
  %3690 = vmatprep.subr.mxu0 0.0
  %3691 = vmatpush2.msra.mxu0 0.0
  %3692 = vmatprep.subr.mxu0 0.0
  %3693 = vmatpush2.msra.mxu0 0.0
  %3694 = vmatprep.mubr.f32.mxu0 0.0
  %v3695 = vand.u32 %v1603, 4294901760
  %3696 = vmatmul.mubr.f32.gmra.mxu0 %v3695
  %v3697 = vpop.f32.mrf.mxu0
  %v3698 = vadd.f32 %v3605, %v3697
  %v3699 = vpop.f32.mrf.mxu0
  %3700 = vmatprep.mubr.f32.mxu0 0.0
  %v3701 = vand.u32 %v1604, 4294901760
  %3702 = vmatmul.mubr.f32.gmra.mxu0 %v3701
  %v3703 = vpop.f32.mrf.mxu0
  %v3704 = vadd.f32 %v3611, %v3703
  %v3705 = vpop.f32.mrf.mxu0
  %3706 = vdwg.mxu0
  %v3707 = vadd.f32 %v2997, %v3698
  %v3708 = vadd.f32 %v3003, %v3704
  %v3709 = vld [vmem:[%s5] sm:$0x1]
  %v3711 = vlaneseq
  %v3712 = vshrl.u32 %v3711, 7
  %v3713 = vsub.s32 0, %v3712
  %v3714 = vrot.slane %v3709, %v3713
  %v3716 = vadd.f32 %v3707, %v3714
  %v3717 = vadd.f32 %v3708, %v3714
  %v3718 = vmax.f32 %v3716, 0.0
  %v3719 = vmax.f32 %v3717, 0.0
  %3720 = vst [vmem:[%s6] sm:$0xff] %v3718
  %3721 = vst [vmem:[%s6 + $0x8] sm:$0xff] %v3719
  // Predicated region
  $region26: #{net1_forward.1} parent=0 // pred_check
    _
  $region27: #{net1_forward.1} parent=0 // pred_check_branch
    %3723 = sbr.rel (0) target = $region29
  $region28: #{net1_forward.1} parent=0 // pred_region
    _
  $region29: #{net1_forward.1} parent=0 // pred_fallthru
    _
  // Predicated region
  $region30: #{net1_forward.1} parent=0 // pred_check
    _
  $region31: #{net1_forward.1} parent=0 // pred_check_branch
    %3725 = sbr.rel (0) target = $region33
  $region32: #{net1_forward.1} parent=0 // pred_region
    _
  $region33: #{net1_forward.1} parent=0 // pred_fallthru
    _

</llo_original>
